<compile_context>
chip_gen: v5e
topology: v5e:2x2
jax: 0.10.0
libtpu: 0.0.40
codegen_flags: <defaults>
</compile_context>

<pallas_src>
import numpy as np
import jax
import jax.numpy as jnp
from jax import lax
from jax.experimental import pallas as pl
from jax.experimental.pallas import tpu as pltpu


# ----------------------------------------------------------------------------
# Pallas kernel (one batch element per grid step)
# ----------------------------------------------------------------------------
def _hgstem_kernel(xf_ref, w1f_ref, b1_ref, w2a_ref, b2a_ref, w2b_ref, b2b_ref,
                   w3_ref, b3_ref, w4_ref, b4_ref, o_ref):
    # xf_ref block: (1, Ho1+1, Wq+1, 8*C1): padded input, space-to-depth folded
    # (2x along H, 4x along W) by the wrapper.  Ho1 = H//2, Wq = W//4.
    xf = xf_ref[0]
    hp, wp, _ = xf.shape
    ho1, wq = hp - 1, wp - 1          # stem1 output grid is (ho1, 2*wq)
    hq = ho1 // 2                     # stem3/stem4 output rows (= H//4)
    n1 = ho1 * wq                     # rows of the column-folded half-width grid
    n3 = hq * wq                      # rows of the quarter-resolution grid

    w1f = w1f_ref[...]                # [8, 8*C1, cm]   index = (py*2+qy)*2+qx
    b1 = b1_ref[...]                  # [1, cm]
    w2a = w2a_ref[...]                # [4, cm, cm//2]  index = dy*2+dx
    b2a = b2a_ref[...]
    w2b = w2b_ref[...]                # [4, cm//2, cm]
    b2b = b2b_ref[...]
    w3 = w3_ref[...]                  # [9, 2*cm, cm]   index = dy*3+dx
    b3 = b3_ref[...]
    w4 = w4_ref[...]                  # [cm, c2]
    b4 = b4_ref[...]
    cm = b1.shape[-1]
    c2 = b4.shape[-1]

    def mm(a, b):                     # MXU matmul with f32 accumulation
        return jnp.dot(a, b, preferred_element_type=jnp.float32)

    # ---- stem1: 3x3 stride-2 pad-1 conv as static-shift + matmul taps -------
    views = {}
    for qy in (0, 1):
        for qx in (0, 1):
            views[(qy, qx)] = xf[qy:qy + ho1, qx:qx + wq, :].reshape(n1, -1)

    def stem1_plane(py):              # py = output-column parity
        acc = jnp.zeros((n1, cm), jnp.float32)
        for qy in (0, 1):
            for qx in (0, 1):
                if py == 0 and qx == 1:
                    continue          # even-column taps never shift in W
                acc = acc + mm(views[(qy, qx)], w1f[(py * 2 + qy) * 2 + qx])
        return jnp.maximum(acc + b1, 0.0).reshape(ho1, wq, cm)

    s1_e = stem1_plane(0)             # even output columns  [ho1, wq, cm]
    s1_o = stem1_plane(1)             # odd output columns   [ho1, wq, cm]

    # ---- helpers on (even-col, odd-col) plane pairs --------------------------
    def row_shift(t):                 # t[i] <- t[i+1]; zero-fill last row
        return jnp.concatenate([t[1:], jnp.zeros_like(t[:1])], axis=0)

    def col_shift(t):                 # t[:, b] <- t[:, b+1]; zero-fill last col
        return jnp.concatenate([t[:, 1:], jnp.zeros_like(t[:, :1])], axis=1)

    def conv2x2(t_e, t_o, w, b):
        # 2x2 stride-1 pad-0 conv applied to the [0,1,0,1]-zero-padded tensor
        # represented by the (even, odd) column plane pair.
        cin = t_e.shape[-1]
        cout = w.shape[-1]
        te0 = t_e.reshape(n1, cin)
        to0 = t_o.reshape(n1, cin)
        te1 = row_shift(t_e).reshape(n1, cin)
        to1 = row_shift(t_o).reshape(n1, cin)
        ce0 = col_shift(t_e).reshape(n1, cin)
        ce1 = row_shift(col_shift(t_e)).reshape(n1, cin)
        u_e = (mm(te0, w[0]) + mm(to0, w[1]) + mm(te1, w[2]) + mm(to1, w[3]))
        u_o = (mm(to0, w[0]) + mm(ce0, w[1]) + mm(to1, w[2]) + mm(ce1, w[3]))
        u_e = jnp.maximum(u_e + b, 0.0).reshape(ho1, wq, cout)
        u_o = jnp.maximum(u_o + b, 0.0).reshape(ho1, wq, cout)
        return u_e, u_o

    # ---- stem2a -> stem2b ----------------------------------------------------
    y2a_e, y2a_o = conv2x2(s1_e, s1_o, w2a, b2a)
    x2_e, x2_o = conv2x2(y2a_e, y2a_o, w2b, b2b)

    # ---- pool: 2x2 stride-1 max over the same right/bottom-padded stem1 out --
    # (the F.pad zeros legitimately take part in the max, as in the reference)
    x1_e = jnp.maximum(jnp.maximum(s1_e, s1_o),
                       jnp.maximum(row_shift(s1_e), row_shift(s1_o)))
    cse = col_shift(s1_e)
    x1_o = jnp.maximum(jnp.maximum(s1_o, cse),
                       jnp.maximum(row_shift(s1_o), row_shift(cse)))

    # ---- stem3: 3x3 stride-2 pad-1 on cat([x1, x2], C), concat-free ----------
    def parity_taps(t_e, t_o):
        # Build the 9 stride-2 conv taps as static shifted parity planes.
        c = t_e.shape[-1]
        re = t_e.reshape(hq, 2, wq, c)        # leading-dim split: free
        ro = t_o.reshape(hq, 2, wq, c)
        plane = {(0, 0): re[:, 0], (1, 0): re[:, 1],   # (row parity, col parity)
                 (0, 1): ro[:, 0], (1, 1): ro[:, 1]}

        def shift_down(p):     # p[a] <- p[a-1]; zero row at a=0 (top pad)
            return jnp.concatenate([jnp.zeros_like(p[:1]), p[:-1]], axis=0)

        def shift_right(p):    # p[:, b] <- p[:, b-1]; zero col at b=0 (left pad)
            return jnp.concatenate([jnp.zeros_like(p[:, :1]), p[:, :-1]], axis=1)

        # tap offset d in {0,1,2} -> (parity, needs zero-shift toward +index)
        pmap = {0: (1, True), 1: (0, False), 2: (1, False)}
        taps, memo = {}, {}
        for dy in range(3):
            ry, sdy = pmap[dy]
            for dx in range(3):
                rx, sdx = pmap[dx]
                key = (ry, rx, sdy, sdx)
                if key not in memo:
                    t = plane[(ry, rx)]
                    if sdx:
                        t = shift_right(t)
                    if sdy:
                        t = shift_down(t)
                    memo[key] = t.reshape(n3, c)
                taps[(dy, dx)] = memo[key]
        return taps

    taps1 = parity_taps(x1_e, x1_o)   # pool branch   -> w3 input rows [:cm]
    taps2 = parity_taps(x2_e, x2_o)   # stem2b branch -> w3 input rows [cm:]

    acc3 = jnp.zeros((n3, cm), jnp.float32)
    for dy in range(3):
        for dx in range(3):
            wt = w3[dy * 3 + dx]                  # [2*cm, cm]
            acc3 = acc3 + mm(taps1[(dy, dx)], wt[:cm])
            acc3 = acc3 + mm(taps2[(dy, dx)], wt[cm:])
    y3 = jnp.maximum(acc3 + b3, 0.0)

    # ---- stem4: 1x1 conv -----------------------------------------------------
    z = jnp.maximum(mm(y3, w4) + b4, 0.0)
    o_ref[0] = z.reshape(hq, wq, c2).astype(o_ref.dtype)


# ----------------------------------------------------------------------------
# Wrapper-side layout / weight folding (all plain XLA ops)
# ----------------------------------------------------------------------------
def _fold_input(x_nhwc):
    # Pad (+1 top/left for the stride-2 pad-1 conv; +1/+3 bottom/right to reach
    # even / multiple-of-4 sizes) and space-to-depth fold so that
    #   out[b, a, q, (u*4 + v)*C1 + c] = x_pad[b, 2a + u, 4q + v, c].
    b, h, w, c1 = x_nhwc.shape
    xp = jnp.pad(x_nhwc, ((0, 0), (1, 1), (1, 3), (0, 0)))
    hp, wp = h + 2, w + 4
    xf = xp.reshape(b, hp // 2, 2, wp // 4, 4, c1)
    xf = jnp.transpose(xf, (0, 1, 3, 2, 4, 5))
    return xf.reshape(b, hp // 2, wp // 4, 8 * c1)


def _fold_stem1_weight(w1_hwio):
    # w1_hwio: [3, 3, C1, cm].  Returns [2, 2, 2, 8*C1, cm]: entry [py, qy, qx]
    # is the weight applied to the (qy, qx)-shifted view of the folded input
    # when producing output columns of parity py.
    _, _, c1, cm = w1_hwio.shape
    w1f = jnp.zeros((2, 2, 2, 8 * c1, cm), w1_hwio.dtype)
    for py in range(2):
        for dy in range(3):
            qy, uy = divmod(dy, 2)
            for dx in range(3):
                qx, vx = divmod(2 * py + dx, 4)
                slab = (uy * 4 + vx) * c1
                w1f = w1f.at[py, qy, qx, slab:slab + c1, :].set(w1_hwio[dy, dx])
    return w1f


@jax.jit
def hgstem_forward(x, w1, b1, w2a, b2a, w2b, b2b, w3, b3, w4, b4):
    """HGStem forward.  x: [B, C1, H, W] (NCHW, like PyTorch); conv weights in
    PyTorch OIHW layout with BatchNorm folded in; biases [Cout].
    Requires H, W % 4 == 0 (multiples of 32 keep layouts tile-friendly).
    Returns [B, C2, H//4, W//4]."""
    B, C1, H, W = x.shape
    assert H % 4 == 0 and W % 4 == 0, "HGStem kernel needs H, W % 4 == 0"
    cm = w1.shape[0]
    cmh = w2a.shape[0]
    c2 = w4.shape[0]
    ho1, wq, hq = H // 2, W // 4, H // 4

    def hwio(w):
        return jnp.transpose(w, (2, 3, 1, 0))

    x_nhwc = jnp.transpose(x, (0, 2, 3, 1))
    xf = _fold_input(x_nhwc)                                  # [B, ho1+1, wq+1, 8*C1]
    w1f = _fold_stem1_weight(hwio(w1)).reshape(8, 8 * C1, cm)
    w2a_h = hwio(w2a).reshape(4, cm, cmh)
    w2b_h = hwio(w2b).reshape(4, cmh, cm)
    w3_h = hwio(w3).reshape(9, 2 * cm, cm)
    w4_m = jnp.transpose(w4[:, :, 0, 0])                      # [cm, c2]

    out_nhwc = pl.pallas_call(
        _hgstem_kernel,
        out_shape=jax.ShapeDtypeStruct((B, hq, wq, c2), x.dtype),
        grid_spec=pltpu.PrefetchScalarGridSpec(
            num_scalar_prefetch=0,
            grid=(B,),
            in_specs=[
                pl.BlockSpec((1, ho1 + 1, wq + 1, 8 * C1),
                             lambda b: (b, 0, 0, 0)),
                pl.BlockSpec((8, 8 * C1, cm), lambda b: (0, 0, 0)),
                pl.BlockSpec((1, cm), lambda b: (0, 0)),
                pl.BlockSpec((4, cm, cmh), lambda b: (0, 0, 0)),
                pl.BlockSpec((1, cmh), lambda b: (0, 0)),
                pl.BlockSpec((4, cmh, cm), lambda b: (0, 0, 0)),
                pl.BlockSpec((1, cm), lambda b: (0, 0)),
                pl.BlockSpec((9, 2 * cm, cm), lambda b: (0, 0, 0)),
                pl.BlockSpec((1, cm), lambda b: (0, 0)),
                pl.BlockSpec((cm, c2), lambda b: (0, 0)),
                pl.BlockSpec((1, c2), lambda b: (0, 0)),
            ],
            out_specs=pl.BlockSpec((1, hq, wq, c2), lambda b: (b, 0, 0, 0)),
        ),
        compiler_params=pltpu.CompilerParams(
            dimension_semantics=("parallel",)),
    )(xf, w1f, b1.reshape(1, cm), w2a_h, b2a.reshape(1, cmh),
      w2b_h, b2b.reshape(1, cm), w3_h, b3.reshape(1, cm),
      w4_m, b4.reshape(1, c2))
    return jnp.transpose(out_nhwc, (0, 3, 1, 2))


# ----------------------------------------------------------------------------
# Pure-JAX (XLA) NCHW reference: line-by-line port of HGStem.forward
# ----------------------------------------------------------------------------
def hgstem_reference(x, w1, b1, w2a, b2a, w2b, b2b, w3, b3, w4, b4):
    def conv(t, w, b, s, p):
        y = lax.conv_general_dilated(
            t, w, (s, s), [(p, p), (p, p)],
            dimension_numbers=("NCHW", "OIHW", "NCHW"))
        return jax.nn.relu(y + b[None, :, None, None])

    t = conv(x, w1, b1, 2, 1)                                    # stem1
    t = jnp.pad(t, ((0, 0), (0, 0), (0, 1), (0, 1)))             # F.pad [0,1,0,1]
    t2 = conv(t, w2a, b2a, 1, 0)                                 # stem2a
    t2 = jnp.pad(t2, ((0, 0), (0, 0), (0, 1), (0, 1)))
    t2 = conv(t2, w2b, b2b, 1, 0)                                # stem2b
    t1 = lax.reduce_window(t, -jnp.inf, lax.max,
                           (1, 1, 2, 2), (1, 1, 1, 1), "VALID")  # pool (ceil ==
                                                                 # floor here)
    t = jnp.concatenate([t1, t2], axis=1)
    t = conv(t, w3, b3, 2, 1)                                    # stem3
    return conv(t, w4, b4, 1, 0)                                 # stem4


if __name__ == "__main__":
    B, C1, H, W = 2, 3, 32, 32
    CM, C2 = 16, 32

    key = jax.random.PRNGKey(0)
    ks = jax.random.split(key, 11)

    def rnd(k, shape, scale):
        return jax.random.normal(k, shape, jnp.float32) * scale

    x = rnd(ks[0], (B, C1, H, W), 1.0)
    # Conv+BN folded weights (PyTorch OIHW layout) and biases.
    w1 = rnd(ks[1], (CM, C1, 3, 3), 0.25)
    b1 = rnd(ks[2], (CM,), 0.1)
    w2a = rnd(ks[3], (CM // 2, CM, 2, 2), 0.2)
    b2a = rnd(ks[4], (CM // 2,), 0.1)
    w2b = rnd(ks[5], (CM, CM // 2, 2, 2), 0.2)
    b2b = rnd(ks[6], (CM,), 0.1)
    w3 = rnd(ks[7], (CM, 2 * CM, 3, 3), 0.12)
    b3 = rnd(ks[8], (CM,), 0.1)
    w4 = rnd(ks[9], (C2, CM, 1, 1), 0.2)
    b4 = rnd(ks[10], (C2,), 0.1)

    args = (x, w1, b1, w2a, b2a, w2b, b2b, w3, b3, w4, b4)
    out = jax.block_until_ready(hgstem_forward(*args))
    ref = jax.block_until_ready(hgstem_reference(*args))
    assert out.shape == (B, C2, H // 4, W // 4), out.shape
    # Tolerance allows for MXU accumulation-order / default-precision-mode
    # differences between the in-kernel matmul taps and the XLA conv reference;
    # any structural bug would be orders of magnitude larger.
    np.testing.assert_allclose(np.asarray(out), np.asarray(ref),
                               rtol=1e-2, atol=1e-2)
    print("KERNEL_OK")
</pallas_src>

<mosaic_0001>
module attributes {stable_mosaic.version = 11 : i64} {
  func.func @_hgstem_kernel(%arg0: i32, %arg1: memref<1x17x9x24xf32, #tpu.memory_space<vmem>>, %arg2: memref<8x24x16xf32, #tpu.memory_space<vmem>>, %arg3: memref<1x16xf32, #tpu.memory_space<vmem>>, %arg4: memref<4x16x8xf32, #tpu.memory_space<vmem>>, %arg5: memref<1x8xf32, #tpu.memory_space<vmem>>, %arg6: memref<4x8x16xf32, #tpu.memory_space<vmem>>, %arg7: memref<1x16xf32, #tpu.memory_space<vmem>>, %arg8: memref<9x32x16xf32, #tpu.memory_space<vmem>>, %arg9: memref<1x16xf32, #tpu.memory_space<vmem>>, %arg10: memref<16x32xf32, #tpu.memory_space<vmem>>, %arg11: memref<1x32xf32, #tpu.memory_space<vmem>>, %arg12: memref<1x8x8x32xf32, #tpu.memory_space<vmem>>) attributes {dimension_semantics = [#tpu.dimension_semantics<parallel>], iteration_bounds = array<i64: 2>, scalar_prefetch = 0 : i64, scratch_operands = 0 : i64, tpu.core_type = #tpu.core_type<tc>, window_params = [{transform_indices = @transform_0, window_bounds = array<i64: 1, 17, 9, 24>}, {pipeline_mode = #tpu.pipeline_mode<synchronous>, transform_indices = @transform_1, window_bounds = array<i64: 8, 24, 16>}, {pipeline_mode = #tpu.pipeline_mode<synchronous>, transform_indices = @transform_2, window_bounds = array<i64: 1, 16>}, {pipeline_mode = #tpu.pipeline_mode<synchronous>, transform_indices = @transform_3, window_bounds = array<i64: 4, 16, 8>}, {pipeline_mode = #tpu.pipeline_mode<synchronous>, transform_indices = @transform_4, window_bounds = array<i64: 1, 8>}, {pipeline_mode = #tpu.pipeline_mode<synchronous>, transform_indices = @transform_5, window_bounds = array<i64: 4, 8, 16>}, {pipeline_mode = #tpu.pipeline_mode<synchronous>, transform_indices = @transform_6, window_bounds = array<i64: 1, 16>}, {pipeline_mode = #tpu.pipeline_mode<synchronous>, transform_indices = @transform_7, window_bounds = array<i64: 9, 32, 16>}, {pipeline_mode = #tpu.pipeline_mode<synchronous>, transform_indices = @transform_8, window_bounds = array<i64: 1, 16>}, {pipeline_mode = #tpu.pipeline_mode<synchronous>, transform_indices = @transform_9, window_bounds = array<i64: 16, 32>}, {pipeline_mode = #tpu.pipeline_mode<synchronous>, transform_indices = @transform_10, window_bounds = array<i64: 1, 32>}, {transform_indices = @transform_11, window_bounds = array<i64: 1, 8, 8, 32>}]} {
    %c0 = arith.constant 0 : index
    %c0_0 = arith.constant 0 : index
    %c0_1 = arith.constant 0 : index
    %c0_2 = arith.constant 0 : index
    %0 = vector.load %arg1[%c0, %c0_0, %c0_1, %c0_2] : memref<1x17x9x24xf32, #tpu.memory_space<vmem>>, vector<1x17x9x24xf32>
    %1 = vector.shape_cast %0 : vector<1x17x9x24xf32> to vector<17x9x24xf32>
    %c0_3 = arith.constant 0 : index
    %c0_4 = arith.constant 0 : index
    %c0_5 = arith.constant 0 : index
    %2 = vector.load %arg2[%c0_3, %c0_4, %c0_5] : memref<8x24x16xf32, #tpu.memory_space<vmem>>, vector<8x24x16xf32>
    %c0_6 = arith.constant 0 : index
    %c0_7 = arith.constant 0 : index
    %3 = vector.load %arg3[%c0_6, %c0_7] : memref<1x16xf32, #tpu.memory_space<vmem>>, vector<1x16xf32>
    %c0_8 = arith.constant 0 : index
    %c0_9 = arith.constant 0 : index
    %c0_10 = arith.constant 0 : index
    %4 = vector.load %arg4[%c0_8, %c0_9, %c0_10] : memref<4x16x8xf32, #tpu.memory_space<vmem>>, vector<4x16x8xf32>
    %c0_11 = arith.constant 0 : index
    %c0_12 = arith.constant 0 : index
    %5 = vector.load %arg5[%c0_11, %c0_12] : memref<1x8xf32, #tpu.memory_space<vmem>>, vector<1x8xf32>
    %c0_13 = arith.constant 0 : index
    %c0_14 = arith.constant 0 : index
    %c0_15 = arith.constant 0 : index
    %6 = vector.load %arg6[%c0_13, %c0_14, %c0_15] : memref<4x8x16xf32, #tpu.memory_space<vmem>>, vector<4x8x16xf32>
    %c0_16 = arith.constant 0 : index
    %c0_17 = arith.constant 0 : index
    %7 = vector.load %arg7[%c0_16, %c0_17] : memref<1x16xf32, #tpu.memory_space<vmem>>, vector<1x16xf32>
    %c0_18 = arith.constant 0 : index
    %c0_19 = arith.constant 0 : index
    %c0_20 = arith.constant 0 : index
    %8 = vector.load %arg8[%c0_18, %c0_19, %c0_20] : memref<9x32x16xf32, #tpu.memory_space<vmem>>, vector<9x32x16xf32>
    %c0_21 = arith.constant 0 : index
    %c0_22 = arith.constant 0 : index
    %9 = vector.load %arg9[%c0_21, %c0_22] : memref<1x16xf32, #tpu.memory_space<vmem>>, vector<1x16xf32>
    %c0_23 = arith.constant 0 : index
    %c0_24 = arith.constant 0 : index
    %10 = vector.load %arg10[%c0_23, %c0_24] : memref<16x32xf32, #tpu.memory_space<vmem>>, vector<16x32xf32>
    %c0_25 = arith.constant 0 : index
    %c0_26 = arith.constant 0 : index
    %11 = vector.load %arg11[%c0_25, %c0_26] : memref<1x32xf32, #tpu.memory_space<vmem>>, vector<1x32xf32>
    %12 = vector.extract_strided_slice %1 {offsets = [0, 0, 0], sizes = [16, 8, 24], strides = [1, 1, 1]} : vector<17x9x24xf32> to vector<16x8x24xf32>
    %13 = vector.shape_cast %12 : vector<16x8x24xf32> to vector<128x24xf32>
    %14 = vector.extract_strided_slice %1 {offsets = [0, 1, 0], sizes = [16, 8, 24], strides = [1, 1, 1]} : vector<17x9x24xf32> to vector<16x8x24xf32>
    %15 = vector.shape_cast %14 : vector<16x8x24xf32> to vector<128x24xf32>
    %16 = vector.extract_strided_slice %1 {offsets = [1, 0, 0], sizes = [16, 8, 24], strides = [1, 1, 1]} : vector<17x9x24xf32> to vector<16x8x24xf32>
    %17 = vector.shape_cast %16 : vector<16x8x24xf32> to vector<128x24xf32>
    %18 = vector.extract_strided_slice %1 {offsets = [1, 1, 0], sizes = [16, 8, 24], strides = [1, 1, 1]} : vector<17x9x24xf32> to vector<16x8x24xf32>
    %19 = vector.shape_cast %18 : vector<16x8x24xf32> to vector<128x24xf32>
    %cst = arith.constant 0.000000e+00 : f32
    %20 = vector.broadcast %cst : f32 to vector<128x16xf32>
    %21 = vector.extract_strided_slice %2 {offsets = [0, 0, 0], sizes = [1, 24, 16], strides = [1, 1, 1]} : vector<8x24x16xf32> to vector<1x24x16xf32>
    %22 = vector.shape_cast %21 : vector<1x24x16xf32> to vector<24x16xf32>
    %cst_27 = arith.constant dense<0.000000e+00> : vector<128x16xf32>
    %23 = tpu.matmul %13, %22, %cst_27 {dimension_numbers = #tpu.dot_dimension_numbers<[1], [0], [0], [1], [0, 0, 1, 1], [], []>} : vector<128x24xf32>, vector<24x16xf32>, vector<128x16xf32> -> vector<128x16xf32>
    %24 = arith.addf %20, %23 : vector<128x16xf32>
    %25 = vector.extract_strided_slice %2 {offsets = [2, 0, 0], sizes = [1, 24, 16], strides = [1, 1, 1]} : vector<8x24x16xf32> to vector<1x24x16xf32>
    %26 = vector.shape_cast %25 : vector<1x24x16xf32> to vector<24x16xf32>
    %cst_28 = arith.constant dense<0.000000e+00> : vector<128x16xf32>
    %27 = tpu.matmul %17, %26, %cst_28 {dimension_numbers = #tpu.dot_dimension_numbers<[1], [0], [0], [1], [0, 0, 1, 1], [], []>} : vector<128x24xf32>, vector<24x16xf32>, vector<128x16xf32> -> vector<128x16xf32>
    %28 = arith.addf %24, %27 : vector<128x16xf32>
    %29 = vector.broadcast %3 : vector<1x16xf32> to vector<128x16xf32>
    %30 = arith.addf %28, %29 : vector<128x16xf32>
    %cst_29 = arith.constant 0.000000e+00 : f32
    %31 = vector.broadcast %cst_29 : f32 to vector<128x16xf32>
    %32 = arith.maximumf %30, %31 : vector<128x16xf32>
    %33 = vector.shape_cast %32 : vector<128x16xf32> to vector<16x8x16xf32>
    %cst_30 = arith.constant 0.000000e+00 : f32
    %34 = vector.broadcast %cst_30 : f32 to vector<128x16xf32>
    %35 = vector.extract_strided_slice %2 {offsets = [4, 0, 0], sizes = [1, 24, 16], strides = [1, 1, 1]} : vector<8x24x16xf32> to vector<1x24x16xf32>
    %36 = vector.shape_cast %35 : vector<1x24x16xf32> to vector<24x16xf32>
    %cst_31 = arith.constant dense<0.000000e+00> : vector<128x16xf32>
    %37 = tpu.matmul %13, %36, %cst_31 {dimension_numbers = #tpu.dot_dimension_numbers<[1], [0], [0], [1], [0, 0, 1, 1], [], []>} : vector<128x24xf32>, vector<24x16xf32>, vector<128x16xf32> -> vector<128x16xf32>
    %38 = arith.addf %34, %37 : vector<128x16xf32>
    %39 = vector.extract_strided_slice %2 {offsets = [5, 0, 0], sizes = [1, 24, 16], strides = [1, 1, 1]} : vector<8x24x16xf32> to vector<1x24x16xf32>
    %40 = vector.shape_cast %39 : vector<1x24x16xf32> to vector<24x16xf32>
    %cst_32 = arith.constant dense<0.000000e+00> : vector<128x16xf32>
    %41 = tpu.matmul %15, %40, %cst_32 {dimension_numbers = #tpu.dot_dimension_numbers<[1], [0], [0], [1], [0, 0, 1, 1], [], []>} : vector<128x24xf32>, vector<24x16xf32>, vector<128x16xf32> -> vector<128x16xf32>
    %42 = arith.addf %38, %41 : vector<128x16xf32>
    %43 = vector.extract_strided_slice %2 {offsets = [6, 0, 0], sizes = [1, 24, 16], strides = [1, 1, 1]} : vector<8x24x16xf32> to vector<1x24x16xf32>
    %44 = vector.shape_cast %43 : vector<1x24x16xf32> to vector<24x16xf32>
    %cst_33 = arith.constant dense<0.000000e+00> : vector<128x16xf32>
    %45 = tpu.matmul %17, %44, %cst_33 {dimension_numbers = #tpu.dot_dimension_numbers<[1], [0], [0], [1], [0, 0, 1, 1], [], []>} : vector<128x24xf32>, vector<24x16xf32>, vector<128x16xf32> -> vector<128x16xf32>
    %46 = arith.addf %42, %45 : vector<128x16xf32>
    %47 = vector.extract_strided_slice %2 {offsets = [7, 0, 0], sizes = [1, 24, 16], strides = [1, 1, 1]} : vector<8x24x16xf32> to vector<1x24x16xf32>
    %48 = vector.shape_cast %47 : vector<1x24x16xf32> to vector<24x16xf32>
    %cst_34 = arith.constant dense<0.000000e+00> : vector<128x16xf32>
    %49 = tpu.matmul %19, %48, %cst_34 {dimension_numbers = #tpu.dot_dimension_numbers<[1], [0], [0], [1], [0, 0, 1, 1], [], []>} : vector<128x24xf32>, vector<24x16xf32>, vector<128x16xf32> -> vector<128x16xf32>
    %50 = arith.addf %46, %49 : vector<128x16xf32>
    %51 = vector.broadcast %3 : vector<1x16xf32> to vector<128x16xf32>
    %52 = arith.addf %50, %51 : vector<128x16xf32>
    %cst_35 = arith.constant 0.000000e+00 : f32
    %53 = vector.broadcast %cst_35 : f32 to vector<128x16xf32>
    %54 = arith.maximumf %52, %53 : vector<128x16xf32>
    %55 = vector.shape_cast %54 : vector<128x16xf32> to vector<16x8x16xf32>
    %56 = vector.shape_cast %33 : vector<16x8x16xf32> to vector<128x16xf32>
    %57 = vector.shape_cast %55 : vector<16x8x16xf32> to vector<128x16xf32>
    %58 = vector.extract_strided_slice %33 {offsets = [1, 0, 0], sizes = [15, 8, 16], strides = [1, 1, 1]} : vector<16x8x16xf32> to vector<15x8x16xf32>
    %cst_36 = arith.constant 0.000000e+00 : f32
    %59 = vector.broadcast %cst_36 : f32 to vector<1x8x16xf32>
    %60 = tpu.concatenate %58, %59 in 0 : vector<15x8x16xf32>, vector<1x8x16xf32> -> vector<16x8x16xf32>
    %61 = vector.shape_cast %60 : vector<16x8x16xf32> to vector<128x16xf32>
    %62 = vector.extract_strided_slice %55 {offsets = [1, 0, 0], sizes = [15, 8, 16], strides = [1, 1, 1]} : vector<16x8x16xf32> to vector<15x8x16xf32>
    %cst_37 = arith.constant 0.000000e+00 : f32
    %63 = vector.broadcast %cst_37 : f32 to vector<1x8x16xf32>
    %64 = tpu.concatenate %62, %63 in 0 : vector<15x8x16xf32>, vector<1x8x16xf32> -> vector<16x8x16xf32>
    %65 = vector.shape_cast %64 : vector<16x8x16xf32> to vector<128x16xf32>
    %66 = vector.extract_strided_slice %33 {offsets = [0, 1, 0], sizes = [16, 7, 16], strides = [1, 1, 1]} : vector<16x8x16xf32> to vector<16x7x16xf32>
    %cst_38 = arith.constant 0.000000e+00 : f32
    %67 = vector.broadcast %cst_38 : f32 to vector<16x1x16xf32>
    %68 = tpu.concatenate %66, %67 in 1 : vector<16x7x16xf32>, vector<16x1x16xf32> -> vector<16x8x16xf32>
    %69 = vector.shape_cast %68 : vector<16x8x16xf32> to vector<128x16xf32>
    %70 = vector.extract_strided_slice %33 {offsets = [0, 1, 0], sizes = [16, 7, 16], strides = [1, 1, 1]} : vector<16x8x16xf32> to vector<16x7x16xf32>
    %cst_39 = arith.constant 0.000000e+00 : f32
    %71 = vector.broadcast %cst_39 : f32 to vector<16x1x16xf32>
    %72 = tpu.concatenate %70, %71 in 1 : vector<16x7x16xf32>, vector<16x1x16xf32> -> vector<16x8x16xf32>
    %73 = vector.extract_strided_slice %72 {offsets = [1, 0, 0], sizes = [15, 8, 16], strides = [1, 1, 1]} : vector<16x8x16xf32> to vector<15x8x16xf32>
    %cst_40 = arith.constant 0.000000e+00 : f32
    %74 = vector.broadcast %cst_40 : f32 to vector<1x8x16xf32>
    %75 = tpu.concatenate %73, %74 in 0 : vector<15x8x16xf32>, vector<1x8x16xf32> -> vector<16x8x16xf32>
    %76 = vector.shape_cast %75 : vector<16x8x16xf32> to vector<128x16xf32>
    %77 = vector.extract_strided_slice %4 {offsets = [0, 0, 0], sizes = [1, 16, 8], strides = [1, 1, 1]} : vector<4x16x8xf32> to vector<1x16x8xf32>
    %78 = vector.shape_cast %77 : vector<1x16x8xf32> to vector<16x8xf32>
    %cst_41 = arith.constant dense<0.000000e+00> : vector<128x8xf32>
    %79 = tpu.matmul %56, %78, %cst_41 {dimension_numbers = #tpu.dot_dimension_numbers<[1], [0], [0], [1], [0, 0, 1, 1], [], []>} : vector<128x16xf32>, vector<16x8xf32>, vector<128x8xf32> -> vector<128x8xf32>
    %80 = vector.extract_strided_slice %4 {offsets = [1, 0, 0], sizes = [1, 16, 8], strides = [1, 1, 1]} : vector<4x16x8xf32> to vector<1x16x8xf32>
    %81 = vector.shape_cast %80 : vector<1x16x8xf32> to vector<16x8xf32>
    %cst_42 = arith.constant dense<0.000000e+00> : vector<128x8xf32>
    %82 = tpu.matmul %57, %81, %cst_42 {dimension_numbers = #tpu.dot_dimension_numbers<[1], [0], [0], [1], [0, 0, 1, 1], [], []>} : vector<128x16xf32>, vector<16x8xf32>, vector<128x8xf32> -> vector<128x8xf32>
    %83 = arith.addf %79, %82 : vector<128x8xf32>
    %84 = vector.extract_strided_slice %4 {offsets = [2, 0, 0], sizes = [1, 16, 8], strides = [1, 1, 1]} : vector<4x16x8xf32> to vector<1x16x8xf32>
    %85 = vector.shape_cast %84 : vector<1x16x8xf32> to vector<16x8xf32>
    %cst_43 = arith.constant dense<0.000000e+00> : vector<128x8xf32>
    %86 = tpu.matmul %61, %85, %cst_43 {dimension_numbers = #tpu.dot_dimension_numbers<[1], [0], [0], [1], [0, 0, 1, 1], [], []>} : vector<128x16xf32>, vector<16x8xf32>, vector<128x8xf32> -> vector<128x8xf32>
    %87 = arith.addf %83, %86 : vector<128x8xf32>
    %88 = vector.extract_strided_slice %4 {offsets = [3, 0, 0], sizes = [1, 16, 8], strides = [1, 1, 1]} : vector<4x16x8xf32> to vector<1x16x8xf32>
    %89 = vector.shape_cast %88 : vector<1x16x8xf32> to vector<16x8xf32>
    %cst_44 = arith.constant dense<0.000000e+00> : vector<128x8xf32>
    %90 = tpu.matmul %65, %89, %cst_44 {dimension_numbers = #tpu.dot_dimension_numbers<[1], [0], [0], [1], [0, 0, 1, 1], [], []>} : vector<128x16xf32>, vector<16x8xf32>, vector<128x8xf32> -> vector<128x8xf32>
    %91 = arith.addf %87, %90 : vector<128x8xf32>
    %92 = vector.extract_strided_slice %4 {offsets = [0, 0, 0], sizes = [1, 16, 8], strides = [1, 1, 1]} : vector<4x16x8xf32> to vector<1x16x8xf32>
    %93 = vector.shape_cast %92 : vector<1x16x8xf32> to vector<16x8xf32>
    %cst_45 = arith.constant dense<0.000000e+00> : vector<128x8xf32>
    %94 = tpu.matmul %57, %93, %cst_45 {dimension_numbers = #tpu.dot_dimension_numbers<[1], [0], [0], [1], [0, 0, 1, 1], [], []>} : vector<128x16xf32>, vector<16x8xf32>, vector<128x8xf32> -> vector<128x8xf32>
    %95 = vector.extract_strided_slice %4 {offsets = [1, 0, 0], sizes = [1, 16, 8], strides = [1, 1, 1]} : vector<4x16x8xf32> to vector<1x16x8xf32>
    %96 = vector.shape_cast %95 : vector<1x16x8xf32> to vector<16x8xf32>
    %cst_46 = arith.constant dense<0.000000e+00> : vector<128x8xf32>
    %97 = tpu.matmul %69, %96, %cst_46 {dimension_numbers = #tpu.dot_dimension_numbers<[1], [0], [0], [1], [0, 0, 1, 1], [], []>} : vector<128x16xf32>, vector<16x8xf32>, vector<128x8xf32> -> vector<128x8xf32>
    %98 = arith.addf %94, %97 : vector<128x8xf32>
    %99 = vector.extract_strided_slice %4 {offsets = [2, 0, 0], sizes = [1, 16, 8], strides = [1, 1, 1]} : vector<4x16x8xf32> to vector<1x16x8xf32>
    %100 = vector.shape_cast %99 : vector<1x16x8xf32> to vector<16x8xf32>
    %cst_47 = arith.constant dense<0.000000e+00> : vector<128x8xf32>
    %101 = tpu.matmul %65, %100, %cst_47 {dimension_numbers = #tpu.dot_dimension_numbers<[1], [0], [0], [1], [0, 0, 1, 1], [], []>} : vector<128x16xf32>, vector<16x8xf32>, vector<128x8xf32> -> vector<128x8xf32>
    %102 = arith.addf %98, %101 : vector<128x8xf32>
    %103 = vector.extract_strided_slice %4 {offsets = [3, 0, 0], sizes = [1, 16, 8], strides = [1, 1, 1]} : vector<4x16x8xf32> to vector<1x16x8xf32>
    %104 = vector.shape_cast %103 : vector<1x16x8xf32> to vector<16x8xf32>
    %cst_48 = arith.constant dense<0.000000e+00> : vector<128x8xf32>
    %105 = tpu.matmul %76, %104, %cst_48 {dimension_numbers = #tpu.dot_dimension_numbers<[1], [0], [0], [1], [0, 0, 1, 1], [], []>} : vector<128x16xf32>, vector<16x8xf32>, vector<128x8xf32> -> vector<128x8xf32>
    %106 = arith.addf %102, %105 : vector<128x8xf32>
    %107 = vector.broadcast %5 : vector<1x8xf32> to vector<128x8xf32>
    %108 = arith.addf %91, %107 : vector<128x8xf32>
    %cst_49 = arith.constant 0.000000e+00 : f32
    %109 = vector.broadcast %cst_49 : f32 to vector<128x8xf32>
    %110 = arith.maximumf %108, %109 : vector<128x8xf32>
    %111 = vector.shape_cast %110 : vector<128x8xf32> to vector<16x8x8xf32>
    %112 = vector.broadcast %5 : vector<1x8xf32> to vector<128x8xf32>
    %113 = arith.addf %106, %112 : vector<128x8xf32>
    %cst_50 = arith.constant 0.000000e+00 : f32
    %114 = vector.broadcast %cst_50 : f32 to vector<128x8xf32>
    %115 = arith.maximumf %113, %114 : vector<128x8xf32>
    %116 = vector.shape_cast %115 : vector<128x8xf32> to vector<16x8x8xf32>
    %117 = vector.shape_cast %111 : vector<16x8x8xf32> to vector<128x8xf32>
    %118 = vector.shape_cast %116 : vector<16x8x8xf32> to vector<128x8xf32>
    %119 = vector.extract_strided_slice %111 {offsets = [1, 0, 0], sizes = [15, 8, 8], strides = [1, 1, 1]} : vector<16x8x8xf32> to vector<15x8x8xf32>
    %cst_51 = arith.constant 0.000000e+00 : f32
    %120 = vector.broadcast %cst_51 : f32 to vector<1x8x8xf32>
    %121 = tpu.concatenate %119, %120 in 0 : vector<15x8x8xf32>, vector<1x8x8xf32> -> vector<16x8x8xf32>
    %122 = vector.shape_cast %121 : vector<16x8x8xf32> to vector<128x8xf32>
    %123 = vector.extract_strided_slice %116 {offsets = [1, 0, 0], sizes = [15, 8, 8], strides = [1, 1, 1]} : vector<16x8x8xf32> to vector<15x8x8xf32>
    %cst_52 = arith.constant 0.000000e+00 : f32
    %124 = vector.broadcast %cst_52 : f32 to vector<1x8x8xf32>
    %125 = tpu.concatenate %123, %124 in 0 : vector<15x8x8xf32>, vector<1x8x8xf32> -> vector<16x8x8xf32>
    %126 = vector.shape_cast %125 : vector<16x8x8xf32> to vector<128x8xf32>
    %127 = vector.extract_strided_slice %111 {offsets = [0, 1, 0], sizes = [16, 7, 8], strides = [1, 1, 1]} : vector<16x8x8xf32> to vector<16x7x8xf32>
    %cst_53 = arith.constant 0.000000e+00 : f32
    %128 = vector.broadcast %cst_53 : f32 to vector<16x1x8xf32>
    %129 = tpu.concatenate %127, %128 in 1 : vector<16x7x8xf32>, vector<16x1x8xf32> -> vector<16x8x8xf32>
    %130 = vector.shape_cast %129 : vector<16x8x8xf32> to vector<128x8xf32>
    %131 = vector.extract_strided_slice %111 {offsets = [0, 1, 0], sizes = [16, 7, 8], strides = [1, 1, 1]} : vector<16x8x8xf32> to vector<16x7x8xf32>
    %cst_54 = arith.constant 0.000000e+00 : f32
    %132 = vector.broadcast %cst_54 : f32 to vector<16x1x8xf32>
    %133 = tpu.concatenate %131, %132 in 1 : vector<16x7x8xf32>, vector<16x1x8xf32> -> vector<16x8x8xf32>
    %134 = vector.extract_strided_slice %133 {offsets = [1, 0, 0], sizes = [15, 8, 8], strides = [1, 1, 1]} : vector<16x8x8xf32> to vector<15x8x8xf32>
    %cst_55 = arith.constant 0.000000e+00 : f32
    %135 = vector.broadcast %cst_55 : f32 to vector<1x8x8xf32>
    %136 = tpu.concatenate %134, %135 in 0 : vector<15x8x8xf32>, vector<1x8x8xf32> -> vector<16x8x8xf32>
    %137 = vector.shape_cast %136 : vector<16x8x8xf32> to vector<128x8xf32>
    %138 = vector.extract_strided_slice %6 {offsets = [0, 0, 0], sizes = [1, 8, 16], strides = [1, 1, 1]} : vector<4x8x16xf32> to vector<1x8x16xf32>
    %139 = vector.shape_cast %138 : vector<1x8x16xf32> to vector<8x16xf32>
    %cst_56 = arith.constant dense<0.000000e+00> : vector<128x16xf32>
    %140 = tpu.matmul %117, %139, %cst_56 {dimension_numbers = #tpu.dot_dimension_numbers<[1], [0], [0], [1], [0, 0, 1, 1], [], []>} : vector<128x8xf32>, vector<8x16xf32>, vector<128x16xf32> -> vector<128x16xf32>
    %141 = vector.extract_strided_slice %6 {offsets = [1, 0, 0], sizes = [1, 8, 16], strides = [1, 1, 1]} : vector<4x8x16xf32> to vector<1x8x16xf32>
    %142 = vector.shape_cast %141 : vector<1x8x16xf32> to vector<8x16xf32>
    %cst_57 = arith.constant dense<0.000000e+00> : vector<128x16xf32>
    %143 = tpu.matmul %118, %142, %cst_57 {dimension_numbers = #tpu.dot_dimension_numbers<[1], [0], [0], [1], [0, 0, 1, 1], [], []>} : vector<128x8xf32>, vector<8x16xf32>, vector<128x16xf32> -> vector<128x16xf32>
    %144 = arith.addf %140, %143 : vector<128x16xf32>
    %145 = vector.extract_strided_slice %6 {offsets = [2, 0, 0], sizes = [1, 8, 16], strides = [1, 1, 1]} : vector<4x8x16xf32> to vector<1x8x16xf32>
    %146 = vector.shape_cast %145 : vector<1x8x16xf32> to vector<8x16xf32>
    %cst_58 = arith.constant dense<0.000000e+00> : vector<128x16xf32>
    %147 = tpu.matmul %122, %146, %cst_58 {dimension_numbers = #tpu.dot_dimension_numbers<[1], [0], [0], [1], [0, 0, 1, 1], [], []>} : vector<128x8xf32>, vector<8x16xf32>, vector<128x16xf32> -> vector<128x16xf32>
    %148 = arith.addf %144, %147 : vector<128x16xf32>
    %149 = vector.extract_strided_slice %6 {offsets = [3, 0, 0], sizes = [1, 8, 16], strides = [1, 1, 1]} : vector<4x8x16xf32> to vector<1x8x16xf32>
    %150 = vector.shape_cast %149 : vector<1x8x16xf32> to vector<8x16xf32>
    %cst_59 = arith.constant dense<0.000000e+00> : vector<128x16xf32>
    %151 = tpu.matmul %126, %150, %cst_59 {dimension_numbers = #tpu.dot_dimension_numbers<[1], [0], [0], [1], [0, 0, 1, 1], [], []>} : vector<128x8xf32>, vector<8x16xf32>, vector<128x16xf32> -> vector<128x16xf32>
    %152 = arith.addf %148, %151 : vector<128x16xf32>
    %153 = vector.extract_strided_slice %6 {offsets = [0, 0, 0], sizes = [1, 8, 16], strides = [1, 1, 1]} : vector<4x8x16xf32> to vector<1x8x16xf32>
    %154 = vector.shape_cast %153 : vector<1x8x16xf32> to vector<8x16xf32>
    %cst_60 = arith.constant dense<0.000000e+00> : vector<128x16xf32>
    %155 = tpu.matmul %118, %154, %cst_60 {dimension_numbers = #tpu.dot_dimension_numbers<[1], [0], [0], [1], [0, 0, 1, 1], [], []>} : vector<128x8xf32>, vector<8x16xf32>, vector<128x16xf32> -> vector<128x16xf32>
    %156 = vector.extract_strided_slice %6 {offsets = [1, 0, 0], sizes = [1, 8, 16], strides = [1, 1, 1]} : vector<4x8x16xf32> to vector<1x8x16xf32>
    %157 = vector.shape_cast %156 : vector<1x8x16xf32> to vector<8x16xf32>
    %cst_61 = arith.constant dense<0.000000e+00> : vector<128x16xf32>
    %158 = tpu.matmul %130, %157, %cst_61 {dimension_numbers = #tpu.dot_dimension_numbers<[1], [0], [0], [1], [0, 0, 1, 1], [], []>} : vector<128x8xf32>, vector<8x16xf32>, vector<128x16xf32> -> vector<128x16xf32>
    %159 = arith.addf %155, %158 : vector<128x16xf32>
    %160 = vector.extract_strided_slice %6 {offsets = [2, 0, 0], sizes = [1, 8, 16], strides = [1, 1, 1]} : vector<4x8x16xf32> to vector<1x8x16xf32>
    %161 = vector.shape_cast %160 : vector<1x8x16xf32> to vector<8x16xf32>
    %cst_62 = arith.constant dense<0.000000e+00> : vector<128x16xf32>
    %162 = tpu.matmul %126, %161, %cst_62 {dimension_numbers = #tpu.dot_dimension_numbers<[1], [0], [0], [1], [0, 0, 1, 1], [], []>} : vector<128x8xf32>, vector<8x16xf32>, vector<128x16xf32> -> vector<128x16xf32>
    %163 = arith.addf %159, %162 : vector<128x16xf32>
    %164 = vector.extract_strided_slice %6 {offsets = [3, 0, 0], sizes = [1, 8, 16], strides = [1, 1, 1]} : vector<4x8x16xf32> to vector<1x8x16xf32>
    %165 = vector.shape_cast %164 : vector<1x8x16xf32> to vector<8x16xf32>
    %cst_63 = arith.constant dense<0.000000e+00> : vector<128x16xf32>
    %166 = tpu.matmul %137, %165, %cst_63 {dimension_numbers = #tpu.dot_dimension_numbers<[1], [0], [0], [1], [0, 0, 1, 1], [], []>} : vector<128x8xf32>, vector<8x16xf32>, vector<128x16xf32> -> vector<128x16xf32>
    %167 = arith.addf %163, %166 : vector<128x16xf32>
    %168 = vector.broadcast %7 : vector<1x16xf32> to vector<128x16xf32>
    %169 = arith.addf %152, %168 : vector<128x16xf32>
    %cst_64 = arith.constant 0.000000e+00 : f32
    %170 = vector.broadcast %cst_64 : f32 to vector<128x16xf32>
    %171 = arith.maximumf %169, %170 : vector<128x16xf32>
    %172 = vector.shape_cast %171 : vector<128x16xf32> to vector<16x8x16xf32>
    %173 = vector.broadcast %7 : vector<1x16xf32> to vector<128x16xf32>
    %174 = arith.addf %167, %173 : vector<128x16xf32>
    %cst_65 = arith.constant 0.000000e+00 : f32
    %175 = vector.broadcast %cst_65 : f32 to vector<128x16xf32>
    %176 = arith.maximumf %174, %175 : vector<128x16xf32>
    %177 = vector.shape_cast %176 : vector<128x16xf32> to vector<16x8x16xf32>
    %178 = arith.maximumf %33, %55 : vector<16x8x16xf32>
    %179 = vector.extract_strided_slice %33 {offsets = [1, 0, 0], sizes = [15, 8, 16], strides = [1, 1, 1]} : vector<16x8x16xf32> to vector<15x8x16xf32>
    %cst_66 = arith.constant 0.000000e+00 : f32
    %180 = vector.broadcast %cst_66 : f32 to vector<1x8x16xf32>
    %181 = tpu.concatenate %179, %180 in 0 : vector<15x8x16xf32>, vector<1x8x16xf32> -> vector<16x8x16xf32>
    %182 = vector.extract_strided_slice %55 {offsets = [1, 0, 0], sizes = [15, 8, 16], strides = [1, 1, 1]} : vector<16x8x16xf32> to vector<15x8x16xf32>
    %cst_67 = arith.constant 0.000000e+00 : f32
    %183 = vector.broadcast %cst_67 : f32 to vector<1x8x16xf32>
    %184 = tpu.concatenate %182, %183 in 0 : vector<15x8x16xf32>, vector<1x8x16xf32> -> vector<16x8x16xf32>
    %185 = arith.maximumf %181, %184 : vector<16x8x16xf32>
    %186 = arith.maximumf %178, %185 : vector<16x8x16xf32>
    %187 = vector.extract_strided_slice %33 {offsets = [0, 1, 0], sizes = [16, 7, 16], strides = [1, 1, 1]} : vector<16x8x16xf32> to vector<16x7x16xf32>
    %cst_68 = arith.constant 0.000000e+00 : f32
    %188 = vector.broadcast %cst_68 : f32 to vector<16x1x16xf32>
    %189 = tpu.concatenate %187, %188 in 1 : vector<16x7x16xf32>, vector<16x1x16xf32> -> vector<16x8x16xf32>
    %190 = arith.maximumf %55, %189 : vector<16x8x16xf32>
    %191 = vector.extract_strided_slice %55 {offsets = [1, 0, 0], sizes = [15, 8, 16], strides = [1, 1, 1]} : vector<16x8x16xf32> to vector<15x8x16xf32>
    %cst_69 = arith.constant 0.000000e+00 : f32
    %192 = vector.broadcast %cst_69 : f32 to vector<1x8x16xf32>
    %193 = tpu.concatenate %191, %192 in 0 : vector<15x8x16xf32>, vector<1x8x16xf32> -> vector<16x8x16xf32>
    %194 = vector.extract_strided_slice %189 {offsets = [1, 0, 0], sizes = [15, 8, 16], strides = [1, 1, 1]} : vector<16x8x16xf32> to vector<15x8x16xf32>
    %cst_70 = arith.constant 0.000000e+00 : f32
    %195 = vector.broadcast %cst_70 : f32 to vector<1x8x16xf32>
    %196 = tpu.concatenate %194, %195 in 0 : vector<15x8x16xf32>, vector<1x8x16xf32> -> vector<16x8x16xf32>
    %197 = arith.maximumf %193, %196 : vector<16x8x16xf32>
    %198 = arith.maximumf %190, %197 : vector<16x8x16xf32>
    %199 = vector.shape_cast %186 : vector<16x8x16xf32> to vector<8x2x8x16xf32>
    %200 = vector.shape_cast %198 : vector<16x8x16xf32> to vector<8x2x8x16xf32>
    %201 = vector.extract_strided_slice %199 {offsets = [0, 0, 0, 0], sizes = [8, 1, 8, 16], strides = [1, 1, 1, 1]} : vector<8x2x8x16xf32> to vector<8x1x8x16xf32>
    %202 = vector.shape_cast %201 : vector<8x1x8x16xf32> to vector<8x8x16xf32>
    %203 = vector.extract_strided_slice %199 {offsets = [0, 1, 0, 0], sizes = [8, 1, 8, 16], strides = [1, 1, 1, 1]} : vector<8x2x8x16xf32> to vector<8x1x8x16xf32>
    %204 = vector.shape_cast %203 : vector<8x1x8x16xf32> to vector<8x8x16xf32>
    %205 = vector.extract_strided_slice %200 {offsets = [0, 0, 0, 0], sizes = [8, 1, 8, 16], strides = [1, 1, 1, 1]} : vector<8x2x8x16xf32> to vector<8x1x8x16xf32>
    %206 = vector.shape_cast %205 : vector<8x1x8x16xf32> to vector<8x8x16xf32>
    %207 = vector.extract_strided_slice %200 {offsets = [0, 1, 0, 0], sizes = [8, 1, 8, 16], strides = [1, 1, 1, 1]} : vector<8x2x8x16xf32> to vector<8x1x8x16xf32>
    %208 = vector.shape_cast %207 : vector<8x1x8x16xf32> to vector<8x8x16xf32>
    %cst_71 = arith.constant 0.000000e+00 : f32
    %209 = vector.broadcast %cst_71 : f32 to vector<8x1x16xf32>
    %210 = vector.extract_strided_slice %208 {offsets = [0, 0, 0], sizes = [8, 7, 16], strides = [1, 1, 1]} : vector<8x8x16xf32> to vector<8x7x16xf32>
    %211 = tpu.concatenate %209, %210 in 1 : vector<8x1x16xf32>, vector<8x7x16xf32> -> vector<8x8x16xf32>
    %cst_72 = arith.constant 0.000000e+00 : f32
    %212 = vector.broadcast %cst_72 : f32 to vector<1x8x16xf32>
    %213 = vector.extract_strided_slice %211 {offsets = [0, 0, 0], sizes = [7, 8, 16], strides = [1, 1, 1]} : vector<8x8x16xf32> to vector<7x8x16xf32>
    %214 = tpu.concatenate %212, %213 in 0 : vector<1x8x16xf32>, vector<7x8x16xf32> -> vector<8x8x16xf32>
    %215 = vector.shape_cast %214 : vector<8x8x16xf32> to vector<64x16xf32>
    %cst_73 = arith.constant 0.000000e+00 : f32
    %216 = vector.broadcast %cst_73 : f32 to vector<1x8x16xf32>
    %217 = vector.extract_strided_slice %204 {offsets = [0, 0, 0], sizes = [7, 8, 16], strides = [1, 1, 1]} : vector<8x8x16xf32> to vector<7x8x16xf32>
    %218 = tpu.concatenate %216, %217 in 0 : vector<1x8x16xf32>, vector<7x8x16xf32> -> vector<8x8x16xf32>
    %219 = vector.shape_cast %218 : vector<8x8x16xf32> to vector<64x16xf32>
    %cst_74 = arith.constant 0.000000e+00 : f32
    %220 = vector.broadcast %cst_74 : f32 to vector<1x8x16xf32>
    %221 = vector.extract_strided_slice %208 {offsets = [0, 0, 0], sizes = [7, 8, 16], strides = [1, 1, 1]} : vector<8x8x16xf32> to vector<7x8x16xf32>
    %222 = tpu.concatenate %220, %221 in 0 : vector<1x8x16xf32>, vector<7x8x16xf32> -> vector<8x8x16xf32>
    %223 = vector.shape_cast %222 : vector<8x8x16xf32> to vector<64x16xf32>
    %cst_75 = arith.constant 0.000000e+00 : f32
    %224 = vector.broadcast %cst_75 : f32 to vector<8x1x16xf32>
    %225 = vector.extract_strided_slice %206 {offsets = [0, 0, 0], sizes = [8, 7, 16], strides = [1, 1, 1]} : vector<8x8x16xf32> to vector<8x7x16xf32>
    %226 = tpu.concatenate %224, %225 in 1 : vector<8x1x16xf32>, vector<8x7x16xf32> -> vector<8x8x16xf32>
    %227 = vector.shape_cast %226 : vector<8x8x16xf32> to vector<64x16xf32>
    %228 = vector.shape_cast %202 : vector<8x8x16xf32> to vector<64x16xf32>
    %229 = vector.shape_cast %206 : vector<8x8x16xf32> to vector<64x16xf32>
    %cst_76 = arith.constant 0.000000e+00 : f32
    %230 = vector.broadcast %cst_76 : f32 to vector<8x1x16xf32>
    %231 = vector.extract_strided_slice %208 {offsets = [0, 0, 0], sizes = [8, 7, 16], strides = [1, 1, 1]} : vector<8x8x16xf32> to vector<8x7x16xf32>
    %232 = tpu.concatenate %230, %231 in 1 : vector<8x1x16xf32>, vector<8x7x16xf32> -> vector<8x8x16xf32>
    %233 = vector.shape_cast %232 : vector<8x8x16xf32> to vector<64x16xf32>
    %234 = vector.shape_cast %204 : vector<8x8x16xf32> to vector<64x16xf32>
    %235 = vector.shape_cast %208 : vector<8x8x16xf32> to vector<64x16xf32>
    %236 = vector.shape_cast %172 : vector<16x8x16xf32> to vector<8x2x8x16xf32>
    %237 = vector.shape_cast %177 : vector<16x8x16xf32> to vector<8x2x8x16xf32>
    %238 = vector.extract_strided_slice %236 {offsets = [0, 0, 0, 0], sizes = [8, 1, 8, 16], strides = [1, 1, 1, 1]} : vector<8x2x8x16xf32> to vector<8x1x8x16xf32>
    %239 = vector.shape_cast %238 : vector<8x1x8x16xf32> to vector<8x8x16xf32>
    %240 = vector.extract_strided_slice %236 {offsets = [0, 1, 0, 0], sizes = [8, 1, 8, 16], strides = [1, 1, 1, 1]} : vector<8x2x8x16xf32> to vector<8x1x8x16xf32>
    %241 = vector.shape_cast %240 : vector<8x1x8x16xf32> to vector<8x8x16xf32>
    %242 = vector.extract_strided_slice %237 {offsets = [0, 0, 0, 0], sizes = [8, 1, 8, 16], strides = [1, 1, 1, 1]} : vector<8x2x8x16xf32> to vector<8x1x8x16xf32>
    %243 = vector.shape_cast %242 : vector<8x1x8x16xf32> to vector<8x8x16xf32>
    %244 = vector.extract_strided_slice %237 {offsets = [0, 1, 0, 0], sizes = [8, 1, 8, 16], strides = [1, 1, 1, 1]} : vector<8x2x8x16xf32> to vector<8x1x8x16xf32>
    %245 = vector.shape_cast %244 : vector<8x1x8x16xf32> to vector<8x8x16xf32>
    %cst_77 = arith.constant 0.000000e+00 : f32
    %246 = vector.broadcast %cst_77 : f32 to vector<8x1x16xf32>
    %247 = vector.extract_strided_slice %245 {offsets = [0, 0, 0], sizes = [8, 7, 16], strides = [1, 1, 1]} : vector<8x8x16xf32> to vector<8x7x16xf32>
    %248 = tpu.concatenate %246, %247 in 1 : vector<8x1x16xf32>, vector<8x7x16xf32> -> vector<8x8x16xf32>
    %cst_78 = arith.constant 0.000000e+00 : f32
    %249 = vector.broadcast %cst_78 : f32 to vector<1x8x16xf32>
    %250 = vector.extract_strided_slice %248 {offsets = [0, 0, 0], sizes = [7, 8, 16], strides = [1, 1, 1]} : vector<8x8x16xf32> to vector<7x8x16xf32>
    %251 = tpu.concatenate %249, %250 in 0 : vector<1x8x16xf32>, vector<7x8x16xf32> -> vector<8x8x16xf32>
    %252 = vector.shape_cast %251 : vector<8x8x16xf32> to vector<64x16xf32>
    %cst_79 = arith.constant 0.000000e+00 : f32
    %253 = vector.broadcast %cst_79 : f32 to vector<1x8x16xf32>
    %254 = vector.extract_strided_slice %241 {offsets = [0, 0, 0], sizes = [7, 8, 16], strides = [1, 1, 1]} : vector<8x8x16xf32> to vector<7x8x16xf32>
    %255 = tpu.concatenate %253, %254 in 0 : vector<1x8x16xf32>, vector<7x8x16xf32> -> vector<8x8x16xf32>
    %256 = vector.shape_cast %255 : vector<8x8x16xf32> to vector<64x16xf32>
    %cst_80 = arith.constant 0.000000e+00 : f32
    %257 = vector.broadcast %cst_80 : f32 to vector<1x8x16xf32>
    %258 = vector.extract_strided_slice %245 {offsets = [0, 0, 0], sizes = [7, 8, 16], strides = [1, 1, 1]} : vector<8x8x16xf32> to vector<7x8x16xf32>
    %259 = tpu.concatenate %257, %258 in 0 : vector<1x8x16xf32>, vector<7x8x16xf32> -> vector<8x8x16xf32>
    %260 = vector.shape_cast %259 : vector<8x8x16xf32> to vector<64x16xf32>
    %cst_81 = arith.constant 0.000000e+00 : f32
    %261 = vector.broadcast %cst_81 : f32 to vector<8x1x16xf32>
    %262 = vector.extract_strided_slice %243 {offsets = [0, 0, 0], sizes = [8, 7, 16], strides = [1, 1, 1]} : vector<8x8x16xf32> to vector<8x7x16xf32>
    %263 = tpu.concatenate %261, %262 in 1 : vector<8x1x16xf32>, vector<8x7x16xf32> -> vector<8x8x16xf32>
    %264 = vector.shape_cast %263 : vector<8x8x16xf32> to vector<64x16xf32>
    %265 = vector.shape_cast %239 : vector<8x8x16xf32> to vector<64x16xf32>
    %266 = vector.shape_cast %243 : vector<8x8x16xf32> to vector<64x16xf32>
    %cst_82 = arith.constant 0.000000e+00 : f32
    %267 = vector.broadcast %cst_82 : f32 to vector<8x1x16xf32>
    %268 = vector.extract_strided_slice %245 {offsets = [0, 0, 0], sizes = [8, 7, 16], strides = [1, 1, 1]} : vector<8x8x16xf32> to vector<8x7x16xf32>
    %269 = tpu.concatenate %267, %268 in 1 : vector<8x1x16xf32>, vector<8x7x16xf32> -> vector<8x8x16xf32>
    %270 = vector.shape_cast %269 : vector<8x8x16xf32> to vector<64x16xf32>
    %271 = vector.shape_cast %241 : vector<8x8x16xf32> to vector<64x16xf32>
    %272 = vector.shape_cast %245 : vector<8x8x16xf32> to vector<64x16xf32>
    %cst_83 = arith.constant 0.000000e+00 : f32
    %273 = vector.broadcast %cst_83 : f32 to vector<64x16xf32>
    %274 = vector.extract_strided_slice %8 {offsets = [0, 0, 0], sizes = [1, 32, 16], strides = [1, 1, 1]} : vector<9x32x16xf32> to vector<1x32x16xf32>
    %275 = vector.shape_cast %274 : vector<1x32x16xf32> to vector<32x16xf32>
    %276 = vector.extract_strided_slice %275 {offsets = [0, 0], sizes = [16, 16], strides = [1, 1]} : vector<32x16xf32> to vector<16x16xf32>
    %cst_84 = arith.constant dense<0.000000e+00> : vector<64x16xf32>
    %277 = tpu.matmul %215, %276, %cst_84 {dimension_numbers = #tpu.dot_dimension_numbers<[1], [0], [0], [1], [0, 0, 1, 1], [], []>} : vector<64x16xf32>, vector<16x16xf32>, vector<64x16xf32> -> vector<64x16xf32>
    %278 = arith.addf %273, %277 : vector<64x16xf32>
    %279 = vector.extract_strided_slice %275 {offsets = [16, 0], sizes = [16, 16], strides = [1, 1]} : vector<32x16xf32> to vector<16x16xf32>
    %cst_85 = arith.constant dense<0.000000e+00> : vector<64x16xf32>
    %280 = tpu.matmul %252, %279, %cst_85 {dimension_numbers = #tpu.dot_dimension_numbers<[1], [0], [0], [1], [0, 0, 1, 1], [], []>} : vector<64x16xf32>, vector<16x16xf32>, vector<64x16xf32> -> vector<64x16xf32>
    %281 = arith.addf %278, %280 : vector<64x16xf32>
    %282 = vector.extract_strided_slice %8 {offsets = [1, 0, 0], sizes = [1, 32, 16], strides = [1, 1, 1]} : vector<9x32x16xf32> to vector<1x32x16xf32>
    %283 = vector.shape_cast %282 : vector<1x32x16xf32> to vector<32x16xf32>
    %284 = vector.extract_strided_slice %283 {offsets = [0, 0], sizes = [16, 16], strides = [1, 1]} : vector<32x16xf32> to vector<16x16xf32>
    %cst_86 = arith.constant dense<0.000000e+00> : vector<64x16xf32>
    %285 = tpu.matmul %219, %284, %cst_86 {dimension_numbers = #tpu.dot_dimension_numbers<[1], [0], [0], [1], [0, 0, 1, 1], [], []>} : vector<64x16xf32>, vector<16x16xf32>, vector<64x16xf32> -> vector<64x16xf32>
    %286 = arith.addf %281, %285 : vector<64x16xf32>
    %287 = vector.extract_strided_slice %283 {offsets = [16, 0], sizes = [16, 16], strides = [1, 1]} : vector<32x16xf32> to vector<16x16xf32>
    %cst_87 = arith.constant dense<0.000000e+00> : vector<64x16xf32>
    %288 = tpu.matmul %256, %287, %cst_87 {dimension_numbers = #tpu.dot_dimension_numbers<[1], [0], [0], [1], [0, 0, 1, 1], [], []>} : vector<64x16xf32>, vector<16x16xf32>, vector<64x16xf32> -> vector<64x16xf32>
    %289 = arith.addf %286, %288 : vector<64x16xf32>
    %290 = vector.extract_strided_slice %8 {offsets = [2, 0, 0], sizes = [1, 32, 16], strides = [1, 1, 1]} : vector<9x32x16xf32> to vector<1x32x16xf32>
    %291 = vector.shape_cast %290 : vector<1x32x16xf32> to vector<32x16xf32>
    %292 = vector.extract_strided_slice %291 {offsets = [0, 0], sizes = [16, 16], strides = [1, 1]} : vector<32x16xf32> to vector<16x16xf32>
    %cst_88 = arith.constant dense<0.000000e+00> : vector<64x16xf32>
    %293 = tpu.matmul %223, %292, %cst_88 {dimension_numbers = #tpu.dot_dimension_numbers<[1], [0], [0], [1], [0, 0, 1, 1], [], []>} : vector<64x16xf32>, vector<16x16xf32>, vector<64x16xf32> -> vector<64x16xf32>
    %294 = arith.addf %289, %293 : vector<64x16xf32>
    %295 = vector.extract_strided_slice %291 {offsets = [16, 0], sizes = [16, 16], strides = [1, 1]} : vector<32x16xf32> to vector<16x16xf32>
    %cst_89 = arith.constant dense<0.000000e+00> : vector<64x16xf32>
    %296 = tpu.matmul %260, %295, %cst_89 {dimension_numbers = #tpu.dot_dimension_numbers<[1], [0], [0], [1], [0, 0, 1, 1], [], []>} : vector<64x16xf32>, vector<16x16xf32>, vector<64x16xf32> -> vector<64x16xf32>
    %297 = arith.addf %294, %296 : vector<64x16xf32>
    %298 = vector.extract_strided_slice %8 {offsets = [3, 0, 0], sizes = [1, 32, 16], strides = [1, 1, 1]} : vector<9x32x16xf32> to vector<1x32x16xf32>
    %299 = vector.shape_cast %298 : vector<1x32x16xf32> to vector<32x16xf32>
    %300 = vector.extract_strided_slice %299 {offsets = [0, 0], sizes = [16, 16], strides = [1, 1]} : vector<32x16xf32> to vector<16x16xf32>
    %cst_90 = arith.constant dense<0.000000e+00> : vector<64x16xf32>
    %301 = tpu.matmul %227, %300, %cst_90 {dimension_numbers = #tpu.dot_dimension_numbers<[1], [0], [0], [1], [0, 0, 1, 1], [], []>} : vector<64x16xf32>, vector<16x16xf32>, vector<64x16xf32> -> vector<64x16xf32>
    %302 = arith.addf %297, %301 : vector<64x16xf32>
    %303 = vector.extract_strided_slice %299 {offsets = [16, 0], sizes = [16, 16], strides = [1, 1]} : vector<32x16xf32> to vector<16x16xf32>
    %cst_91 = arith.constant dense<0.000000e+00> : vector<64x16xf32>
    %304 = tpu.matmul %264, %303, %cst_91 {dimension_numbers = #tpu.dot_dimension_numbers<[1], [0], [0], [1], [0, 0, 1, 1], [], []>} : vector<64x16xf32>, vector<16x16xf32>, vector<64x16xf32> -> vector<64x16xf32>
    %305 = arith.addf %302, %304 : vector<64x16xf32>
    %306 = vector.extract_strided_slice %8 {offsets = [4, 0, 0], sizes = [1, 32, 16], strides = [1, 1, 1]} : vector<9x32x16xf32> to vector<1x32x16xf32>
    %307 = vector.shape_cast %306 : vector<1x32x16xf32> to vector<32x16xf32>
    %308 = vector.extract_strided_slice %307 {offsets = [0, 0], sizes = [16, 16], strides = [1, 1]} : vector<32x16xf32> to vector<16x16xf32>
    %cst_92 = arith.constant dense<0.000000e+00> : vector<64x16xf32>
    %309 = tpu.matmul %228, %308, %cst_92 {dimension_numbers = #tpu.dot_dimension_numbers<[1], [0], [0], [1], [0, 0, 1, 1], [], []>} : vector<64x16xf32>, vector<16x16xf32>, vector<64x16xf32> -> vector<64x16xf32>
    %310 = arith.addf %305, %309 : vector<64x16xf32>
    %311 = vector.extract_strided_slice %307 {offsets = [16, 0], sizes = [16, 16], strides = [1, 1]} : vector<32x16xf32> to vector<16x16xf32>
    %cst_93 = arith.constant dense<0.000000e+00> : vector<64x16xf32>
    %312 = tpu.matmul %265, %311, %cst_93 {dimension_numbers = #tpu.dot_dimension_numbers<[1], [0], [0], [1], [0, 0, 1, 1], [], []>} : vector<64x16xf32>, vector<16x16xf32>, vector<64x16xf32> -> vector<64x16xf32>
    %313 = arith.addf %310, %312 : vector<64x16xf32>
    %314 = vector.extract_strided_slice %8 {offsets = [5, 0, 0], sizes = [1, 32, 16], strides = [1, 1, 1]} : vector<9x32x16xf32> to vector<1x32x16xf32>
    %315 = vector.shape_cast %314 : vector<1x32x16xf32> to vector<32x16xf32>
    %316 = vector.extract_strided_slice %315 {offsets = [0, 0], sizes = [16, 16], strides = [1, 1]} : vector<32x16xf32> to vector<16x16xf32>
    %cst_94 = arith.constant dense<0.000000e+00> : vector<64x16xf32>
    %317 = tpu.matmul %229, %316, %cst_94 {dimension_numbers = #tpu.dot_dimension_numbers<[1], [0], [0], [1], [0, 0, 1, 1], [], []>} : vector<64x16xf32>, vector<16x16xf32>, vector<64x16xf32> -> vector<64x16xf32>
    %318 = arith.addf %313, %317 : vector<64x16xf32>
    %319 = vector.extract_strided_slice %315 {offsets = [16, 0], sizes = [16, 16], strides = [1, 1]} : vector<32x16xf32> to vector<16x16xf32>
    %cst_95 = arith.constant dense<0.000000e+00> : vector<64x16xf32>
    %320 = tpu.matmul %266, %319, %cst_95 {dimension_numbers = #tpu.dot_dimension_numbers<[1], [0], [0], [1], [0, 0, 1, 1], [], []>} : vector<64x16xf32>, vector<16x16xf32>, vector<64x16xf32> -> vector<64x16xf32>
    %321 = arith.addf %318, %320 : vector<64x16xf32>
    %322 = vector.extract_strided_slice %8 {offsets = [6, 0, 0], sizes = [1, 32, 16], strides = [1, 1, 1]} : vector<9x32x16xf32> to vector<1x32x16xf32>
    %323 = vector.shape_cast %322 : vector<1x32x16xf32> to vector<32x16xf32>
    %324 = vector.extract_strided_slice %323 {offsets = [0, 0], sizes = [16, 16], strides = [1, 1]} : vector<32x16xf32> to vector<16x16xf32>
    %cst_96 = arith.constant dense<0.000000e+00> : vector<64x16xf32>
    %325 = tpu.matmul %233, %324, %cst_96 {dimension_numbers = #tpu.dot_dimension_numbers<[1], [0], [0], [1], [0, 0, 1, 1], [], []>} : vector<64x16xf32>, vector<16x16xf32>, vector<64x16xf32> -> vector<64x16xf32>
    %326 = arith.addf %321, %325 : vector<64x16xf32>
    %327 = vector.extract_strided_slice %323 {offsets = [16, 0], sizes = [16, 16], strides = [1, 1]} : vector<32x16xf32> to vector<16x16xf32>
    %cst_97 = arith.constant dense<0.000000e+00> : vector<64x16xf32>
    %328 = tpu.matmul %270, %327, %cst_97 {dimension_numbers = #tpu.dot_dimension_numbers<[1], [0], [0], [1], [0, 0, 1, 1], [], []>} : vector<64x16xf32>, vector<16x16xf32>, vector<64x16xf32> -> vector<64x16xf32>
    %329 = arith.addf %326, %328 : vector<64x16xf32>
    %330 = vector.extract_strided_slice %8 {offsets = [7, 0, 0], sizes = [1, 32, 16], strides = [1, 1, 1]} : vector<9x32x16xf32> to vector<1x32x16xf32>
    %331 = vector.shape_cast %330 : vector<1x32x16xf32> to vector<32x16xf32>
    %332 = vector.extract_strided_slice %331 {offsets = [0, 0], sizes = [16, 16], strides = [1, 1]} : vector<32x16xf32> to vector<16x16xf32>
    %cst_98 = arith.constant dense<0.000000e+00> : vector<64x16xf32>
    %333 = tpu.matmul %234, %332, %cst_98 {dimension_numbers = #tpu.dot_dimension_numbers<[1], [0], [0], [1], [0, 0, 1, 1], [], []>} : vector<64x16xf32>, vector<16x16xf32>, vector<64x16xf32> -> vector<64x16xf32>
    %334 = arith.addf %329, %333 : vector<64x16xf32>
    %335 = vector.extract_strided_slice %331 {offsets = [16, 0], sizes = [16, 16], strides = [1, 1]} : vector<32x16xf32> to vector<16x16xf32>
    %cst_99 = arith.constant dense<0.000000e+00> : vector<64x16xf32>
    %336 = tpu.matmul %271, %335, %cst_99 {dimension_numbers = #tpu.dot_dimension_numbers<[1], [0], [0], [1], [0, 0, 1, 1], [], []>} : vector<64x16xf32>, vector<16x16xf32>, vector<64x16xf32> -> vector<64x16xf32>
    %337 = arith.addf %334, %336 : vector<64x16xf32>
    %338 = vector.extract_strided_slice %8 {offsets = [8, 0, 0], sizes = [1, 32, 16], strides = [1, 1, 1]} : vector<9x32x16xf32> to vector<1x32x16xf32>
    %339 = vector.shape_cast %338 : vector<1x32x16xf32> to vector<32x16xf32>
    %340 = vector.extract_strided_slice %339 {offsets = [0, 0], sizes = [16, 16], strides = [1, 1]} : vector<32x16xf32> to vector<16x16xf32>
    %cst_100 = arith.constant dense<0.000000e+00> : vector<64x16xf32>
    %341 = tpu.matmul %235, %340, %cst_100 {dimension_numbers = #tpu.dot_dimension_numbers<[1], [0], [0], [1], [0, 0, 1, 1], [], []>} : vector<64x16xf32>, vector<16x16xf32>, vector<64x16xf32> -> vector<64x16xf32>
    %342 = arith.addf %337, %341 : vector<64x16xf32>
    %343 = vector.extract_strided_slice %339 {offsets = [16, 0], sizes = [16, 16], strides = [1, 1]} : vector<32x16xf32> to vector<16x16xf32>
    %cst_101 = arith.constant dense<0.000000e+00> : vector<64x16xf32>
    %344 = tpu.matmul %272, %343, %cst_101 {dimension_numbers = #tpu.dot_dimension_numbers<[1], [0], [0], [1], [0, 0, 1, 1], [], []>} : vector<64x16xf32>, vector<16x16xf32>, vector<64x16xf32> -> vector<64x16xf32>
    %345 = arith.addf %342, %344 : vector<64x16xf32>
    %346 = vector.broadcast %9 : vector<1x16xf32> to vector<64x16xf32>
    %347 = arith.addf %345, %346 : vector<64x16xf32>
    %cst_102 = arith.constant 0.000000e+00 : f32
    %348 = vector.broadcast %cst_102 : f32 to vector<64x16xf32>
    %349 = arith.maximumf %347, %348 : vector<64x16xf32>
    %cst_103 = arith.constant dense<0.000000e+00> : vector<64x32xf32>
    %350 = tpu.matmul %349, %10, %cst_103 {dimension_numbers = #tpu.dot_dimension_numbers<[1], [0], [0], [1], [0, 0, 1, 1], [], []>} : vector<64x16xf32>, vector<16x32xf32>, vector<64x32xf32> -> vector<64x32xf32>
    %351 = vector.broadcast %11 : vector<1x32xf32> to vector<64x32xf32>
    %352 = arith.addf %350, %351 : vector<64x32xf32>
    %cst_104 = arith.constant 0.000000e+00 : f32
    %353 = vector.broadcast %cst_104 : f32 to vector<64x32xf32>
    %354 = arith.maximumf %352, %353 : vector<64x32xf32>
    %355 = vector.shape_cast %354 : vector<64x32xf32> to vector<8x8x32xf32>
    %c0_105 = arith.constant 0 : index
    %c0_106 = arith.constant 0 : index
    %c0_107 = arith.constant 0 : index
    %c0_108 = arith.constant 0 : index
    %356 = vector.load %arg12[%c0_105, %c0_106, %c0_107, %c0_108] : memref<1x8x8x32xf32, #tpu.memory_space<vmem>>, vector<1x8x8x32xf32>
    %357 = vector.shape_cast %356 : vector<1x8x8x32xf32> to vector<8x8x32xf32>
    %358 = vector.shape_cast %355 : vector<8x8x32xf32> to vector<1x8x8x32xf32>
    tpu.vector_store %arg12[%c0_105, %c0_106, %c0_107, %c0_108], %358 {strides = array<i32>} : memref<1x8x8x32xf32, #tpu.memory_space<vmem>>, vector<1x8x8x32xf32>,
    return
  }
  func.func @transform_0(%arg0: i32) -> (i32, i32, i32, i32) {
    %c0_i32 = arith.constant 0 : i32
    %c0_i32_0 = arith.constant 0 : i32
    %c0_i32_1 = arith.constant 0 : i32
    %c0_i32_2 = arith.constant 0 : i32
    return %arg0, %c0_i32, %c0_i32_0, %c0_i32_1 : i32, i32, i32, i32
  }
  func.func @transform_1(%arg0: i32) -> (i32, i32, i32) {
    %c0_i32 = arith.constant 0 : i32
    %c0_i32_0 = arith.constant 0 : i32
    %c0_i32_1 = arith.constant 0 : i32
    %c0_i32_2 = arith.constant 0 : i32
    return %c0_i32, %c0_i32_0, %c0_i32_1 : i32, i32, i32
  }
  func.func @transform_2(%arg0: i32) -> (i32, i32) {
    %c0_i32 = arith.constant 0 : i32
    %c0_i32_0 = arith.constant 0 : i32
    %c0_i32_1 = arith.constant 0 : i32
    return %c0_i32, %c0_i32_0 : i32, i32
  }
  func.func @transform_3(%arg0: i32) -> (i32, i32, i32) {
    %c0_i32 = arith.constant 0 : i32
    %c0_i32_0 = arith.constant 0 : i32
    %c0_i32_1 = arith.constant 0 : i32
    %c0_i32_2 = arith.constant 0 : i32
    return %c0_i32, %c0_i32_0, %c0_i32_1 : i32, i32, i32
  }
  func.func @transform_4(%arg0: i32) -> (i32, i32) {
    %c0_i32 = arith.constant 0 : i32
    %c0_i32_0 = arith.constant 0 : i32
    %c0_i32_1 = arith.constant 0 : i32
    return %c0_i32, %c0_i32_0 : i32, i32
  }
  func.func @transform_5(%arg0: i32) -> (i32, i32, i32) {
    %c0_i32 = arith.constant 0 : i32
    %c0_i32_0 = arith.constant 0 : i32
    %c0_i32_1 = arith.constant 0 : i32
    %c0_i32_2 = arith.constant 0 : i32
    return %c0_i32, %c0_i32_0, %c0_i32_1 : i32, i32, i32
  }
  func.func @transform_6(%arg0: i32) -> (i32, i32) {
    %c0_i32 = arith.constant 0 : i32
    %c0_i32_0 = arith.constant 0 : i32
    %c0_i32_1 = arith.constant 0 : i32
    return %c0_i32, %c0_i32_0 : i32, i32
  }
  func.func @transform_7(%arg0: i32) -> (i32, i32, i32) {
    %c0_i32 = arith.constant 0 : i32
    %c0_i32_0 = arith.constant 0 : i32
    %c0_i32_1 = arith.constant 0 : i32
    %c0_i32_2 = arith.constant 0 : i32
    return %c0_i32, %c0_i32_0, %c0_i32_1 : i32, i32, i32
  }
  func.func @transform_8(%arg0: i32) -> (i32, i32) {
    %c0_i32 = arith.constant 0 : i32
    %c0_i32_0 = arith.constant 0 : i32
    %c0_i32_1 = arith.constant 0 : i32
    return %c0_i32, %c0_i32_0 : i32, i32
  }
  func.func @transform_9(%arg0: i32) -> (i32, i32) {
    %c0_i32 = arith.constant 0 : i32
    %c0_i32_0 = arith.constant 0 : i32
    %c0_i32_1 = arith.constant 0 : i32
    return %c0_i32, %c0_i32_0 : i32, i32
  }
  func.func @transform_10(%arg0: i32) -> (i32, i32) {
    %c0_i32 = arith.constant 0 : i32
    %c0_i32_0 = arith.constant 0 : i32
    %c0_i32_1 = arith.constant 0 : i32
    return %c0_i32, %c0_i32_0 : i32, i32
  }
  func.func @transform_11(%arg0: i32) -> (i32, i32, i32, i32) {
    %c0_i32 = arith.constant 0 : i32
    %c0_i32_0 = arith.constant 0 : i32
    %c0_i32_1 = arith.constant 0 : i32
    %c0_i32_2 = arith.constant 0 : i32
    return %arg0, %c0_i32, %c0_i32_0, %c0_i32_1 : i32, i32, i32, i32
  }
}

</mosaic_0001>

<llo_original>
// kernel: hgstem_forward.1
$region0: #{hgstem_forward.1}
  #allocation0 [shape = 'u32[]', space=smem, size = 0x4, offset = 0x4, fixed_abs, tag = 'smem constant byte address 0x4 - core index']
  #allocation1 [shape = 'u32[72,128]{1,0:T(1,128)}', space=vmem, size = 0x9000, scoped, tag = 'internal scratch']
  %s0 = inlined_call_operand.vmem [shape: f32[2,17,9,24], index: 0, kind: input, shape index: {}]
  %s1 = inlined_call_operand.vmem [shape: f32[8,24,16], index: 1, kind: input, shape index: {}]
  %s2 = inlined_call_operand.vmem [shape: f32[1,16], index: 2, kind: input, shape index: {}]
  %s3 = inlined_call_operand.vmem [shape: f32[4,16,8], index: 3, kind: input, shape index: {}]
  %s4 = inlined_call_operand.vmem [shape: f32[1,8], index: 4, kind: input, shape index: {}]
  %s5 = inlined_call_operand.vmem [shape: f32[4,8,16], index: 5, kind: input, shape index: {}]
  %s6 = inlined_call_operand.vmem [shape: f32[1,16], index: 6, kind: input, shape index: {}]
  %s7 = inlined_call_operand.vmem [shape: f32[9,32,16], index: 7, kind: input, shape index: {}]
  %s8 = inlined_call_operand.vmem [shape: f32[1,16], index: 8, kind: input, shape index: {}]
  %s9 = inlined_call_operand.vmem [shape: f32[16,32], index: 9, kind: input, shape index: {}]
  %s10 = inlined_call_operand.vmem [shape: f32[1,32], index: 10, kind: input, shape index: {}]
  %s11 = inlined_call_operand.hbm [shape: f32[2,8,8,32], index: 11, kind: output, shape index: {}]
  %s12 = sld [smem:[#allocation0]]
  $region77: #{hgstem_forward.1} parent=0
    _
  %s14 = ssub.s32 1, %s12
  %s15 = scalar_select 0, %s14, %s12
  $region1: #{hgstem_forward.1} parent=0
    #allocation2 [shape = 'u8[65536]{0}', space=vmem, size = 0x10000, scoped, tag = 'output window, operand 0']
    #allocation3 [shape = 's32[2]{0}', space=sflag, size = 0x8, scoped, tag = 'scoped memory for hgstem_forward.1']
    %16 = vsyncpa [#allocation3], 0
    %s17 = scalar_lea.sflag [#allocation3], 1
    %18 = vsyncpa %s17, 0
    loop: start=0, step=1, limit=4
    $region2: #{hgstem_forward.1} parent=1 // loop_pre_header
      _
    $region3: #{hgstem_forward.1} parent=1 // loop_header
      %s20 = sphi 0, %s24
      %p21 = scmp.ge.s32.totalorder %s20, 4
      %s30 = sphi 0, %s32
      %s33 = sphi 0, %s30
      %s34 = sphi 0, %s33
      %s50 = sphi 0, %s34
      %s54 = sphi 0, %s54
      %s56 = sphi 0, %s54
      %s57 = sphi 0, %s56
      %s71 = sphi 0, %s57
      %s75 = sphi 0, %s75
      %s77 = sphi 0, %s75
      %s78 = sphi 0, %s77
      %s92 = sphi 0, %s78
      %s96 = sphi 0, %s96
      %s98 = sphi 0, %s96
      %s99 = sphi 0, %s98
      %s113 = sphi 0, %s99
      %s117 = sphi 0, %s117
      %s119 = sphi 0, %s117
      %s120 = sphi 0, %s119
      %s134 = sphi 0, %s120
      %s138 = sphi 0, %s138
      %s140 = sphi 0, %s138
      %s141 = sphi 0, %s140
      %s155 = sphi 0, %s141
      %s159 = sphi 0, %s159
      %s161 = sphi 0, %s159
      %s162 = sphi 0, %s161
      %s176 = sphi 0, %s162
      %s180 = sphi 0, %s180
      %s182 = sphi 0, %s180
      %s183 = sphi 0, %s182
      %s197 = sphi 0, %s183
      %s201 = sphi 0, %s201
      %s203 = sphi 0, %s201
      %s204 = sphi 0, %s203
      %s218 = sphi 0, %s204
      %s222 = sphi 0, %s222
      %s224 = sphi 0, %s222
      %s225 = sphi 0, %s224
      %s239 = sphi 0, %s225
      %s243 = sphi 0, %s243
      %s245 = sphi 0, %s243
      %s246 = sphi 0, %s245
      %s260 = sphi 0, %s246
      %s266 = sphi 0, %s268
      %s269 = sphi 0, %s266
      %s270 = sphi 0, %s269
      %s286 = sphi 0, %s270
    $region4: #{hgstem_forward.1} parent=1 // loop_header_branch
      %23 = sbr.rel (%p21) target = $region8
    $region5: #{hgstem_forward.1} parent=1 // loop_body
      %s25 = ssub.s32 %s20, 1
      %s26 = ssub.s32 %s20, 2
      %s27 = sadd.s32 %s20, 1
      %s28 = ssub.s32 %s20, %s27
      %p29 = scmp.eq.s32.totalorder %s28, 0
      %s31 = sadd.s32 %s30, 1
      %s32 = scalar_select %p29, %s30, %s31
      %p35 = pneg %p29
      %p36 = scmp.eq.s32.totalorder %s20, 1
      %p37 = por %p35, %p36
      %p38 = scmp.ne.s32.totalorder %s30, %s33
      %p39 = scmp.eq.s32.totalorder %s20, 0
      %p40 = por %p38, %p39
      %p41 = scmp.ne.s32.totalorder %s30, %s33
      %p42 = scmp.eq.s32.totalorder %s25, 1
      %p43 = por %p41, %p42
      %p44 = scmp.ne.s32.totalorder %s33, %s34
      %p45 = scmp.eq.s32.totalorder %s25, 0
      %p46 = por %p44, %p45
      %p47 = scmp.ne.s32.totalorder %s33, %s34
      %p48 = scmp.eq.s32.totalorder %s26, 1
      %p49 = por %p47, %p48
      %p51 = scmp.ne.s32.totalorder %s34, %s50
      %p52 = scmp.eq.s32.totalorder %s26, 0
      %p53 = por %p51, %p52
      %s55 = sadd.s32 %s54, 1
      %p58 = scmp.eq.s32.totalorder %s20, 1
      %p59 = scmp.ne.s32.totalorder %s54, %s56
      %p60 = scmp.eq.s32.totalorder %s20, 0
      %p61 = por %p59, %p60
      %p62 = scmp.ne.s32.totalorder %s54, %s56
      %p63 = scmp.eq.s32.totalorder %s25, 1
      %p64 = por %p62, %p63
      %p65 = scmp.ne.s32.totalorder %s56, %s57
      %p66 = scmp.eq.s32.totalorder %s25, 0
      %p67 = por %p65, %p66
      %p68 = scmp.ne.s32.totalorder %s56, %s57
      %p69 = scmp.eq.s32.totalorder %s26, 1
      %p70 = por %p68, %p69
      %p72 = scmp.ne.s32.totalorder %s57, %s71
      %p73 = scmp.eq.s32.totalorder %s26, 0
      %p74 = por %p72, %p73
      %s76 = sadd.s32 %s75, 1
      %p79 = scmp.eq.s32.totalorder %s20, 1
      %p80 = scmp.ne.s32.totalorder %s75, %s77
      %p81 = scmp.eq.s32.totalorder %s20, 0
      %p82 = por %p80, %p81
      %p83 = scmp.ne.s32.totalorder %s75, %s77
      %p84 = scmp.eq.s32.totalorder %s25, 1
      %p85 = por %p83, %p84
      %p86 = scmp.ne.s32.totalorder %s77, %s78
      %p87 = scmp.eq.s32.totalorder %s25, 0
      %p88 = por %p86, %p87
      %p89 = scmp.ne.s32.totalorder %s77, %s78
      %p90 = scmp.eq.s32.totalorder %s26, 1
      %p91 = por %p89, %p90
      %p93 = scmp.ne.s32.totalorder %s78, %s92
      %p94 = scmp.eq.s32.totalorder %s26, 0
      %p95 = por %p93, %p94
      %s97 = sadd.s32 %s96, 1
      %p100 = scmp.eq.s32.totalorder %s20, 1
      %p101 = scmp.ne.s32.totalorder %s96, %s98
      %p102 = scmp.eq.s32.totalorder %s20, 0
      %p103 = por %p101, %p102
      %p104 = scmp.ne.s32.totalorder %s96, %s98
      %p105 = scmp.eq.s32.totalorder %s25, 1
      %p106 = por %p104, %p105
      %p107 = scmp.ne.s32.totalorder %s98, %s99
      %p108 = scmp.eq.s32.totalorder %s25, 0
      %p109 = por %p107, %p108
      %p110 = scmp.ne.s32.totalorder %s98, %s99
      %p111 = scmp.eq.s32.totalorder %s26, 1
      %p112 = por %p110, %p111
      %p114 = scmp.ne.s32.totalorder %s99, %s113
      %p115 = scmp.eq.s32.totalorder %s26, 0
      %p116 = por %p114, %p115
      %s118 = sadd.s32 %s117, 1
      %p121 = scmp.eq.s32.totalorder %s20, 1
      %p122 = scmp.ne.s32.totalorder %s117, %s119
      %p123 = scmp.eq.s32.totalorder %s20, 0
      %p124 = por %p122, %p123
      %p125 = scmp.ne.s32.totalorder %s117, %s119
      %p126 = scmp.eq.s32.totalorder %s25, 1
      %p127 = por %p125, %p126
      %p128 = scmp.ne.s32.totalorder %s119, %s120
      %p129 = scmp.eq.s32.totalorder %s25, 0
      %p130 = por %p128, %p129
      %p131 = scmp.ne.s32.totalorder %s119, %s120
      %p132 = scmp.eq.s32.totalorder %s26, 1
      %p133 = por %p131, %p132
      %p135 = scmp.ne.s32.totalorder %s120, %s134
      %p136 = scmp.eq.s32.totalorder %s26, 0
      %p137 = por %p135, %p136
      %s139 = sadd.s32 %s138, 1
      %p142 = scmp.eq.s32.totalorder %s20, 1
      %p143 = scmp.ne.s32.totalorder %s138, %s140
      %p144 = scmp.eq.s32.totalorder %s20, 0
      %p145 = por %p143, %p144
      %p146 = scmp.ne.s32.totalorder %s138, %s140
      %p147 = scmp.eq.s32.totalorder %s25, 1
      %p148 = por %p146, %p147
      %p149 = scmp.ne.s32.totalorder %s140, %s141
      %p150 = scmp.eq.s32.totalorder %s25, 0
      %p151 = por %p149, %p150
      %p152 = scmp.ne.s32.totalorder %s140, %s141
      %p153 = scmp.eq.s32.totalorder %s26, 1
      %p154 = por %p152, %p153
      %p156 = scmp.ne.s32.totalorder %s141, %s155
      %p157 = scmp.eq.s32.totalorder %s26, 0
      %p158 = por %p156, %p157
      %s160 = sadd.s32 %s159, 1
      %p163 = scmp.eq.s32.totalorder %s20, 1
      %p164 = scmp.ne.s32.totalorder %s159, %s161
      %p165 = scmp.eq.s32.totalorder %s20, 0
      %p166 = por %p164, %p165
      %p167 = scmp.ne.s32.totalorder %s159, %s161
      %p168 = scmp.eq.s32.totalorder %s25, 1
      %p169 = por %p167, %p168
      %p170 = scmp.ne.s32.totalorder %s161, %s162
      %p171 = scmp.eq.s32.totalorder %s25, 0
      %p172 = por %p170, %p171
      %p173 = scmp.ne.s32.totalorder %s161, %s162
      %p174 = scmp.eq.s32.totalorder %s26, 1
      %p175 = por %p173, %p174
      %p177 = scmp.ne.s32.totalorder %s162, %s176
      %p178 = scmp.eq.s32.totalorder %s26, 0
      %p179 = por %p177, %p178
      %s181 = sadd.s32 %s180, 1
      %p184 = scmp.eq.s32.totalorder %s20, 1
      %p185 = scmp.ne.s32.totalorder %s180, %s182
      %p186 = scmp.eq.s32.totalorder %s20, 0
      %p187 = por %p185, %p186
      %p188 = scmp.ne.s32.totalorder %s180, %s182
      %p189 = scmp.eq.s32.totalorder %s25, 1
      %p190 = por %p188, %p189
      %p191 = scmp.ne.s32.totalorder %s182, %s183
      %p192 = scmp.eq.s32.totalorder %s25, 0
      %p193 = por %p191, %p192
      %p194 = scmp.ne.s32.totalorder %s182, %s183
      %p195 = scmp.eq.s32.totalorder %s26, 1
      %p196 = por %p194, %p195
      %p198 = scmp.ne.s32.totalorder %s183, %s197
      %p199 = scmp.eq.s32.totalorder %s26, 0
      %p200 = por %p198, %p199
      %s202 = sadd.s32 %s201, 1
      %p205 = scmp.eq.s32.totalorder %s20, 1
      %p206 = scmp.ne.s32.totalorder %s201, %s203
      %p207 = scmp.eq.s32.totalorder %s20, 0
      %p208 = por %p206, %p207
      %p209 = scmp.ne.s32.totalorder %s201, %s203
      %p210 = scmp.eq.s32.totalorder %s25, 1
      %p211 = por %p209, %p210
      %p212 = scmp.ne.s32.totalorder %s203, %s204
      %p213 = scmp.eq.s32.totalorder %s25, 0
      %p214 = por %p212, %p213
      %p215 = scmp.ne.s32.totalorder %s203, %s204
      %p216 = scmp.eq.s32.totalorder %s26, 1
      %p217 = por %p215, %p216
      %p219 = scmp.ne.s32.totalorder %s204, %s218
      %p220 = scmp.eq.s32.totalorder %s26, 0
      %p221 = por %p219, %p220
      %s223 = sadd.s32 %s222, 1
      %p226 = scmp.eq.s32.totalorder %s20, 1
      %p227 = scmp.ne.s32.totalorder %s222, %s224
      %p228 = scmp.eq.s32.totalorder %s20, 0
      %p229 = por %p227, %p228
      %p230 = scmp.ne.s32.totalorder %s222, %s224
      %p231 = scmp.eq.s32.totalorder %s25, 1
      %p232 = por %p230, %p231
      %p233 = scmp.ne.s32.totalorder %s224, %s225
      %p234 = scmp.eq.s32.totalorder %s25, 0
      %p235 = por %p233, %p234
      %p236 = scmp.ne.s32.totalorder %s224, %s225
      %p237 = scmp.eq.s32.totalorder %s26, 1
      %p238 = por %p236, %p237
      %p240 = scmp.ne.s32.totalorder %s225, %s239
      %p241 = scmp.eq.s32.totalorder %s26, 0
      %p242 = por %p240, %p241
      %s244 = sadd.s32 %s243, 1
      %p247 = scmp.eq.s32.totalorder %s20, 1
      %p248 = scmp.ne.s32.totalorder %s243, %s245
      %p249 = scmp.eq.s32.totalorder %s20, 0
      %p250 = por %p248, %p249
      %p251 = scmp.ne.s32.totalorder %s243, %s245
      %p252 = scmp.eq.s32.totalorder %s25, 1
      %p253 = por %p251, %p252
      %p254 = scmp.ne.s32.totalorder %s245, %s246
      %p255 = scmp.eq.s32.totalorder %s25, 0
      %p256 = por %p254, %p255
      %p257 = scmp.ne.s32.totalorder %s245, %s246
      %p258 = scmp.eq.s32.totalorder %s26, 1
      %p259 = por %p257, %p258
      %p261 = scmp.ne.s32.totalorder %s246, %s260
      %p262 = scmp.eq.s32.totalorder %s26, 0
      %p263 = por %p261, %p262
      %s264 = ssub.s32 %s20, %s27
      %p265 = scmp.eq.s32.totalorder %s264, 0
      %s267 = sadd.s32 %s266, 1
      %s268 = scalar_select %p265, %s266, %s267
      %p271 = pneg %p265
      %p272 = scmp.eq.s32.totalorder %s20, 1
      %p273 = por %p271, %p272
      %p274 = scmp.ne.s32.totalorder %s266, %s269
      %p275 = scmp.eq.s32.totalorder %s20, 0
      %p276 = por %p274, %p275
      %p277 = scmp.ne.s32.totalorder %s266, %s269
      %p278 = scmp.eq.s32.totalorder %s25, 1
      %p279 = por %p277, %p278
      %p280 = scmp.ne.s32.totalorder %s269, %s270
      %p281 = scmp.eq.s32.totalorder %s25, 0
      %p282 = por %p280, %p281
      %p283 = scmp.ne.s32.totalorder %s269, %s270
      %p284 = scmp.eq.s32.totalorder %s26, 1
      %p285 = por %p283, %p284
      %p287 = scmp.ne.s32.totalorder %s270, %s286
      %p288 = scmp.eq.s32.totalorder %s26, 0
      %p289 = por %p287, %p288
      %p290 = scmp.le.s32.totalorder 1, %s20
      %p291 = scmp.lt.s32.totalorder %s20, 3
      %p292 = pnand %p290, %p291
      %p293 = pneg %p292
      // Predicated region
      $region9: #{hgstem_forward.1} parent=5 // pred_check
        _
      $region10: #{hgstem_forward.1} parent=5 // pred_check_branch
        %295 = sbr.rel (%p292) target = $region12
      $region11: #{hgstem_forward.1} parent=5 // pred_region
        %s296 = ssub.s32 %s20, 1
        // Predicated region
        $region13: #{hgstem_forward.1} parent=11 // pred_check
          %p297 = pneg %p67
        $region14: #{hgstem_forward.1} parent=11 // pred_check_branch
          %299 = sbr.rel (%p297) target = $region16
        $region15: #{hgstem_forward.1} parent=11 // pred_region
          _
        $region16: #{hgstem_forward.1} parent=11 // pred_fallthru
          _
        // Predicated region
        $region17: #{hgstem_forward.1} parent=11 // pred_check
          %p300 = pneg %p88
        $region18: #{hgstem_forward.1} parent=11 // pred_check_branch
          %302 = sbr.rel (%p300) target = $region20
        $region19: #{hgstem_forward.1} parent=11 // pred_region
          _
        $region20: #{hgstem_forward.1} parent=11 // pred_fallthru
          _
        // Predicated region
        $region21: #{hgstem_forward.1} parent=11 // pred_check
          %p303 = pneg %p109
        $region22: #{hgstem_forward.1} parent=11 // pred_check_branch
          %305 = sbr.rel (%p303) target = $region24
        $region23: #{hgstem_forward.1} parent=11 // pred_region
          _
        $region24: #{hgstem_forward.1} parent=11 // pred_fallthru
          _
        // Predicated region
        $region25: #{hgstem_forward.1} parent=11 // pred_check
          %p306 = pneg %p130
        $region26: #{hgstem_forward.1} parent=11 // pred_check_branch
          %308 = sbr.rel (%p306) target = $region28
        $region27: #{hgstem_forward.1} parent=11 // pred_region
          _
        $region28: #{hgstem_forward.1} parent=11 // pred_fallthru
          _
        // Predicated region
        $region29: #{hgstem_forward.1} parent=11 // pred_check
          %p309 = pneg %p151
        $region30: #{hgstem_forward.1} parent=11 // pred_check_branch
          %311 = sbr.rel (%p309) target = $region32
        $region31: #{hgstem_forward.1} parent=11 // pred_region
          _
        $region32: #{hgstem_forward.1} parent=11 // pred_fallthru
          _
        // Predicated region
        $region33: #{hgstem_forward.1} parent=11 // pred_check
          %p312 = pneg %p172
        $region34: #{hgstem_forward.1} parent=11 // pred_check_branch
          %314 = sbr.rel (%p312) target = $region36
        $region35: #{hgstem_forward.1} parent=11 // pred_region
          _
        $region36: #{hgstem_forward.1} parent=11 // pred_fallthru
          _
        // Predicated region
        $region37: #{hgstem_forward.1} parent=11 // pred_check
          %p315 = pneg %p193
        $region38: #{hgstem_forward.1} parent=11 // pred_check_branch
          %317 = sbr.rel (%p315) target = $region40
        $region39: #{hgstem_forward.1} parent=11 // pred_region
          _
        $region40: #{hgstem_forward.1} parent=11 // pred_fallthru
          _
        // Predicated region
        $region41: #{hgstem_forward.1} parent=11 // pred_check
          %p318 = pneg %p214
        $region42: #{hgstem_forward.1} parent=11 // pred_check_branch
          %320 = sbr.rel (%p318) target = $region44
        $region43: #{hgstem_forward.1} parent=11 // pred_region
          _
        $region44: #{hgstem_forward.1} parent=11 // pred_fallthru
          _
        // Predicated region
        $region45: #{hgstem_forward.1} parent=11 // pred_check
          %p321 = pneg %p235
        $region46: #{hgstem_forward.1} parent=11 // pred_check_branch
          %323 = sbr.rel (%p321) target = $region48
        $region47: #{hgstem_forward.1} parent=11 // pred_region
          _
        $region48: #{hgstem_forward.1} parent=11 // pred_fallthru
          _
        // Predicated region
        $region49: #{hgstem_forward.1} parent=11 // pred_check
          %p324 = pneg %p256
        $region50: #{hgstem_forward.1} parent=11 // pred_check_branch
          %326 = sbr.rel (%p324) target = $region52
        $region51: #{hgstem_forward.1} parent=11 // pred_region
          _
        $region52: #{hgstem_forward.1} parent=11 // pred_fallthru
          _
      $region12: #{hgstem_forward.1} parent=5 // pred_fallthru
        _
      %p327 = scmp.lt.s32.totalorder %s20, 2
      // Predicated region
      $region53: #{hgstem_forward.1} parent=5 // pred_check
        %p328 = pneg %p327
      $region54: #{hgstem_forward.1} parent=5 // pred_check_branch
        %330 = sbr.rel (%p328) target = $region56
      $region55: #{hgstem_forward.1} parent=5 // pred_region
        // Predicated region
        $region57: #{hgstem_forward.1} parent=55 // pred_check
          %p331 = pneg %p40
        $region58: #{hgstem_forward.1} parent=55 // pred_check_branch
          %333 = sbr.rel (%p331) target = $region60
        $region59: #{hgstem_forward.1} parent=55 // pred_region
          %p334 = scmp.lt.s32.totalorder %s20, 1
          %s335 = scalar_select %p334, %s20, 1
          %s336 = smul.addr %s335, 34
          %s337 = smul.addr %s336, 8
          %s338 = scalar_lea.vmem %s0, %s337
        $region60: #{hgstem_forward.1} parent=55 // pred_fallthru
          _
      $region56: #{hgstem_forward.1} parent=5 // pred_fallthru
        _
      %p339 = scmp.le.s32.totalorder 1, %s20
      %p340 = scmp.lt.s32.totalorder %s20, 3
      %p341 = pnand %p339, %p340
      %p342 = pneg %p341
      // Predicated region
      $region61: #{hgstem_forward.1} parent=5 // pred_check
        _
      $region62: #{hgstem_forward.1} parent=5 // pred_check_branch
        %344 = sbr.rel (%p341) target = $region64
      $region63: #{hgstem_forward.1} parent=5 // pred_region
        %s345 = ssub.s32 %s20, 1
        %p346 = scmp.lt.s32.totalorder %s25, 1
        %s347 = scalar_select %p346, %s25, 1
        %s348 = smul.addr %s347, 34
        %s349 = smul.addr %s348, 8
        %s350 = scalar_lea.vmem %s0, %s349
        %p351 = pneg %p46
        %p352 = pneg %p43
        %p353 = pneg %p67
        %p354 = pneg %p64
        %p355 = pneg %p88
        %p356 = pneg %p85
        %p357 = pneg %p109
        %p358 = pneg %p106
        %p359 = pneg %p130
        %p360 = pneg %p127
        %p361 = pneg %p151
        %p362 = pneg %p148
        %p363 = pneg %p172
        %p364 = pneg %p169
        %p365 = pneg %p193
        %p366 = pneg %p190
        %p367 = pneg %p214
        %p368 = pneg %p211
        %p369 = pneg %p235
        %p370 = pneg %p232
        %p371 = pneg %p256
        %p372 = pneg %p253
        %p373 = pneg %p282
        %p374 = pneg %p279
        %s375 = sand.u32 %s269, 1
        %s376 = scalar_lea.sflag [#allocation3], %s375
        %s377 = sand.u32 %s269, 1
        %s378 = smul.addr %s377, 64
        %s379 = scalar_lea.vmem [#allocation2], %s378
        %p380 = scmp.lt.s32.totalorder %s25, 1
        %s381 = scalar_select %p380, %s25, 1
        %s382 = smul.addr %s381, 34
        %s383 = smul.addr %s382, 8
        %s384 = scalar_lea.vmem %s0, %s383
        %v385 = vld [vmem:[%s384] sm:$0xff]
        %v386 = vld [vmem:[%s384 + $0x8] sm:$0x1]
        %v387 = vld [vmem:[%s384 + $0x10] sm:$0xff]
        %v388 = vld [vmem:[%s384 + $0x18] sm:$0x1]
        %v389 = vld [vmem:[%s384 + $0x20] sm:$0xff]
        %v390 = vld [vmem:[%s384 + $0x28] sm:$0x1]
        %v391 = vld [vmem:[%s384 + $0x30] sm:$0xff]
        %v392 = vld [vmem:[%s384 + $0x38] sm:$0x1]
        %v393 = vld [vmem:[%s384 + $0x40] sm:$0xff]
        %v394 = vld [vmem:[%s384 + $0x48] sm:$0x1]
        %v395 = vld [vmem:[%s384 + $0x50] sm:$0xff]
        %v396 = vld [vmem:[%s384 + $0x58] sm:$0x1]
        %v397 = vld [vmem:[%s384 + $0x60] sm:$0xff]
        %v398 = vld [vmem:[%s384 + $0x68] sm:$0x1]
        %v399 = vld [vmem:[%s384 + $0x70] sm:$0xff]
        %v400 = vld [vmem:[%s384 + $0x78] sm:$0x1]
        %v401 = vld [vmem:[%s384 + $0x80] sm:$0xff]
        %v402 = vld [vmem:[%s384 + $0x88] sm:$0x1]
        %v403 = vld [vmem:[%s384 + $0x90] sm:$0xff]
        %v404 = vld [vmem:[%s384 + $0x98] sm:$0x1]
        %v405 = vld [vmem:[%s384 + $0xa0] sm:$0xff]
        %v406 = vld [vmem:[%s384 + $0xa8] sm:$0x1]
        %v407 = vld [vmem:[%s384 + $0xb0] sm:$0xff]
        %v408 = vld [vmem:[%s384 + $0xb8] sm:$0x1]
        %v409 = vld [vmem:[%s384 + $0xc0] sm:$0xff]
        %v410 = vld [vmem:[%s384 + $0xc8] sm:$0x1]
        %v411 = vld [vmem:[%s384 + $0xd0] sm:$0xff]
        %v412 = vld [vmem:[%s384 + $0xd8] sm:$0x1]
        %v413 = vld [vmem:[%s384 + $0xe0] sm:$0xff]
        %v414 = vld [vmem:[%s384 + $0xe8] sm:$0x1]
        %v415 = vld [vmem:[%s384 + $0xf0] sm:$0xff]
        %v416 = vld [vmem:[%s384 + $0xf8] sm:$0x1]
        %v417 = vld [vmem:[%s384 + $0x100] sm:$0xff]
        %v418 = vld [vmem:[%s384 + $0x108] sm:$0x1]
        %v419 = vld [vmem:[%s1] sm:$0xff]
        %v420 = vld [vmem:[%s1 + $0x8] sm:$0xff]
        %v421 = vld [vmem:[%s1 + $0x10] sm:$0xff]
        %v422 = vld [vmem:[%s1 + $0x30] sm:$0xff]
        %v423 = vld [vmem:[%s1 + $0x38] sm:$0xff]
        %v424 = vld [vmem:[%s1 + $0x40] sm:$0xff]
        %v425 = vld [vmem:[%s1 + $0x60] sm:$0xff]
        %v426 = vld [vmem:[%s1 + $0x68] sm:$0xff]
        %v427 = vld [vmem:[%s1 + $0x70] sm:$0xff]
        %v428 = vld [vmem:[%s1 + $0x78] sm:$0xff]
        %v429 = vld [vmem:[%s1 + $0x80] sm:$0xff]
        %v430 = vld [vmem:[%s1 + $0x88] sm:$0xff]
        %v431 = vld [vmem:[%s1 + $0x90] sm:$0xff]
        %v432 = vld [vmem:[%s1 + $0x98] sm:$0xff]
        %v433 = vld [vmem:[%s1 + $0xa0] sm:$0xff]
        %v434 = vld [vmem:[%s1 + $0xa8] sm:$0xff]
        %v435 = vld [vmem:[%s1 + $0xb0] sm:$0xff]
        %v436 = vld [vmem:[%s1 + $0xb8] sm:$0xff]
        %v437 = vld [vmem:[%s2] sm:$0x1]
        %v438 = vld [vmem:[%s3] sm:$0xff]
        %v439 = vld [vmem:[%s3 + $0x8] sm:$0xff]
        %v440 = vld [vmem:[%s3 + $0x10] sm:$0xff]
        %v441 = vld [vmem:[%s3 + $0x18] sm:$0xff]
        %v442 = vld [vmem:[%s3 + $0x20] sm:$0xff]
        %v443 = vld [vmem:[%s3 + $0x28] sm:$0xff]
        %v444 = vld [vmem:[%s3 + $0x30] sm:$0xff]
        %v445 = vld [vmem:[%s3 + $0x38] sm:$0xff]
        %v446 = vld [vmem:[%s4] sm:$0x1]
        %v447 = vld [vmem:[%s5] sm:$0xff]
        %v448 = vld [vmem:[%s5 + $0x8] sm:$0xff]
        %v449 = vld [vmem:[%s5 + $0x10] sm:$0xff]
        %v450 = vld [vmem:[%s5 + $0x18] sm:$0xff]
        %v451 = vld [vmem:[%s6] sm:$0x1]
        %v452 = vld [vmem:[%s7] sm:$0xff]
        %v453 = vld [vmem:[%s7 + $0x8] sm:$0xff]
        %v454 = vld [vmem:[%s7 + $0x10] sm:$0xff]
        %v455 = vld [vmem:[%s7 + $0x18] sm:$0xff]
        %v456 = vld [vmem:[%s7 + $0x20] sm:$0xff]
        %v457 = vld [vmem:[%s7 + $0x28] sm:$0xff]
        %v458 = vld [vmem:[%s7 + $0x30] sm:$0xff]
        %v459 = vld [vmem:[%s7 + $0x38] sm:$0xff]
        %v460 = vld [vmem:[%s7 + $0x40] sm:$0xff]
        %v461 = vld [vmem:[%s7 + $0x48] sm:$0xff]
        %v462 = vld [vmem:[%s7 + $0x50] sm:$0xff]
        %v463 = vld [vmem:[%s7 + $0x58] sm:$0xff]
        %v464 = vld [vmem:[%s7 + $0x60] sm:$0xff]
        %v465 = vld [vmem:[%s7 + $0x68] sm:$0xff]
        %v466 = vld [vmem:[%s7 + $0x70] sm:$0xff]
        %v467 = vld [vmem:[%s7 + $0x78] sm:$0xff]
        %v468 = vld [vmem:[%s7 + $0x80] sm:$0xff]
        %v469 = vld [vmem:[%s7 + $0x88] sm:$0xff]
        %v470 = vld [vmem:[%s7 + $0x90] sm:$0xff]
        %v471 = vld [vmem:[%s7 + $0x98] sm:$0xff]
        %v472 = vld [vmem:[%s7 + $0xa0] sm:$0xff]
        %v473 = vld [vmem:[%s7 + $0xa8] sm:$0xff]
        %v474 = vld [vmem:[%s7 + $0xb0] sm:$0xff]
        %v475 = vld [vmem:[%s7 + $0xb8] sm:$0xff]
        %v476 = vld [vmem:[%s7 + $0xc0] sm:$0xff]
        %v477 = vld [vmem:[%s7 + $0xc8] sm:$0xff]
        %v478 = vld [vmem:[%s7 + $0xd0] sm:$0xff]
        %v479 = vld [vmem:[%s7 + $0xd8] sm:$0xff]
        %v480 = vld [vmem:[%s7 + $0xe0] sm:$0xff]
        %v481 = vld [vmem:[%s7 + $0xe8] sm:$0xff]
        %v482 = vld [vmem:[%s7 + $0xf0] sm:$0xff]
        %v483 = vld [vmem:[%s7 + $0xf8] sm:$0xff]
        %v484 = vld [vmem:[%s7 + $0x100] sm:$0xff]
        %v485 = vld [vmem:[%s7 + $0x108] sm:$0xff]
        %v486 = vld [vmem:[%s7 + $0x110] sm:$0xff]
        %v487 = vld [vmem:[%s7 + $0x118] sm:$0xff]
        %v488 = vld [vmem:[%s8] sm:$0x1]
        %v489 = vld [vmem:[%s9] sm:$0xff]
        %v490 = vld [vmem:[%s9 + $0x8] sm:$0xff]
        %v491 = vld [vmem:[%s10] sm:$0x1]
        %vm524 = vcmask 1046528
        %v525 = vrot.slane %v385, 1
        %v526 = vrot.slane %v386, 1
        %v527 = vsel %vm524, %v525, %v526
        %v528 = vrot.slane %v387, 1
        %v529 = vrot.slane %v388, 1
        %v530 = vsel %vm524, %v528, %v529
        %v531 = vrot.slane %v389, 1
        %v532 = vrot.slane %v390, 1
        %v533 = vsel %vm524, %v531, %v532
        %v534 = vrot.slane %v391, 1
        %v535 = vrot.slane %v392, 1
        %v536 = vsel %vm524, %v534, %v535
        %v537 = vrot.slane %v393, 1
        %v538 = vrot.slane %v394, 1
        %v539 = vsel %vm524, %v537, %v538
        %v540 = vrot.slane %v395, 1
        %v541 = vrot.slane %v396, 1
        %v542 = vsel %vm524, %v540, %v541
        %v543 = vrot.slane %v397, 1
        %v544 = vrot.slane %v398, 1
        %v545 = vsel %vm524, %v543, %v544
        %v546 = vrot.slane %v399, 1
        %v547 = vrot.slane %v400, 1
        %v548 = vsel %vm524, %v546, %v547
        %v549 = vrot.slane %v401, 1
        %v550 = vrot.slane %v402, 1
        %v551 = vsel %vm524, %v549, %v550
        %v552 = vrot.slane %v403, 1
        %v553 = vrot.slane %v404, 1
        %v554 = vsel %vm524, %v552, %v553
        %v555 = vrot.slane %v405, 1
        %v556 = vrot.slane %v406, 1
        %v557 = vsel %vm524, %v555, %v556
        %v558 = vrot.slane %v407, 1
        %v559 = vrot.slane %v408, 1
        %v560 = vsel %vm524, %v558, %v559
        %v561 = vrot.slane %v409, 1
        %v562 = vrot.slane %v410, 1
        %v563 = vsel %vm524, %v561, %v562
        %v564 = vrot.slane %v411, 1
        %v565 = vrot.slane %v412, 1
        %v566 = vsel %vm524, %v564, %v565
        %v567 = vrot.slane %v413, 1
        %v568 = vrot.slane %v414, 1
        %v569 = vsel %vm524, %v567, %v568
        %v570 = vrot.slane %v415, 1
        %v571 = vrot.slane %v416, 1
        %v572 = vsel %vm524, %v570, %v571
        %v575 = vrot.slane %v417, 1
        %v576 = vrot.slane %v418, 1
        %v577 = vsel %vm524, %v575, %v576
        %vm578 = vcmask 195584
        %v579 = vsel %vm578, %v387, 0
        %v581 = vsel %vm578, %v389, 0
        %v583 = vsel %vm578, %v391, 0
        %v585 = vsel %vm578, %v393, 0
        %v587 = vsel %vm578, %v395, 0
        %v589 = vsel %vm578, %v397, 0
        %v591 = vsel %vm578, %v399, 0
        %v593 = vsel %vm578, %v401, 0
        %v595 = vsel %vm578, %v403, 0
        %v597 = vsel %vm578, %v405, 0
        %v599 = vsel %vm578, %v407, 0
        %v601 = vsel %vm578, %v409, 0
        %v603 = vsel %vm578, %v411, 0
        %v605 = vsel %vm578, %v413, 0
        %v607 = vsel %vm578, %v415, 0
        %v609 = vsel %vm578, %v417, 0
        %611 = vmatpush.msra.mxu0 0.0
        %612 = vmatpush.msra.mxu0 0.0
        %613 = vmatpush.msra.mxu0 0.0
        %614 = vmatpush.msra.mxu0 0.0
        %615 = vmatpush.msra.mxu0 0.0
        %616 = vmatpush.msra.mxu0 0.0
        %617 = vmatpush.msra.mxu0 0.0
        %618 = vmatpush.msra.mxu0 0.0
        %619 = vmatpush.msra.mxu0 0.0
        %620 = vmatpush.msra.mxu0 0.0
        %621 = vmatpush.msra.mxu0 0.0
        %622 = vmatpush.msra.mxu0 0.0
        %623 = vmatpush.msra.mxu0 0.0
        %624 = vmatpush.msra.mxu0 %v424
        %625 = vmatpush.msra.mxu0 %v423
        %626 = vmatpush.msra.mxu0 %v422
        %627 = vmatmul.f32.gmra.mxu0 %v579
        %v628 = vpop.f32.mrf.mxu0
        %v629 = vadd.f32 0.0, %v628
        %630 = vmatmul.f32.gmra.mxu0 %v581
        %v631 = vpop.f32.mrf.mxu0
        %v632 = vadd.f32 0.0, %v631
        %633 = vmatmul.f32.gmra.mxu0 %v583
        %v634 = vpop.f32.mrf.mxu0
        %v635 = vadd.f32 0.0, %v634
        %636 = vmatmul.f32.gmra.mxu0 %v585
        %v637 = vpop.f32.mrf.mxu0
        %v638 = vadd.f32 0.0, %v637
        %639 = vmatmul.f32.gmra.mxu0 %v587
        %v640 = vpop.f32.mrf.mxu0
        %v641 = vadd.f32 0.0, %v640
        %642 = vmatmul.f32.gmra.mxu0 %v589
        %v643 = vpop.f32.mrf.mxu0
        %v644 = vadd.f32 0.0, %v643
        %645 = vmatmul.f32.gmra.mxu0 %v591
        %v646 = vpop.f32.mrf.mxu0
        %v647 = vadd.f32 0.0, %v646
        %648 = vmatmul.f32.gmra.mxu0 %v593
        %v649 = vpop.f32.mrf.mxu0
        %v650 = vadd.f32 0.0, %v649
        %651 = vmatmul.f32.gmra.mxu0 %v595
        %v652 = vpop.f32.mrf.mxu0
        %v653 = vadd.f32 0.0, %v652
        %654 = vmatmul.f32.gmra.mxu0 %v597
        %v655 = vpop.f32.mrf.mxu0
        %v656 = vadd.f32 0.0, %v655
        %657 = vmatmul.f32.gmra.mxu0 %v599
        %v658 = vpop.f32.mrf.mxu0
        %v659 = vadd.f32 0.0, %v658
        %660 = vmatmul.f32.gmra.mxu0 %v601
        %v661 = vpop.f32.mrf.mxu0
        %v662 = vadd.f32 0.0, %v661
        %663 = vmatmul.f32.gmra.mxu0 %v603
        %v664 = vpop.f32.mrf.mxu0
        %v665 = vadd.f32 0.0, %v664
        %666 = vmatmul.f32.gmra.mxu0 %v605
        %v667 = vpop.f32.mrf.mxu0
        %v668 = vadd.f32 0.0, %v667
        %669 = vmatmul.f32.gmra.mxu0 %v607
        %v670 = vpop.f32.mrf.mxu0
        %v671 = vadd.f32 0.0, %v670
        %672 = vmatmul.f32.gmra.mxu0 %v609
        %v673 = vpop.f32.mrf.mxu0
        %v674 = vadd.f32 0.0, %v673
        %675 = vdwg.mxu0
        %v676 = vsel %vm578, %v385, 0
        %678 = vmatpush.msra.mxu0 0.0
        %679 = vmatpush.msra.mxu0 0.0
        %680 = vmatpush.msra.mxu0 0.0
        %681 = vmatpush.msra.mxu0 0.0
        %682 = vmatpush.msra.mxu0 0.0
        %683 = vmatpush.msra.mxu0 0.0
        %684 = vmatpush.msra.mxu0 0.0
        %685 = vmatpush.msra.mxu0 0.0
        %686 = vmatpush.msra.mxu0 0.0
        %687 = vmatpush.msra.mxu0 0.0
        %688 = vmatpush.msra.mxu0 0.0
        %689 = vmatpush.msra.mxu0 0.0
        %690 = vmatpush.msra.mxu0 0.0
        %691 = vmatpush.msra.mxu0 %v421
        %692 = vmatpush.msra.mxu0 %v420
        %693 = vmatpush.msra.mxu0 %v419
        %694 = vmatmul.f32.gmra.mxu0 %v676
        %v695 = vpop.f32.mrf.mxu0
        %v696 = vadd.f32 %v629, %v695
        %697 = vmatmul.f32.gmra.mxu0 %v579
        %v698 = vpop.f32.mrf.mxu0
        %v699 = vadd.f32 %v632, %v698
        %700 = vmatmul.f32.gmra.mxu0 %v581
        %v701 = vpop.f32.mrf.mxu0
        %v702 = vadd.f32 %v635, %v701
        %703 = vmatmul.f32.gmra.mxu0 %v583
        %v704 = vpop.f32.mrf.mxu0
        %v705 = vadd.f32 %v638, %v704
        %706 = vmatmul.f32.gmra.mxu0 %v585
        %v707 = vpop.f32.mrf.mxu0
        %v708 = vadd.f32 %v641, %v707
        %709 = vmatmul.f32.gmra.mxu0 %v587
        %v710 = vpop.f32.mrf.mxu0
        %v711 = vadd.f32 %v644, %v710
        %712 = vmatmul.f32.gmra.mxu0 %v589
        %v713 = vpop.f32.mrf.mxu0
        %v714 = vadd.f32 %v647, %v713
        %715 = vmatmul.f32.gmra.mxu0 %v591
        %v716 = vpop.f32.mrf.mxu0
        %v717 = vadd.f32 %v650, %v716
        %718 = vmatmul.f32.gmra.mxu0 %v593
        %v719 = vpop.f32.mrf.mxu0
        %v720 = vadd.f32 %v653, %v719
        %721 = vmatmul.f32.gmra.mxu0 %v595
        %v722 = vpop.f32.mrf.mxu0
        %v723 = vadd.f32 %v656, %v722
        %724 = vmatmul.f32.gmra.mxu0 %v597
        %v725 = vpop.f32.mrf.mxu0
        %v726 = vadd.f32 %v659, %v725
        %727 = vmatmul.f32.gmra.mxu0 %v599
        %v728 = vpop.f32.mrf.mxu0
        %v729 = vadd.f32 %v662, %v728
        %730 = vmatmul.f32.gmra.mxu0 %v601
        %v731 = vpop.f32.mrf.mxu0
        %v732 = vadd.f32 %v665, %v731
        %733 = vmatmul.f32.gmra.mxu0 %v603
        %v734 = vpop.f32.mrf.mxu0
        %v735 = vadd.f32 %v668, %v734
        %736 = vmatmul.f32.gmra.mxu0 %v605
        %v737 = vpop.f32.mrf.mxu0
        %v738 = vadd.f32 %v671, %v737
        %739 = vmatmul.f32.gmra.mxu0 %v607
        %v740 = vpop.f32.mrf.mxu0
        %v741 = vadd.f32 %v674, %v740
        %742 = vdwg.mxu0
        %v744 = vperm.slane %v437, 0
        %v746 = vadd.f32 %v696, %v744
        %v747 = vadd.f32 %v699, %v744
        %v748 = vadd.f32 %v702, %v744
        %v749 = vadd.f32 %v705, %v744
        %v750 = vadd.f32 %v708, %v744
        %v751 = vadd.f32 %v711, %v744
        %v752 = vadd.f32 %v714, %v744
        %v753 = vadd.f32 %v717, %v744
        %v754 = vadd.f32 %v720, %v744
        %v755 = vadd.f32 %v723, %v744
        %v756 = vadd.f32 %v726, %v744
        %v757 = vadd.f32 %v729, %v744
        %v758 = vadd.f32 %v732, %v744
        %v759 = vadd.f32 %v735, %v744
        %v760 = vadd.f32 %v738, %v744
        %v761 = vadd.f32 %v741, %v744
        %v762 = vmax.f32 %v746, 0.0
        %v763 = vmax.f32 %v747, 0.0
        %v764 = vmax.f32 %v748, 0.0
        %v765 = vmax.f32 %v749, 0.0
        %v766 = vmax.f32 %v750, 0.0
        %v767 = vmax.f32 %v751, 0.0
        %v768 = vmax.f32 %v752, 0.0
        %v769 = vmax.f32 %v753, 0.0
        %v770 = vmax.f32 %v754, 0.0
        %v771 = vmax.f32 %v755, 0.0
        %v772 = vmax.f32 %v756, 0.0
        %v773 = vmax.f32 %v757, 0.0
        %v774 = vmax.f32 %v758, 0.0
        %v775 = vmax.f32 %v759, 0.0
        %v776 = vmax.f32 %v760, 0.0
        %v777 = vmax.f32 %v761, 0.0
        %v778 = vsel %vm578, %v527, 0
        %v780 = vsel %vm578, %v530, 0
        %v782 = vsel %vm578, %v533, 0
        %v784 = vsel %vm578, %v536, 0
        %v786 = vsel %vm578, %v539, 0
        %v788 = vsel %vm578, %v542, 0
        %v790 = vsel %vm578, %v545, 0
        %v792 = vsel %vm578, %v548, 0
        %v794 = vsel %vm578, %v551, 0
        %v796 = vsel %vm578, %v554, 0
        %v798 = vsel %vm578, %v557, 0
        %v800 = vsel %vm578, %v560, 0
        %v802 = vsel %vm578, %v563, 0
        %v804 = vsel %vm578, %v566, 0
        %v806 = vsel %vm578, %v569, 0
        %v808 = vsel %vm578, %v572, 0
        %810 = vmatpush.msra.mxu0 0.0
        %811 = vmatpush.msra.mxu0 0.0
        %812 = vmatpush.msra.mxu0 0.0
        %813 = vmatpush.msra.mxu0 0.0
        %814 = vmatpush.msra.mxu0 0.0
        %815 = vmatpush.msra.mxu0 0.0
        %816 = vmatpush.msra.mxu0 0.0
        %817 = vmatpush.msra.mxu0 0.0
        %818 = vmatpush.msra.mxu0 0.0
        %819 = vmatpush.msra.mxu0 0.0
        %820 = vmatpush.msra.mxu0 0.0
        %821 = vmatpush.msra.mxu0 0.0
        %822 = vmatpush.msra.mxu0 0.0
        %823 = vmatpush.msra.mxu0 %v430
        %824 = vmatpush.msra.mxu0 %v429
        %825 = vmatpush.msra.mxu0 %v428
        %826 = vmatmul.f32.gmra.mxu0 %v778
        %v827 = vpop.f32.mrf.mxu0
        %v828 = vadd.f32 0.0, %v827
        %829 = vmatmul.f32.gmra.mxu0 %v780
        %v830 = vpop.f32.mrf.mxu0
        %v831 = vadd.f32 0.0, %v830
        %832 = vmatmul.f32.gmra.mxu0 %v782
        %v833 = vpop.f32.mrf.mxu0
        %v834 = vadd.f32 0.0, %v833
        %835 = vmatmul.f32.gmra.mxu0 %v784
        %v836 = vpop.f32.mrf.mxu0
        %v837 = vadd.f32 0.0, %v836
        %838 = vmatmul.f32.gmra.mxu0 %v786
        %v839 = vpop.f32.mrf.mxu0
        %v840 = vadd.f32 0.0, %v839
        %841 = vmatmul.f32.gmra.mxu0 %v788
        %v842 = vpop.f32.mrf.mxu0
        %v843 = vadd.f32 0.0, %v842
        %844 = vmatmul.f32.gmra.mxu0 %v790
        %v845 = vpop.f32.mrf.mxu0
        %v846 = vadd.f32 0.0, %v845
        %847 = vmatmul.f32.gmra.mxu0 %v792
        %v848 = vpop.f32.mrf.mxu0
        %v849 = vadd.f32 0.0, %v848
        %850 = vmatmul.f32.gmra.mxu0 %v794
        %v851 = vpop.f32.mrf.mxu0
        %v852 = vadd.f32 0.0, %v851
        %853 = vmatmul.f32.gmra.mxu0 %v796
        %v854 = vpop.f32.mrf.mxu0
        %v855 = vadd.f32 0.0, %v854
        %856 = vmatmul.f32.gmra.mxu0 %v798
        %v857 = vpop.f32.mrf.mxu0
        %v858 = vadd.f32 0.0, %v857
        %859 = vmatmul.f32.gmra.mxu0 %v800
        %v860 = vpop.f32.mrf.mxu0
        %v861 = vadd.f32 0.0, %v860
        %862 = vmatmul.f32.gmra.mxu0 %v802
        %v863 = vpop.f32.mrf.mxu0
        %v864 = vadd.f32 0.0, %v863
        %865 = vmatmul.f32.gmra.mxu0 %v804
        %v866 = vpop.f32.mrf.mxu0
        %v867 = vadd.f32 0.0, %v866
        %868 = vmatmul.f32.gmra.mxu0 %v806
        %v869 = vpop.f32.mrf.mxu0
        %v870 = vadd.f32 0.0, %v869
        %871 = vmatmul.f32.gmra.mxu0 %v808
        %v872 = vpop.f32.mrf.mxu0
        %v873 = vadd.f32 0.0, %v872
        %874 = vdwg.mxu0
        %875 = vmatpush.msra.mxu0 0.0
        %876 = vmatpush.msra.mxu0 0.0
        %877 = vmatpush.msra.mxu0 0.0
        %878 = vmatpush.msra.mxu0 0.0
        %879 = vmatpush.msra.mxu0 0.0
        %880 = vmatpush.msra.mxu0 0.0
        %881 = vmatpush.msra.mxu0 0.0
        %882 = vmatpush.msra.mxu0 0.0
        %883 = vmatpush.msra.mxu0 0.0
        %884 = vmatpush.msra.mxu0 0.0
        %885 = vmatpush.msra.mxu0 0.0
        %886 = vmatpush.msra.mxu0 0.0
        %887 = vmatpush.msra.mxu0 0.0
        %888 = vmatpush.msra.mxu0 %v427
        %889 = vmatpush.msra.mxu0 %v426
        %890 = vmatpush.msra.mxu0 %v425
        %891 = vmatmul.f32.gmra.mxu0 %v676
        %v892 = vpop.f32.mrf.mxu0
        %v893 = vadd.f32 %v828, %v892
        %894 = vmatmul.f32.gmra.mxu0 %v579
        %v895 = vpop.f32.mrf.mxu0
        %v896 = vadd.f32 %v831, %v895
        %897 = vmatmul.f32.gmra.mxu0 %v581
        %v898 = vpop.f32.mrf.mxu0
        %v899 = vadd.f32 %v834, %v898
        %900 = vmatmul.f32.gmra.mxu0 %v583
        %v901 = vpop.f32.mrf.mxu0
        %v902 = vadd.f32 %v837, %v901
        %903 = vmatmul.f32.gmra.mxu0 %v585
        %v904 = vpop.f32.mrf.mxu0
        %v905 = vadd.f32 %v840, %v904
        %906 = vmatmul.f32.gmra.mxu0 %v587
        %v907 = vpop.f32.mrf.mxu0
        %v908 = vadd.f32 %v843, %v907
        %909 = vmatmul.f32.gmra.mxu0 %v589
        %v910 = vpop.f32.mrf.mxu0
        %v911 = vadd.f32 %v846, %v910
        %912 = vmatmul.f32.gmra.mxu0 %v591
        %v913 = vpop.f32.mrf.mxu0
        %v914 = vadd.f32 %v849, %v913
        %915 = vmatmul.f32.gmra.mxu0 %v593
        %v916 = vpop.f32.mrf.mxu0
        %v917 = vadd.f32 %v852, %v916
        %918 = vmatmul.f32.gmra.mxu0 %v595
        %v919 = vpop.f32.mrf.mxu0
        %v920 = vadd.f32 %v855, %v919
        %921 = vmatmul.f32.gmra.mxu0 %v597
        %v922 = vpop.f32.mrf.mxu0
        %v923 = vadd.f32 %v858, %v922
        %924 = vmatmul.f32.gmra.mxu0 %v599
        %v925 = vpop.f32.mrf.mxu0
        %v926 = vadd.f32 %v861, %v925
        %927 = vmatmul.f32.gmra.mxu0 %v601
        %v928 = vpop.f32.mrf.mxu0
        %v929 = vadd.f32 %v864, %v928
        %930 = vmatmul.f32.gmra.mxu0 %v603
        %v931 = vpop.f32.mrf.mxu0
        %v932 = vadd.f32 %v867, %v931
        %933 = vmatmul.f32.gmra.mxu0 %v605
        %v934 = vpop.f32.mrf.mxu0
        %v935 = vadd.f32 %v870, %v934
        %936 = vmatmul.f32.gmra.mxu0 %v607
        %v937 = vpop.f32.mrf.mxu0
        %v938 = vadd.f32 %v873, %v937
        %939 = vdwg.mxu0
        %940 = vmatpush.msra.mxu0 0.0
        %941 = vmatpush.msra.mxu0 0.0
        %942 = vmatpush.msra.mxu0 0.0
        %943 = vmatpush.msra.mxu0 0.0
        %944 = vmatpush.msra.mxu0 0.0
        %945 = vmatpush.msra.mxu0 0.0
        %946 = vmatpush.msra.mxu0 0.0
        %947 = vmatpush.msra.mxu0 0.0
        %948 = vmatpush.msra.mxu0 0.0
        %949 = vmatpush.msra.mxu0 0.0
        %950 = vmatpush.msra.mxu0 0.0
        %951 = vmatpush.msra.mxu0 0.0
        %952 = vmatpush.msra.mxu0 0.0
        %953 = vmatpush.msra.mxu0 %v433
        %954 = vmatpush.msra.mxu0 %v432
        %955 = vmatpush.msra.mxu0 %v431
        %956 = vmatmul.f32.gmra.mxu0 %v579
        %v957 = vpop.f32.mrf.mxu0
        %v958 = vadd.f32 0.0, %v957
        %959 = vmatmul.f32.gmra.mxu0 %v581
        %v960 = vpop.f32.mrf.mxu0
        %v961 = vadd.f32 0.0, %v960
        %962 = vmatmul.f32.gmra.mxu0 %v583
        %v963 = vpop.f32.mrf.mxu0
        %v964 = vadd.f32 0.0, %v963
        %965 = vmatmul.f32.gmra.mxu0 %v585
        %v966 = vpop.f32.mrf.mxu0
        %v967 = vadd.f32 0.0, %v966
        %968 = vmatmul.f32.gmra.mxu0 %v587
        %v969 = vpop.f32.mrf.mxu0
        %v970 = vadd.f32 0.0, %v969
        %971 = vmatmul.f32.gmra.mxu0 %v589
        %v972 = vpop.f32.mrf.mxu0
        %v973 = vadd.f32 0.0, %v972
        %974 = vmatmul.f32.gmra.mxu0 %v591
        %v975 = vpop.f32.mrf.mxu0
        %v976 = vadd.f32 0.0, %v975
        %977 = vmatmul.f32.gmra.mxu0 %v593
        %v978 = vpop.f32.mrf.mxu0
        %v979 = vadd.f32 0.0, %v978
        %980 = vmatmul.f32.gmra.mxu0 %v595
        %v981 = vpop.f32.mrf.mxu0
        %v982 = vadd.f32 0.0, %v981
        %983 = vmatmul.f32.gmra.mxu0 %v597
        %v984 = vpop.f32.mrf.mxu0
        %v985 = vadd.f32 0.0, %v984
        %986 = vmatmul.f32.gmra.mxu0 %v599
        %v987 = vpop.f32.mrf.mxu0
        %v988 = vadd.f32 0.0, %v987
        %989 = vmatmul.f32.gmra.mxu0 %v601
        %v990 = vpop.f32.mrf.mxu0
        %v991 = vadd.f32 0.0, %v990
        %992 = vmatmul.f32.gmra.mxu0 %v603
        %v993 = vpop.f32.mrf.mxu0
        %v994 = vadd.f32 0.0, %v993
        %995 = vmatmul.f32.gmra.mxu0 %v605
        %v996 = vpop.f32.mrf.mxu0
        %v997 = vadd.f32 0.0, %v996
        %998 = vmatmul.f32.gmra.mxu0 %v607
        %v999 = vpop.f32.mrf.mxu0
        %v1000 = vadd.f32 0.0, %v999
        %1001 = vmatmul.f32.gmra.mxu0 %v609
        %v1002 = vpop.f32.mrf.mxu0
        %v1003 = vadd.f32 0.0, %v1002
        %1004 = vdwg.mxu0
        %v1005 = vadd.f32 %v893, %v958
        %v1006 = vadd.f32 %v896, %v961
        %v1007 = vadd.f32 %v899, %v964
        %v1008 = vadd.f32 %v902, %v967
        %v1009 = vadd.f32 %v905, %v970
        %v1010 = vadd.f32 %v908, %v973
        %v1011 = vadd.f32 %v911, %v976
        %v1012 = vadd.f32 %v914, %v979
        %v1013 = vadd.f32 %v917, %v982
        %v1014 = vadd.f32 %v920, %v985
        %v1015 = vadd.f32 %v923, %v988
        %v1016 = vadd.f32 %v926, %v991
        %v1017 = vadd.f32 %v929, %v994
        %v1018 = vadd.f32 %v932, %v997
        %v1019 = vadd.f32 %v935, %v1000
        %v1020 = vadd.f32 %v938, %v1003
        %v1021 = vsel %vm578, %v577, 0
        %1023 = vmatpush.msra.mxu0 0.0
        %1024 = vmatpush.msra.mxu0 0.0
        %1025 = vmatpush.msra.mxu0 0.0
        %1026 = vmatpush.msra.mxu0 0.0
        %1027 = vmatpush.msra.mxu0 0.0
        %1028 = vmatpush.msra.mxu0 0.0
        %1029 = vmatpush.msra.mxu0 0.0
        %1030 = vmatpush.msra.mxu0 0.0
        %1031 = vmatpush.msra.mxu0 0.0
        %1032 = vmatpush.msra.mxu0 0.0
        %1033 = vmatpush.msra.mxu0 0.0
        %1034 = vmatpush.msra.mxu0 0.0
        %1035 = vmatpush.msra.mxu0 0.0
        %1036 = vmatpush.msra.mxu0 %v436
        %1037 = vmatpush.msra.mxu0 %v435
        %1038 = vmatpush.msra.mxu0 %v434
        %1039 = vmatmul.f32.gmra.mxu0 %v780
        %v1040 = vpop.f32.mrf.mxu0
        %v1041 = vadd.f32 0.0, %v1040
        %1042 = vmatmul.f32.gmra.mxu0 %v782
        %v1043 = vpop.f32.mrf.mxu0
        %v1044 = vadd.f32 0.0, %v1043
        %1045 = vmatmul.f32.gmra.mxu0 %v784
        %v1046 = vpop.f32.mrf.mxu0
        %v1047 = vadd.f32 0.0, %v1046
        %1048 = vmatmul.f32.gmra.mxu0 %v786
        %v1049 = vpop.f32.mrf.mxu0
        %v1050 = vadd.f32 0.0, %v1049
        %1051 = vmatmul.f32.gmra.mxu0 %v788
        %v1052 = vpop.f32.mrf.mxu0
        %v1053 = vadd.f32 0.0, %v1052
        %1054 = vmatmul.f32.gmra.mxu0 %v790
        %v1055 = vpop.f32.mrf.mxu0
        %v1056 = vadd.f32 0.0, %v1055
        %1057 = vmatmul.f32.gmra.mxu0 %v792
        %v1058 = vpop.f32.mrf.mxu0
        %v1059 = vadd.f32 0.0, %v1058
        %1060 = vmatmul.f32.gmra.mxu0 %v794
        %v1061 = vpop.f32.mrf.mxu0
        %v1062 = vadd.f32 0.0, %v1061
        %1063 = vmatmul.f32.gmra.mxu0 %v796
        %v1064 = vpop.f32.mrf.mxu0
        %v1065 = vadd.f32 0.0, %v1064
        %1066 = vmatmul.f32.gmra.mxu0 %v798
        %v1067 = vpop.f32.mrf.mxu0
        %v1068 = vadd.f32 0.0, %v1067
        %1069 = vmatmul.f32.gmra.mxu0 %v800
        %v1070 = vpop.f32.mrf.mxu0
        %v1071 = vadd.f32 0.0, %v1070
        %1072 = vmatmul.f32.gmra.mxu0 %v802
        %v1073 = vpop.f32.mrf.mxu0
        %v1074 = vadd.f32 0.0, %v1073
        %1075 = vmatmul.f32.gmra.mxu0 %v804
        %v1076 = vpop.f32.mrf.mxu0
        %v1077 = vadd.f32 0.0, %v1076
        %1078 = vmatmul.f32.gmra.mxu0 %v806
        %v1079 = vpop.f32.mrf.mxu0
        %v1080 = vadd.f32 0.0, %v1079
        %1081 = vmatmul.f32.gmra.mxu0 %v808
        %v1082 = vpop.f32.mrf.mxu0
        %v1083 = vadd.f32 0.0, %v1082
        %1084 = vmatmul.f32.gmra.mxu0 %v1021
        %v1085 = vpop.f32.mrf.mxu0
        %v1086 = vadd.f32 0.0, %v1085
        %1087 = vdwg.mxu0
        %v1088 = vadd.f32 %v1005, %v1041
        %v1089 = vadd.f32 %v1006, %v1044
        %v1090 = vadd.f32 %v1007, %v1047
        %v1091 = vadd.f32 %v1008, %v1050
        %v1092 = vadd.f32 %v1009, %v1053
        %v1093 = vadd.f32 %v1010, %v1056
        %v1094 = vadd.f32 %v1011, %v1059
        %v1095 = vadd.f32 %v1012, %v1062
        %v1096 = vadd.f32 %v1013, %v1065
        %v1097 = vadd.f32 %v1014, %v1068
        %v1098 = vadd.f32 %v1015, %v1071
        %v1099 = vadd.f32 %v1016, %v1074
        %v1100 = vadd.f32 %v1017, %v1077
        %v1101 = vadd.f32 %v1018, %v1080
        %v1102 = vadd.f32 %v1019, %v1083
        %v1103 = vadd.f32 %v1020, %v1086
        %v1104 = vadd.f32 %v1088, %v744
        %v1105 = vadd.f32 %v1089, %v744
        %v1106 = vadd.f32 %v1090, %v744
        %v1107 = vadd.f32 %v1091, %v744
        %v1108 = vadd.f32 %v1092, %v744
        %v1109 = vadd.f32 %v1093, %v744
        %v1110 = vadd.f32 %v1094, %v744
        %v1111 = vadd.f32 %v1095, %v744
        %v1112 = vadd.f32 %v1096, %v744
        %v1113 = vadd.f32 %v1097, %v744
        %v1114 = vadd.f32 %v1098, %v744
        %v1115 = vadd.f32 %v1099, %v744
        %v1116 = vadd.f32 %v1100, %v744
        %v1117 = vadd.f32 %v1101, %v744
        %v1118 = vadd.f32 %v1102, %v744
        %v1119 = vadd.f32 %v1103, %v744
        %v1120 = vmax.f32 %v1104, 0.0
        %v1121 = vmax.f32 %v1105, 0.0
        %v1122 = vmax.f32 %v1106, 0.0
        %v1123 = vmax.f32 %v1107, 0.0
        %v1124 = vmax.f32 %v1108, 0.0
        %v1125 = vmax.f32 %v1109, 0.0
        %v1126 = vmax.f32 %v1110, 0.0
        %v1127 = vmax.f32 %v1111, 0.0
        %v1128 = vmax.f32 %v1112, 0.0
        %v1129 = vmax.f32 %v1113, 0.0
        %v1130 = vmax.f32 %v1114, 0.0
        %v1131 = vmax.f32 %v1115, 0.0
        %v1132 = vmax.f32 %v1116, 0.0
        %v1133 = vmax.f32 %v1117, 0.0
        %v1134 = vmax.f32 %v1118, 0.0
        %v1135 = vmax.f32 %v1119, 0.0
        %v1152 = vrot.slane %v762, 1
        %v1153 = vrot.slane %v763, 1
        %v1154 = vrot.slane %v764, 1
        %v1155 = vrot.slane %v765, 1
        %v1156 = vrot.slane %v766, 1
        %v1157 = vrot.slane %v767, 1
        %v1158 = vrot.slane %v768, 1
        %v1159 = vrot.slane %v769, 1
        %v1160 = vrot.slane %v770, 1
        %v1161 = vrot.slane %v771, 1
        %v1162 = vrot.slane %v772, 1
        %v1163 = vrot.slane %v773, 1
        %v1164 = vrot.slane %v774, 1
        %v1165 = vrot.slane %v775, 1
        %v1166 = vrot.slane %v776, 1
        %v1167 = vrot.slane %v777, 1
        %v1184 = vsel %vm524, %v1152, 0.0
        %v1185 = vsel %vm524, %v1153, 0.0
        %v1186 = vsel %vm524, %v1154, 0.0
        %v1187 = vsel %vm524, %v1155, 0.0
        %v1188 = vsel %vm524, %v1156, 0.0
        %v1189 = vsel %vm524, %v1157, 0.0
        %v1190 = vsel %vm524, %v1158, 0.0
        %v1191 = vsel %vm524, %v1159, 0.0
        %v1192 = vsel %vm524, %v1160, 0.0
        %v1193 = vsel %vm524, %v1161, 0.0
        %v1194 = vsel %vm524, %v1162, 0.0
        %v1195 = vsel %vm524, %v1163, 0.0
        %v1196 = vsel %vm524, %v1164, 0.0
        %v1197 = vsel %vm524, %v1165, 0.0
        %v1198 = vsel %vm524, %v1166, 0.0
        %v1199 = vsel %vm524, %v1167, 0.0
        %vm1200 = vcmask 130048
        %v1202 = vsel %vm1200, %v1120, 0
        %v1205 = vsel %vm1200, %v1121, 0
        %v1208 = vsel %vm1200, %v1122, 0
        %v1211 = vsel %vm1200, %v1123, 0
        %v1214 = vsel %vm1200, %v1124, 0
        %v1217 = vsel %vm1200, %v1125, 0
        %v1220 = vsel %vm1200, %v1126, 0
        %v1223 = vsel %vm1200, %v1127, 0
        %v1226 = vsel %vm1200, %v1128, 0
        %v1229 = vsel %vm1200, %v1129, 0
        %v1232 = vsel %vm1200, %v1130, 0
        %v1235 = vsel %vm1200, %v1131, 0
        %v1238 = vsel %vm1200, %v1132, 0
        %v1241 = vsel %vm1200, %v1133, 0
        %v1244 = vsel %vm1200, %v1134, 0
        %v1247 = vsel %vm1200, %v1135, 0
        %1249 = vmatpush.msra.mxu0 0.0
        %1250 = vmatpush.msra.mxu0 0.0
        %1251 = vmatpush.msra.mxu0 0.0
        %1252 = vmatpush.msra.mxu0 0.0
        %1253 = vmatpush.msra.mxu0 0.0
        %1254 = vmatpush.msra.mxu0 0.0
        %1255 = vmatpush.msra.mxu0 0.0
        %1256 = vmatpush.msra.mxu0 0.0
        %1257 = vmatpush.msra.mxu0 0.0
        %1258 = vmatpush.msra.mxu0 0.0
        %1259 = vmatpush.msra.mxu0 0.0
        %1260 = vmatpush.msra.mxu0 0.0
        %1261 = vmatpush.msra.mxu0 0.0
        %1262 = vmatpush.msra.mxu0 0.0
        %1263 = vmatpush.msra.mxu0 %v441
        %1264 = vmatpush.msra.mxu0 %v440
        %1265 = vmatmul.f32.gmra.mxu0 %v1202
        %v1266 = vpop.f32.mrf.mxu0
        %v1267 = vadd.f32 0.0, %v1266
        %1268 = vmatmul.f32.gmra.mxu0 %v1205
        %v1269 = vpop.f32.mrf.mxu0
        %v1270 = vadd.f32 0.0, %v1269
        %1271 = vmatmul.f32.gmra.mxu0 %v1208
        %v1272 = vpop.f32.mrf.mxu0
        %v1273 = vadd.f32 0.0, %v1272
        %1274 = vmatmul.f32.gmra.mxu0 %v1211
        %v1275 = vpop.f32.mrf.mxu0
        %v1276 = vadd.f32 0.0, %v1275
        %1277 = vmatmul.f32.gmra.mxu0 %v1214
        %v1278 = vpop.f32.mrf.mxu0
        %v1279 = vadd.f32 0.0, %v1278
        %1280 = vmatmul.f32.gmra.mxu0 %v1217
        %v1281 = vpop.f32.mrf.mxu0
        %v1282 = vadd.f32 0.0, %v1281
        %1283 = vmatmul.f32.gmra.mxu0 %v1220
        %v1284 = vpop.f32.mrf.mxu0
        %v1285 = vadd.f32 0.0, %v1284
        %1286 = vmatmul.f32.gmra.mxu0 %v1223
        %v1287 = vpop.f32.mrf.mxu0
        %v1288 = vadd.f32 0.0, %v1287
        %1289 = vmatmul.f32.gmra.mxu0 %v1226
        %v1290 = vpop.f32.mrf.mxu0
        %v1291 = vadd.f32 0.0, %v1290
        %1292 = vmatmul.f32.gmra.mxu0 %v1229
        %v1293 = vpop.f32.mrf.mxu0
        %v1294 = vadd.f32 0.0, %v1293
        %1295 = vmatmul.f32.gmra.mxu0 %v1232
        %v1296 = vpop.f32.mrf.mxu0
        %v1297 = vadd.f32 0.0, %v1296
        %1298 = vmatmul.f32.gmra.mxu0 %v1235
        %v1299 = vpop.f32.mrf.mxu0
        %v1300 = vadd.f32 0.0, %v1299
        %1301 = vmatmul.f32.gmra.mxu0 %v1238
        %v1302 = vpop.f32.mrf.mxu0
        %v1303 = vadd.f32 0.0, %v1302
        %1304 = vmatmul.f32.gmra.mxu0 %v1241
        %v1305 = vpop.f32.mrf.mxu0
        %v1306 = vadd.f32 0.0, %v1305
        %1307 = vmatmul.f32.gmra.mxu0 %v1244
        %v1308 = vpop.f32.mrf.mxu0
        %v1309 = vadd.f32 0.0, %v1308
        %1310 = vmatmul.f32.gmra.mxu0 %v1247
        %v1311 = vpop.f32.mrf.mxu0
        %v1312 = vadd.f32 0.0, %v1311
        %1313 = vdwg.mxu0
        %v1314 = vsel %vm1200, %v762, 0
        %v1316 = vsel %vm1200, %v763, 0
        %v1318 = vsel %vm1200, %v764, 0
        %v1320 = vsel %vm1200, %v765, 0
        %v1322 = vsel %vm1200, %v766, 0
        %v1324 = vsel %vm1200, %v767, 0
        %v1326 = vsel %vm1200, %v768, 0
        %v1328 = vsel %vm1200, %v769, 0
        %v1330 = vsel %vm1200, %v770, 0
        %v1332 = vsel %vm1200, %v771, 0
        %v1334 = vsel %vm1200, %v772, 0
        %v1336 = vsel %vm1200, %v773, 0
        %v1338 = vsel %vm1200, %v774, 0
        %v1340 = vsel %vm1200, %v775, 0
        %v1342 = vsel %vm1200, %v776, 0
        %v1344 = vsel %vm1200, %v777, 0
        %1346 = vmatpush.msra.mxu0 0.0
        %1347 = vmatpush.msra.mxu0 0.0
        %1348 = vmatpush.msra.mxu0 0.0
        %1349 = vmatpush.msra.mxu0 0.0
        %1350 = vmatpush.msra.mxu0 0.0
        %1351 = vmatpush.msra.mxu0 0.0
        %1352 = vmatpush.msra.mxu0 0.0
        %1353 = vmatpush.msra.mxu0 0.0
        %1354 = vmatpush.msra.mxu0 0.0
        %1355 = vmatpush.msra.mxu0 0.0
        %1356 = vmatpush.msra.mxu0 0.0
        %1357 = vmatpush.msra.mxu0 0.0
        %1358 = vmatpush.msra.mxu0 0.0
        %1359 = vmatpush.msra.mxu0 0.0
        %1360 = vmatpush.msra.mxu0 %v439
        %1361 = vmatpush.msra.mxu0 %v438
        %1362 = vmatmul.f32.gmra.mxu0 %v1314
        %v1363 = vpop.f32.mrf.mxu0
        %v1364 = vadd.f32 %v1267, %v1363
        %1365 = vmatmul.f32.gmra.mxu0 %v1316
        %v1366 = vpop.f32.mrf.mxu0
        %v1367 = vadd.f32 %v1270, %v1366
        %1368 = vmatmul.f32.gmra.mxu0 %v1318
        %v1369 = vpop.f32.mrf.mxu0
        %v1370 = vadd.f32 %v1273, %v1369
        %1371 = vmatmul.f32.gmra.mxu0 %v1320
        %v1372 = vpop.f32.mrf.mxu0
        %v1373 = vadd.f32 %v1276, %v1372
        %1374 = vmatmul.f32.gmra.mxu0 %v1322
        %v1375 = vpop.f32.mrf.mxu0
        %v1376 = vadd.f32 %v1279, %v1375
        %1377 = vmatmul.f32.gmra.mxu0 %v1324
        %v1378 = vpop.f32.mrf.mxu0
        %v1379 = vadd.f32 %v1282, %v1378
        %1380 = vmatmul.f32.gmra.mxu0 %v1326
        %v1381 = vpop.f32.mrf.mxu0
        %v1382 = vadd.f32 %v1285, %v1381
        %1383 = vmatmul.f32.gmra.mxu0 %v1328
        %v1384 = vpop.f32.mrf.mxu0
        %v1385 = vadd.f32 %v1288, %v1384
        %1386 = vmatmul.f32.gmra.mxu0 %v1330
        %v1387 = vpop.f32.mrf.mxu0
        %v1388 = vadd.f32 %v1291, %v1387
        %1389 = vmatmul.f32.gmra.mxu0 %v1332
        %v1390 = vpop.f32.mrf.mxu0
        %v1391 = vadd.f32 %v1294, %v1390
        %1392 = vmatmul.f32.gmra.mxu0 %v1334
        %v1393 = vpop.f32.mrf.mxu0
        %v1394 = vadd.f32 %v1297, %v1393
        %1395 = vmatmul.f32.gmra.mxu0 %v1336
        %v1396 = vpop.f32.mrf.mxu0
        %v1397 = vadd.f32 %v1300, %v1396
        %1398 = vmatmul.f32.gmra.mxu0 %v1338
        %v1399 = vpop.f32.mrf.mxu0
        %v1400 = vadd.f32 %v1303, %v1399
        %1401 = vmatmul.f32.gmra.mxu0 %v1340
        %v1402 = vpop.f32.mrf.mxu0
        %v1403 = vadd.f32 %v1306, %v1402
        %1404 = vmatmul.f32.gmra.mxu0 %v1342
        %v1405 = vpop.f32.mrf.mxu0
        %v1406 = vadd.f32 %v1309, %v1405
        %1407 = vmatmul.f32.gmra.mxu0 %v1344
        %v1408 = vpop.f32.mrf.mxu0
        %v1409 = vadd.f32 %v1312, %v1408
        %1410 = vdwg.mxu0
        %v1412 = vsel %vm1200, 0.0, 0
        %1414 = vmatpush.msra.mxu0 0.0
        %1415 = vmatpush.msra.mxu0 0.0
        %1416 = vmatpush.msra.mxu0 0.0
        %1417 = vmatpush.msra.mxu0 0.0
        %1418 = vmatpush.msra.mxu0 0.0
        %1419 = vmatpush.msra.mxu0 0.0
        %1420 = vmatpush.msra.mxu0 0.0
        %1421 = vmatpush.msra.mxu0 0.0
        %1422 = vmatpush.msra.mxu0 0.0
        %1423 = vmatpush.msra.mxu0 0.0
        %1424 = vmatpush.msra.mxu0 0.0
        %1425 = vmatpush.msra.mxu0 0.0
        %1426 = vmatpush.msra.mxu0 0.0
        %1427 = vmatpush.msra.mxu0 0.0
        %1428 = vmatpush.msra.mxu0 %v443
        %1429 = vmatpush.msra.mxu0 %v442
        %1430 = vmatmul.f32.gmra.mxu0 %v1316
        %v1431 = vpop.f32.mrf.mxu0
        %v1432 = vadd.f32 0.0, %v1431
        %1433 = vmatmul.f32.gmra.mxu0 %v1318
        %v1434 = vpop.f32.mrf.mxu0
        %v1435 = vadd.f32 0.0, %v1434
        %1436 = vmatmul.f32.gmra.mxu0 %v1320
        %v1437 = vpop.f32.mrf.mxu0
        %v1438 = vadd.f32 0.0, %v1437
        %1439 = vmatmul.f32.gmra.mxu0 %v1322
        %v1440 = vpop.f32.mrf.mxu0
        %v1441 = vadd.f32 0.0, %v1440
        %1442 = vmatmul.f32.gmra.mxu0 %v1324
        %v1443 = vpop.f32.mrf.mxu0
        %v1444 = vadd.f32 0.0, %v1443
        %1445 = vmatmul.f32.gmra.mxu0 %v1326
        %v1446 = vpop.f32.mrf.mxu0
        %v1447 = vadd.f32 0.0, %v1446
        %1448 = vmatmul.f32.gmra.mxu0 %v1328
        %v1449 = vpop.f32.mrf.mxu0
        %v1450 = vadd.f32 0.0, %v1449
        %1451 = vmatmul.f32.gmra.mxu0 %v1330
        %v1452 = vpop.f32.mrf.mxu0
        %v1453 = vadd.f32 0.0, %v1452
        %1454 = vmatmul.f32.gmra.mxu0 %v1332
        %v1455 = vpop.f32.mrf.mxu0
        %v1456 = vadd.f32 0.0, %v1455
        %1457 = vmatmul.f32.gmra.mxu0 %v1334
        %v1458 = vpop.f32.mrf.mxu0
        %v1459 = vadd.f32 0.0, %v1458
        %1460 = vmatmul.f32.gmra.mxu0 %v1336
        %v1461 = vpop.f32.mrf.mxu0
        %v1462 = vadd.f32 0.0, %v1461
        %1463 = vmatmul.f32.gmra.mxu0 %v1338
        %v1464 = vpop.f32.mrf.mxu0
        %v1465 = vadd.f32 0.0, %v1464
        %1466 = vmatmul.f32.gmra.mxu0 %v1340
        %v1467 = vpop.f32.mrf.mxu0
        %v1468 = vadd.f32 0.0, %v1467
        %1469 = vmatmul.f32.gmra.mxu0 %v1342
        %v1470 = vpop.f32.mrf.mxu0
        %v1471 = vadd.f32 0.0, %v1470
        %1472 = vmatmul.f32.gmra.mxu0 %v1344
        %v1473 = vpop.f32.mrf.mxu0
        %v1474 = vadd.f32 0.0, %v1473
        %1475 = vmatmul.f32.gmra.mxu0 %v1412
        %v1476 = vpop.f32.mrf.mxu0
        %v1477 = vadd.f32 0.0, %v1476
        %1478 = vdwg.mxu0
        %v1479 = vadd.f32 %v1364, %v1432
        %v1480 = vadd.f32 %v1367, %v1435
        %v1481 = vadd.f32 %v1370, %v1438
        %v1482 = vadd.f32 %v1373, %v1441
        %v1483 = vadd.f32 %v1376, %v1444
        %v1484 = vadd.f32 %v1379, %v1447
        %v1485 = vadd.f32 %v1382, %v1450
        %v1486 = vadd.f32 %v1385, %v1453
        %v1487 = vadd.f32 %v1388, %v1456
        %v1488 = vadd.f32 %v1391, %v1459
        %v1489 = vadd.f32 %v1394, %v1462
        %v1490 = vadd.f32 %v1397, %v1465
        %v1491 = vadd.f32 %v1400, %v1468
        %v1492 = vadd.f32 %v1403, %v1471
        %v1493 = vadd.f32 %v1406, %v1474
        %v1494 = vadd.f32 %v1409, %v1477
        %1495 = vmatpush.msra.mxu0 0.0
        %1496 = vmatpush.msra.mxu0 0.0
        %1497 = vmatpush.msra.mxu0 0.0
        %1498 = vmatpush.msra.mxu0 0.0
        %1499 = vmatpush.msra.mxu0 0.0
        %1500 = vmatpush.msra.mxu0 0.0
        %1501 = vmatpush.msra.mxu0 0.0
        %1502 = vmatpush.msra.mxu0 0.0
        %1503 = vmatpush.msra.mxu0 0.0
        %1504 = vmatpush.msra.mxu0 0.0
        %1505 = vmatpush.msra.mxu0 0.0
        %1506 = vmatpush.msra.mxu0 0.0
        %1507 = vmatpush.msra.mxu0 0.0
        %1508 = vmatpush.msra.mxu0 0.0
        %1509 = vmatpush.msra.mxu0 %v445
        %1510 = vmatpush.msra.mxu0 %v444
        %1511 = vmatmul.f32.gmra.mxu0 %v1205
        %v1512 = vpop.f32.mrf.mxu0
        %v1513 = vadd.f32 0.0, %v1512
        %1514 = vmatmul.f32.gmra.mxu0 %v1208
        %v1515 = vpop.f32.mrf.mxu0
        %v1516 = vadd.f32 0.0, %v1515
        %1517 = vmatmul.f32.gmra.mxu0 %v1211
        %v1518 = vpop.f32.mrf.mxu0
        %v1519 = vadd.f32 0.0, %v1518
        %1520 = vmatmul.f32.gmra.mxu0 %v1214
        %v1521 = vpop.f32.mrf.mxu0
        %v1522 = vadd.f32 0.0, %v1521
        %1523 = vmatmul.f32.gmra.mxu0 %v1217
        %v1524 = vpop.f32.mrf.mxu0
        %v1525 = vadd.f32 0.0, %v1524
        %1526 = vmatmul.f32.gmra.mxu0 %v1220
        %v1527 = vpop.f32.mrf.mxu0
        %v1528 = vadd.f32 0.0, %v1527
        %1529 = vmatmul.f32.gmra.mxu0 %v1223
        %v1530 = vpop.f32.mrf.mxu0
        %v1531 = vadd.f32 0.0, %v1530
        %1532 = vmatmul.f32.gmra.mxu0 %v1226
        %v1533 = vpop.f32.mrf.mxu0
        %v1534 = vadd.f32 0.0, %v1533
        %1535 = vmatmul.f32.gmra.mxu0 %v1229
        %v1536 = vpop.f32.mrf.mxu0
        %v1537 = vadd.f32 0.0, %v1536
        %1538 = vmatmul.f32.gmra.mxu0 %v1232
        %v1539 = vpop.f32.mrf.mxu0
        %v1540 = vadd.f32 0.0, %v1539
        %1541 = vmatmul.f32.gmra.mxu0 %v1235
        %v1542 = vpop.f32.mrf.mxu0
        %v1543 = vadd.f32 0.0, %v1542
        %1544 = vmatmul.f32.gmra.mxu0 %v1238
        %v1545 = vpop.f32.mrf.mxu0
        %v1546 = vadd.f32 0.0, %v1545
        %1547 = vmatmul.f32.gmra.mxu0 %v1241
        %v1548 = vpop.f32.mrf.mxu0
        %v1549 = vadd.f32 0.0, %v1548
        %1550 = vmatmul.f32.gmra.mxu0 %v1244
        %v1551 = vpop.f32.mrf.mxu0
        %v1552 = vadd.f32 0.0, %v1551
        %1553 = vmatmul.f32.gmra.mxu0 %v1247
        %v1554 = vpop.f32.mrf.mxu0
        %v1555 = vadd.f32 0.0, %v1554
        %1556 = vmatmul.f32.gmra.mxu0 %v1412
        %v1557 = vpop.f32.mrf.mxu0
        %v1558 = vadd.f32 0.0, %v1557
        %1559 = vdwg.mxu0
        %v1560 = vadd.f32 %v1479, %v1513
        %v1561 = vadd.f32 %v1480, %v1516
        %v1562 = vadd.f32 %v1481, %v1519
        %v1563 = vadd.f32 %v1482, %v1522
        %v1564 = vadd.f32 %v1483, %v1525
        %v1565 = vadd.f32 %v1484, %v1528
        %v1566 = vadd.f32 %v1485, %v1531
        %v1567 = vadd.f32 %v1486, %v1534
        %v1568 = vadd.f32 %v1487, %v1537
        %v1569 = vadd.f32 %v1488, %v1540
        %v1570 = vadd.f32 %v1489, %v1543
        %v1571 = vadd.f32 %v1490, %v1546
        %v1572 = vadd.f32 %v1491, %v1549
        %v1573 = vadd.f32 %v1492, %v1552
        %v1574 = vadd.f32 %v1493, %v1555
        %v1575 = vadd.f32 %v1494, %v1558
        %v1577 = vsel %vm1200, %v1184, 0
        %v1580 = vsel %vm1200, %v1185, 0
        %v1583 = vsel %vm1200, %v1186, 0
        %v1586 = vsel %vm1200, %v1187, 0
        %v1589 = vsel %vm1200, %v1188, 0
        %v1592 = vsel %vm1200, %v1189, 0
        %v1595 = vsel %vm1200, %v1190, 0
        %v1598 = vsel %vm1200, %v1191, 0
        %v1601 = vsel %vm1200, %v1192, 0
        %v1604 = vsel %vm1200, %v1193, 0
        %v1607 = vsel %vm1200, %v1194, 0
        %v1610 = vsel %vm1200, %v1195, 0
        %v1613 = vsel %vm1200, %v1196, 0
        %v1616 = vsel %vm1200, %v1197, 0
        %v1619 = vsel %vm1200, %v1198, 0
        %v1622 = vsel %vm1200, %v1199, 0
        %1624 = vmatpush.msra.mxu0 0.0
        %1625 = vmatpush.msra.mxu0 0.0
        %1626 = vmatpush.msra.mxu0 0.0
        %1627 = vmatpush.msra.mxu0 0.0
        %1628 = vmatpush.msra.mxu0 0.0
        %1629 = vmatpush.msra.mxu0 0.0
        %1630 = vmatpush.msra.mxu0 0.0
        %1631 = vmatpush.msra.mxu0 0.0
        %1632 = vmatpush.msra.mxu0 0.0
        %1633 = vmatpush.msra.mxu0 0.0
        %1634 = vmatpush.msra.mxu0 0.0
        %1635 = vmatpush.msra.mxu0 0.0
        %1636 = vmatpush.msra.mxu0 0.0
        %1637 = vmatpush.msra.mxu0 0.0
        %1638 = vmatpush.msra.mxu0 %v441
        %1639 = vmatpush.msra.mxu0 %v440
        %1640 = vmatmul.f32.gmra.mxu0 %v1577
        %v1641 = vpop.f32.mrf.mxu0
        %v1642 = vadd.f32 0.0, %v1641
        %1643 = vmatmul.f32.gmra.mxu0 %v1580
        %v1644 = vpop.f32.mrf.mxu0
        %v1645 = vadd.f32 0.0, %v1644
        %1646 = vmatmul.f32.gmra.mxu0 %v1583
        %v1647 = vpop.f32.mrf.mxu0
        %v1648 = vadd.f32 0.0, %v1647
        %1649 = vmatmul.f32.gmra.mxu0 %v1586
        %v1650 = vpop.f32.mrf.mxu0
        %v1651 = vadd.f32 0.0, %v1650
        %1652 = vmatmul.f32.gmra.mxu0 %v1589
        %v1653 = vpop.f32.mrf.mxu0
        %v1654 = vadd.f32 0.0, %v1653
        %1655 = vmatmul.f32.gmra.mxu0 %v1592
        %v1656 = vpop.f32.mrf.mxu0
        %v1657 = vadd.f32 0.0, %v1656
        %1658 = vmatmul.f32.gmra.mxu0 %v1595
        %v1659 = vpop.f32.mrf.mxu0
        %v1660 = vadd.f32 0.0, %v1659
        %1661 = vmatmul.f32.gmra.mxu0 %v1598
        %v1662 = vpop.f32.mrf.mxu0
        %v1663 = vadd.f32 0.0, %v1662
        %1664 = vmatmul.f32.gmra.mxu0 %v1601
        %v1665 = vpop.f32.mrf.mxu0
        %v1666 = vadd.f32 0.0, %v1665
        %1667 = vmatmul.f32.gmra.mxu0 %v1604
        %v1668 = vpop.f32.mrf.mxu0
        %v1669 = vadd.f32 0.0, %v1668
        %1670 = vmatmul.f32.gmra.mxu0 %v1607
        %v1671 = vpop.f32.mrf.mxu0
        %v1672 = vadd.f32 0.0, %v1671
        %1673 = vmatmul.f32.gmra.mxu0 %v1610
        %v1674 = vpop.f32.mrf.mxu0
        %v1675 = vadd.f32 0.0, %v1674
        %1676 = vmatmul.f32.gmra.mxu0 %v1613
        %v1677 = vpop.f32.mrf.mxu0
        %v1678 = vadd.f32 0.0, %v1677
        %1679 = vmatmul.f32.gmra.mxu0 %v1616
        %v1680 = vpop.f32.mrf.mxu0
        %v1681 = vadd.f32 0.0, %v1680
        %1682 = vmatmul.f32.gmra.mxu0 %v1619
        %v1683 = vpop.f32.mrf.mxu0
        %v1684 = vadd.f32 0.0, %v1683
        %1685 = vmatmul.f32.gmra.mxu0 %v1622
        %v1686 = vpop.f32.mrf.mxu0
        %v1687 = vadd.f32 0.0, %v1686
        %1688 = vdwg.mxu0
        %1689 = vmatpush.msra.mxu0 0.0
        %1690 = vmatpush.msra.mxu0 0.0
        %1691 = vmatpush.msra.mxu0 0.0
        %1692 = vmatpush.msra.mxu0 0.0
        %1693 = vmatpush.msra.mxu0 0.0
        %1694 = vmatpush.msra.mxu0 0.0
        %1695 = vmatpush.msra.mxu0 0.0
        %1696 = vmatpush.msra.mxu0 0.0
        %1697 = vmatpush.msra.mxu0 0.0
        %1698 = vmatpush.msra.mxu0 0.0
        %1699 = vmatpush.msra.mxu0 0.0
        %1700 = vmatpush.msra.mxu0 0.0
        %1701 = vmatpush.msra.mxu0 0.0
        %1702 = vmatpush.msra.mxu0 0.0
        %1703 = vmatpush.msra.mxu0 %v439
        %1704 = vmatpush.msra.mxu0 %v438
        %1705 = vmatmul.f32.gmra.mxu0 %v1202
        %v1706 = vpop.f32.mrf.mxu0
        %v1707 = vadd.f32 %v1642, %v1706
        %1708 = vmatmul.f32.gmra.mxu0 %v1205
        %v1709 = vpop.f32.mrf.mxu0
        %v1710 = vadd.f32 %v1645, %v1709
        %1711 = vmatmul.f32.gmra.mxu0 %v1208
        %v1712 = vpop.f32.mrf.mxu0
        %v1713 = vadd.f32 %v1648, %v1712
        %1714 = vmatmul.f32.gmra.mxu0 %v1211
        %v1715 = vpop.f32.mrf.mxu0
        %v1716 = vadd.f32 %v1651, %v1715
        %1717 = vmatmul.f32.gmra.mxu0 %v1214
        %v1718 = vpop.f32.mrf.mxu0
        %v1719 = vadd.f32 %v1654, %v1718
        %1720 = vmatmul.f32.gmra.mxu0 %v1217
        %v1721 = vpop.f32.mrf.mxu0
        %v1722 = vadd.f32 %v1657, %v1721
        %1723 = vmatmul.f32.gmra.mxu0 %v1220
        %v1724 = vpop.f32.mrf.mxu0
        %v1725 = vadd.f32 %v1660, %v1724
        %1726 = vmatmul.f32.gmra.mxu0 %v1223
        %v1727 = vpop.f32.mrf.mxu0
        %v1728 = vadd.f32 %v1663, %v1727
        %1729 = vmatmul.f32.gmra.mxu0 %v1226
        %v1730 = vpop.f32.mrf.mxu0
        %v1731 = vadd.f32 %v1666, %v1730
        %1732 = vmatmul.f32.gmra.mxu0 %v1229
        %v1733 = vpop.f32.mrf.mxu0
        %v1734 = vadd.f32 %v1669, %v1733
        %1735 = vmatmul.f32.gmra.mxu0 %v1232
        %v1736 = vpop.f32.mrf.mxu0
        %v1737 = vadd.f32 %v1672, %v1736
        %1738 = vmatmul.f32.gmra.mxu0 %v1235
        %v1739 = vpop.f32.mrf.mxu0
        %v1740 = vadd.f32 %v1675, %v1739
        %1741 = vmatmul.f32.gmra.mxu0 %v1238
        %v1742 = vpop.f32.mrf.mxu0
        %v1743 = vadd.f32 %v1678, %v1742
        %1744 = vmatmul.f32.gmra.mxu0 %v1241
        %v1745 = vpop.f32.mrf.mxu0
        %v1746 = vadd.f32 %v1681, %v1745
        %1747 = vmatmul.f32.gmra.mxu0 %v1244
        %v1748 = vpop.f32.mrf.mxu0
        %v1749 = vadd.f32 %v1684, %v1748
        %1750 = vmatmul.f32.gmra.mxu0 %v1247
        %v1751 = vpop.f32.mrf.mxu0
        %v1752 = vadd.f32 %v1687, %v1751
        %1753 = vdwg.mxu0
        %1754 = vmatpush.msra.mxu0 0.0
        %1755 = vmatpush.msra.mxu0 0.0
        %1756 = vmatpush.msra.mxu0 0.0
        %1757 = vmatpush.msra.mxu0 0.0
        %1758 = vmatpush.msra.mxu0 0.0
        %1759 = vmatpush.msra.mxu0 0.0
        %1760 = vmatpush.msra.mxu0 0.0
        %1761 = vmatpush.msra.mxu0 0.0
        %1762 = vmatpush.msra.mxu0 0.0
        %1763 = vmatpush.msra.mxu0 0.0
        %1764 = vmatpush.msra.mxu0 0.0
        %1765 = vmatpush.msra.mxu0 0.0
        %1766 = vmatpush.msra.mxu0 0.0
        %1767 = vmatpush.msra.mxu0 0.0
        %1768 = vmatpush.msra.mxu0 %v443
        %1769 = vmatpush.msra.mxu0 %v442
        %1770 = vmatmul.f32.gmra.mxu0 %v1205
        %v1771 = vpop.f32.mrf.mxu0
        %v1772 = vadd.f32 0.0, %v1771
        %1773 = vmatmul.f32.gmra.mxu0 %v1208
        %v1774 = vpop.f32.mrf.mxu0
        %v1775 = vadd.f32 0.0, %v1774
        %1776 = vmatmul.f32.gmra.mxu0 %v1211
        %v1777 = vpop.f32.mrf.mxu0
        %v1778 = vadd.f32 0.0, %v1777
        %1779 = vmatmul.f32.gmra.mxu0 %v1214
        %v1780 = vpop.f32.mrf.mxu0
        %v1781 = vadd.f32 0.0, %v1780
        %1782 = vmatmul.f32.gmra.mxu0 %v1217
        %v1783 = vpop.f32.mrf.mxu0
        %v1784 = vadd.f32 0.0, %v1783
        %1785 = vmatmul.f32.gmra.mxu0 %v1220
        %v1786 = vpop.f32.mrf.mxu0
        %v1787 = vadd.f32 0.0, %v1786
        %1788 = vmatmul.f32.gmra.mxu0 %v1223
        %v1789 = vpop.f32.mrf.mxu0
        %v1790 = vadd.f32 0.0, %v1789
        %1791 = vmatmul.f32.gmra.mxu0 %v1226
        %v1792 = vpop.f32.mrf.mxu0
        %v1793 = vadd.f32 0.0, %v1792
        %1794 = vmatmul.f32.gmra.mxu0 %v1229
        %v1795 = vpop.f32.mrf.mxu0
        %v1796 = vadd.f32 0.0, %v1795
        %1797 = vmatmul.f32.gmra.mxu0 %v1232
        %v1798 = vpop.f32.mrf.mxu0
        %v1799 = vadd.f32 0.0, %v1798
        %1800 = vmatmul.f32.gmra.mxu0 %v1235
        %v1801 = vpop.f32.mrf.mxu0
        %v1802 = vadd.f32 0.0, %v1801
        %1803 = vmatmul.f32.gmra.mxu0 %v1238
        %v1804 = vpop.f32.mrf.mxu0
        %v1805 = vadd.f32 0.0, %v1804
        %1806 = vmatmul.f32.gmra.mxu0 %v1241
        %v1807 = vpop.f32.mrf.mxu0
        %v1808 = vadd.f32 0.0, %v1807
        %1809 = vmatmul.f32.gmra.mxu0 %v1244
        %v1810 = vpop.f32.mrf.mxu0
        %v1811 = vadd.f32 0.0, %v1810
        %1812 = vmatmul.f32.gmra.mxu0 %v1247
        %v1813 = vpop.f32.mrf.mxu0
        %v1814 = vadd.f32 0.0, %v1813
        %1815 = vmatmul.f32.gmra.mxu0 %v1412
        %v1816 = vpop.f32.mrf.mxu0
        %v1817 = vadd.f32 0.0, %v1816
        %1818 = vdwg.mxu0
        %v1819 = vadd.f32 %v1707, %v1772
        %v1820 = vadd.f32 %v1710, %v1775
        %v1821 = vadd.f32 %v1713, %v1778
        %v1822 = vadd.f32 %v1716, %v1781
        %v1823 = vadd.f32 %v1719, %v1784
        %v1824 = vadd.f32 %v1722, %v1787
        %v1825 = vadd.f32 %v1725, %v1790
        %v1826 = vadd.f32 %v1728, %v1793
        %v1827 = vadd.f32 %v1731, %v1796
        %v1828 = vadd.f32 %v1734, %v1799
        %v1829 = vadd.f32 %v1737, %v1802
        %v1830 = vadd.f32 %v1740, %v1805
        %v1831 = vadd.f32 %v1743, %v1808
        %v1832 = vadd.f32 %v1746, %v1811
        %v1833 = vadd.f32 %v1749, %v1814
        %v1834 = vadd.f32 %v1752, %v1817
        %1835 = vmatpush.msra.mxu0 0.0
        %1836 = vmatpush.msra.mxu0 0.0
        %1837 = vmatpush.msra.mxu0 0.0
        %1838 = vmatpush.msra.mxu0 0.0
        %1839 = vmatpush.msra.mxu0 0.0
        %1840 = vmatpush.msra.mxu0 0.0
        %1841 = vmatpush.msra.mxu0 0.0
        %1842 = vmatpush.msra.mxu0 0.0
        %1843 = vmatpush.msra.mxu0 0.0
        %1844 = vmatpush.msra.mxu0 0.0
        %1845 = vmatpush.msra.mxu0 0.0
        %1846 = vmatpush.msra.mxu0 0.0
        %1847 = vmatpush.msra.mxu0 0.0
        %1848 = vmatpush.msra.mxu0 0.0
        %1849 = vmatpush.msra.mxu0 %v445
        %1850 = vmatpush.msra.mxu0 %v444
        %1851 = vmatmul.f32.gmra.mxu0 %v1580
        %v1852 = vpop.f32.mrf.mxu0
        %v1853 = vadd.f32 0.0, %v1852
        %1854 = vmatmul.f32.gmra.mxu0 %v1583
        %v1855 = vpop.f32.mrf.mxu0
        %v1856 = vadd.f32 0.0, %v1855
        %1857 = vmatmul.f32.gmra.mxu0 %v1586
        %v1858 = vpop.f32.mrf.mxu0
        %v1859 = vadd.f32 0.0, %v1858
        %1860 = vmatmul.f32.gmra.mxu0 %v1589
        %v1861 = vpop.f32.mrf.mxu0
        %v1862 = vadd.f32 0.0, %v1861
        %1863 = vmatmul.f32.gmra.mxu0 %v1592
        %v1864 = vpop.f32.mrf.mxu0
        %v1865 = vadd.f32 0.0, %v1864
        %1866 = vmatmul.f32.gmra.mxu0 %v1595
        %v1867 = vpop.f32.mrf.mxu0
        %v1868 = vadd.f32 0.0, %v1867
        %1869 = vmatmul.f32.gmra.mxu0 %v1598
        %v1870 = vpop.f32.mrf.mxu0
        %v1871 = vadd.f32 0.0, %v1870
        %1872 = vmatmul.f32.gmra.mxu0 %v1601
        %v1873 = vpop.f32.mrf.mxu0
        %v1874 = vadd.f32 0.0, %v1873
        %1875 = vmatmul.f32.gmra.mxu0 %v1604
        %v1876 = vpop.f32.mrf.mxu0
        %v1877 = vadd.f32 0.0, %v1876
        %1878 = vmatmul.f32.gmra.mxu0 %v1607
        %v1879 = vpop.f32.mrf.mxu0
        %v1880 = vadd.f32 0.0, %v1879
        %1881 = vmatmul.f32.gmra.mxu0 %v1610
        %v1882 = vpop.f32.mrf.mxu0
        %v1883 = vadd.f32 0.0, %v1882
        %1884 = vmatmul.f32.gmra.mxu0 %v1613
        %v1885 = vpop.f32.mrf.mxu0
        %v1886 = vadd.f32 0.0, %v1885
        %1887 = vmatmul.f32.gmra.mxu0 %v1616
        %v1888 = vpop.f32.mrf.mxu0
        %v1889 = vadd.f32 0.0, %v1888
        %1890 = vmatmul.f32.gmra.mxu0 %v1619
        %v1891 = vpop.f32.mrf.mxu0
        %v1892 = vadd.f32 0.0, %v1891
        %1893 = vmatmul.f32.gmra.mxu0 %v1622
        %v1894 = vpop.f32.mrf.mxu0
        %v1895 = vadd.f32 0.0, %v1894
        %1896 = vmatmul.f32.gmra.mxu0 %v1412
        %v1897 = vpop.f32.mrf.mxu0
        %v1898 = vadd.f32 0.0, %v1897
        %1899 = vdwg.mxu0
        %v1900 = vadd.f32 %v1819, %v1853
        %v1901 = vadd.f32 %v1820, %v1856
        %v1902 = vadd.f32 %v1821, %v1859
        %v1903 = vadd.f32 %v1822, %v1862
        %v1904 = vadd.f32 %v1823, %v1865
        %v1905 = vadd.f32 %v1824, %v1868
        %v1906 = vadd.f32 %v1825, %v1871
        %v1907 = vadd.f32 %v1826, %v1874
        %v1908 = vadd.f32 %v1827, %v1877
        %v1909 = vadd.f32 %v1828, %v1880
        %v1910 = vadd.f32 %v1829, %v1883
        %v1911 = vadd.f32 %v1830, %v1886
        %v1912 = vadd.f32 %v1831, %v1889
        %v1913 = vadd.f32 %v1832, %v1892
        %v1914 = vadd.f32 %v1833, %v1895
        %v1915 = vadd.f32 %v1834, %v1898
        %v1917 = vperm.slane %v446, 0
        %v1919 = vadd.f32 %v1560, %v1917
        %v1920 = vadd.f32 %v1561, %v1917
        %v1921 = vadd.f32 %v1562, %v1917
        %v1922 = vadd.f32 %v1563, %v1917
        %v1923 = vadd.f32 %v1564, %v1917
        %v1924 = vadd.f32 %v1565, %v1917
        %v1925 = vadd.f32 %v1566, %v1917
        %v1926 = vadd.f32 %v1567, %v1917
        %v1927 = vadd.f32 %v1568, %v1917
        %v1928 = vadd.f32 %v1569, %v1917
        %v1929 = vadd.f32 %v1570, %v1917
        %v1930 = vadd.f32 %v1571, %v1917
        %v1931 = vadd.f32 %v1572, %v1917
        %v1932 = vadd.f32 %v1573, %v1917
        %v1933 = vadd.f32 %v1574, %v1917
        %v1934 = vadd.f32 %v1575, %v1917
        %v1935 = vmax.f32 %v1919, 0.0
        %v1936 = vmax.f32 %v1920, 0.0
        %v1937 = vmax.f32 %v1921, 0.0
        %v1938 = vmax.f32 %v1922, 0.0
        %v1939 = vmax.f32 %v1923, 0.0
        %v1940 = vmax.f32 %v1924, 0.0
        %v1941 = vmax.f32 %v1925, 0.0
        %v1942 = vmax.f32 %v1926, 0.0
        %v1943 = vmax.f32 %v1927, 0.0
        %v1944 = vmax.f32 %v1928, 0.0
        %v1945 = vmax.f32 %v1929, 0.0
        %v1946 = vmax.f32 %v1930, 0.0
        %v1947 = vmax.f32 %v1931, 0.0
        %v1948 = vmax.f32 %v1932, 0.0
        %v1949 = vmax.f32 %v1933, 0.0
        %v1950 = vmax.f32 %v1934, 0.0
        %v1951 = vadd.f32 %v1900, %v1917
        %v1952 = vadd.f32 %v1901, %v1917
        %v1953 = vadd.f32 %v1902, %v1917
        %v1954 = vadd.f32 %v1903, %v1917
        %v1955 = vadd.f32 %v1904, %v1917
        %v1956 = vadd.f32 %v1905, %v1917
        %v1957 = vadd.f32 %v1906, %v1917
        %v1958 = vadd.f32 %v1907, %v1917
        %v1959 = vadd.f32 %v1908, %v1917
        %v1960 = vadd.f32 %v1909, %v1917
        %v1961 = vadd.f32 %v1910, %v1917
        %v1962 = vadd.f32 %v1911, %v1917
        %v1963 = vadd.f32 %v1912, %v1917
        %v1964 = vadd.f32 %v1913, %v1917
        %v1965 = vadd.f32 %v1914, %v1917
        %v1966 = vadd.f32 %v1915, %v1917
        %v1967 = vmax.f32 %v1951, 0.0
        %v1968 = vmax.f32 %v1952, 0.0
        %v1969 = vmax.f32 %v1953, 0.0
        %v1970 = vmax.f32 %v1954, 0.0
        %v1971 = vmax.f32 %v1955, 0.0
        %v1972 = vmax.f32 %v1956, 0.0
        %v1973 = vmax.f32 %v1957, 0.0
        %v1974 = vmax.f32 %v1958, 0.0
        %v1975 = vmax.f32 %v1959, 0.0
        %v1976 = vmax.f32 %v1960, 0.0
        %v1977 = vmax.f32 %v1961, 0.0
        %v1978 = vmax.f32 %v1962, 0.0
        %v1979 = vmax.f32 %v1963, 0.0
        %v1980 = vmax.f32 %v1964, 0.0
        %v1981 = vmax.f32 %v1965, 0.0
        %v1982 = vmax.f32 %v1966, 0.0
        %v1999 = vrot.slane %v1935, 1
        %v2000 = vrot.slane %v1936, 1
        %v2001 = vrot.slane %v1937, 1
        %v2002 = vrot.slane %v1938, 1
        %v2003 = vrot.slane %v1939, 1
        %v2004 = vrot.slane %v1940, 1
        %v2005 = vrot.slane %v1941, 1
        %v2006 = vrot.slane %v1942, 1
        %v2007 = vrot.slane %v1943, 1
        %v2008 = vrot.slane %v1944, 1
        %v2009 = vrot.slane %v1945, 1
        %v2010 = vrot.slane %v1946, 1
        %v2011 = vrot.slane %v1947, 1
        %v2012 = vrot.slane %v1948, 1
        %v2013 = vrot.slane %v1949, 1
        %v2014 = vrot.slane %v1950, 1
        %v2031 = vsel %vm524, %v1999, 0.0
        %v2032 = vsel %vm524, %v2000, 0.0
        %v2033 = vsel %vm524, %v2001, 0.0
        %v2034 = vsel %vm524, %v2002, 0.0
        %v2035 = vsel %vm524, %v2003, 0.0
        %v2036 = vsel %vm524, %v2004, 0.0
        %v2037 = vsel %vm524, %v2005, 0.0
        %v2038 = vsel %vm524, %v2006, 0.0
        %v2039 = vsel %vm524, %v2007, 0.0
        %v2040 = vsel %vm524, %v2008, 0.0
        %v2041 = vsel %vm524, %v2009, 0.0
        %v2042 = vsel %vm524, %v2010, 0.0
        %v2043 = vsel %vm524, %v2011, 0.0
        %v2044 = vsel %vm524, %v2012, 0.0
        %v2045 = vsel %vm524, %v2013, 0.0
        %v2046 = vsel %vm524, %v2014, 0.0
        %vm2047 = vcmask 64512
        %v2049 = vsel %vm2047, %v1967, 0
        %v2052 = vsel %vm2047, %v1968, 0
        %v2055 = vsel %vm2047, %v1969, 0
        %v2058 = vsel %vm2047, %v1970, 0
        %v2061 = vsel %vm2047, %v1971, 0
        %v2064 = vsel %vm2047, %v1972, 0
        %v2067 = vsel %vm2047, %v1973, 0
        %v2070 = vsel %vm2047, %v1974, 0
        %v2073 = vsel %vm2047, %v1975, 0
        %v2076 = vsel %vm2047, %v1976, 0
        %v2079 = vsel %vm2047, %v1977, 0
        %v2082 = vsel %vm2047, %v1978, 0
        %v2085 = vsel %vm2047, %v1979, 0
        %v2088 = vsel %vm2047, %v1980, 0
        %v2091 = vsel %vm2047, %v1981, 0
        %v2094 = vsel %vm2047, %v1982, 0
        %2096 = vmatpush.msra.mxu0 0.0
        %2097 = vmatpush.msra.mxu0 0.0
        %2098 = vmatpush.msra.mxu0 0.0
        %2099 = vmatpush.msra.mxu0 0.0
        %2100 = vmatpush.msra.mxu0 0.0
        %2101 = vmatpush.msra.mxu0 0.0
        %2102 = vmatpush.msra.mxu0 0.0
        %2103 = vmatpush.msra.mxu0 0.0
        %2104 = vmatpush.msra.mxu0 0.0
        %2105 = vmatpush.msra.mxu0 0.0
        %2106 = vmatpush.msra.mxu0 0.0
        %2107 = vmatpush.msra.mxu0 0.0
        %2108 = vmatpush.msra.mxu0 0.0
        %2109 = vmatpush.msra.mxu0 0.0
        %2110 = vmatpush.msra.mxu0 0.0
        %2111 = vmatpush.msra.mxu0 %v448
        %2112 = vmatmul.f32.gmra.mxu0 %v2049
        %v2113 = vpop.f32.mrf.mxu0
        %v2114 = vadd.f32 0.0, %v2113
        %2115 = vmatmul.f32.gmra.mxu0 %v2052
        %v2116 = vpop.f32.mrf.mxu0
        %v2117 = vadd.f32 0.0, %v2116
        %2118 = vmatmul.f32.gmra.mxu0 %v2055
        %v2119 = vpop.f32.mrf.mxu0
        %v2120 = vadd.f32 0.0, %v2119
        %2121 = vmatmul.f32.gmra.mxu0 %v2058
        %v2122 = vpop.f32.mrf.mxu0
        %v2123 = vadd.f32 0.0, %v2122
        %2124 = vmatmul.f32.gmra.mxu0 %v2061
        %v2125 = vpop.f32.mrf.mxu0
        %v2126 = vadd.f32 0.0, %v2125
        %2127 = vmatmul.f32.gmra.mxu0 %v2064
        %v2128 = vpop.f32.mrf.mxu0
        %v2129 = vadd.f32 0.0, %v2128
        %2130 = vmatmul.f32.gmra.mxu0 %v2067
        %v2131 = vpop.f32.mrf.mxu0
        %v2132 = vadd.f32 0.0, %v2131
        %2133 = vmatmul.f32.gmra.mxu0 %v2070
        %v2134 = vpop.f32.mrf.mxu0
        %v2135 = vadd.f32 0.0, %v2134
        %2136 = vmatmul.f32.gmra.mxu0 %v2073
        %v2137 = vpop.f32.mrf.mxu0
        %v2138 = vadd.f32 0.0, %v2137
        %2139 = vmatmul.f32.gmra.mxu0 %v2076
        %v2140 = vpop.f32.mrf.mxu0
        %v2141 = vadd.f32 0.0, %v2140
        %2142 = vmatmul.f32.gmra.mxu0 %v2079
        %v2143 = vpop.f32.mrf.mxu0
        %v2144 = vadd.f32 0.0, %v2143
        %2145 = vmatmul.f32.gmra.mxu0 %v2082
        %v2146 = vpop.f32.mrf.mxu0
        %v2147 = vadd.f32 0.0, %v2146
        %2148 = vmatmul.f32.gmra.mxu0 %v2085
        %v2149 = vpop.f32.mrf.mxu0
        %v2150 = vadd.f32 0.0, %v2149
        %2151 = vmatmul.f32.gmra.mxu0 %v2088
        %v2152 = vpop.f32.mrf.mxu0
        %v2153 = vadd.f32 0.0, %v2152
        %2154 = vmatmul.f32.gmra.mxu0 %v2091
        %v2155 = vpop.f32.mrf.mxu0
        %v2156 = vadd.f32 0.0, %v2155
        %2157 = vmatmul.f32.gmra.mxu0 %v2094
        %v2158 = vpop.f32.mrf.mxu0
        %v2159 = vadd.f32 0.0, %v2158
        %2160 = vdwg.mxu0
        %v2161 = vsel %vm2047, %v1935, 0
        %v2163 = vsel %vm2047, %v1936, 0
        %v2165 = vsel %vm2047, %v1937, 0
        %v2167 = vsel %vm2047, %v1938, 0
        %v2169 = vsel %vm2047, %v1939, 0
        %v2171 = vsel %vm2047, %v1940, 0
        %v2173 = vsel %vm2047, %v1941, 0
        %v2175 = vsel %vm2047, %v1942, 0
        %v2177 = vsel %vm2047, %v1943, 0
        %v2179 = vsel %vm2047, %v1944, 0
        %v2181 = vsel %vm2047, %v1945, 0
        %v2183 = vsel %vm2047, %v1946, 0
        %v2185 = vsel %vm2047, %v1947, 0
        %v2187 = vsel %vm2047, %v1948, 0
        %v2189 = vsel %vm2047, %v1949, 0
        %v2191 = vsel %vm2047, %v1950, 0
        %2193 = vmatpush.msra.mxu0 0.0
        %2194 = vmatpush.msra.mxu0 0.0
        %2195 = vmatpush.msra.mxu0 0.0
        %2196 = vmatpush.msra.mxu0 0.0
        %2197 = vmatpush.msra.mxu0 0.0
        %2198 = vmatpush.msra.mxu0 0.0
        %2199 = vmatpush.msra.mxu0 0.0
        %2200 = vmatpush.msra.mxu0 0.0
        %2201 = vmatpush.msra.mxu0 0.0
        %2202 = vmatpush.msra.mxu0 0.0
        %2203 = vmatpush.msra.mxu0 0.0
        %2204 = vmatpush.msra.mxu0 0.0
        %2205 = vmatpush.msra.mxu0 0.0
        %2206 = vmatpush.msra.mxu0 0.0
        %2207 = vmatpush.msra.mxu0 0.0
        %2208 = vmatpush.msra.mxu0 %v447
        %2209 = vmatmul.f32.gmra.mxu0 %v2161
        %v2210 = vpop.f32.mrf.mxu0
        %v2211 = vadd.f32 %v2114, %v2210
        %2212 = vmatmul.f32.gmra.mxu0 %v2163
        %v2213 = vpop.f32.mrf.mxu0
        %v2214 = vadd.f32 %v2117, %v2213
        %2215 = vmatmul.f32.gmra.mxu0 %v2165
        %v2216 = vpop.f32.mrf.mxu0
        %v2217 = vadd.f32 %v2120, %v2216
        %2218 = vmatmul.f32.gmra.mxu0 %v2167
        %v2219 = vpop.f32.mrf.mxu0
        %v2220 = vadd.f32 %v2123, %v2219
        %2221 = vmatmul.f32.gmra.mxu0 %v2169
        %v2222 = vpop.f32.mrf.mxu0
        %v2223 = vadd.f32 %v2126, %v2222
        %2224 = vmatmul.f32.gmra.mxu0 %v2171
        %v2225 = vpop.f32.mrf.mxu0
        %v2226 = vadd.f32 %v2129, %v2225
        %2227 = vmatmul.f32.gmra.mxu0 %v2173
        %v2228 = vpop.f32.mrf.mxu0
        %v2229 = vadd.f32 %v2132, %v2228
        %2230 = vmatmul.f32.gmra.mxu0 %v2175
        %v2231 = vpop.f32.mrf.mxu0
        %v2232 = vadd.f32 %v2135, %v2231
        %2233 = vmatmul.f32.gmra.mxu0 %v2177
        %v2234 = vpop.f32.mrf.mxu0
        %v2235 = vadd.f32 %v2138, %v2234
        %2236 = vmatmul.f32.gmra.mxu0 %v2179
        %v2237 = vpop.f32.mrf.mxu0
        %v2238 = vadd.f32 %v2141, %v2237
        %2239 = vmatmul.f32.gmra.mxu0 %v2181
        %v2240 = vpop.f32.mrf.mxu0
        %v2241 = vadd.f32 %v2144, %v2240
        %2242 = vmatmul.f32.gmra.mxu0 %v2183
        %v2243 = vpop.f32.mrf.mxu0
        %v2244 = vadd.f32 %v2147, %v2243
        %2245 = vmatmul.f32.gmra.mxu0 %v2185
        %v2246 = vpop.f32.mrf.mxu0
        %v2247 = vadd.f32 %v2150, %v2246
        %2248 = vmatmul.f32.gmra.mxu0 %v2187
        %v2249 = vpop.f32.mrf.mxu0
        %v2250 = vadd.f32 %v2153, %v2249
        %2251 = vmatmul.f32.gmra.mxu0 %v2189
        %v2252 = vpop.f32.mrf.mxu0
        %v2253 = vadd.f32 %v2156, %v2252
        %2254 = vmatmul.f32.gmra.mxu0 %v2191
        %v2255 = vpop.f32.mrf.mxu0
        %v2256 = vadd.f32 %v2159, %v2255
        %2257 = vdwg.mxu0
        %v2258 = vsel %vm2047, 0.0, 0
        %2260 = vmatpush.msra.mxu0 0.0
        %2261 = vmatpush.msra.mxu0 0.0
        %2262 = vmatpush.msra.mxu0 0.0
        %2263 = vmatpush.msra.mxu0 0.0
        %2264 = vmatpush.msra.mxu0 0.0
        %2265 = vmatpush.msra.mxu0 0.0
        %2266 = vmatpush.msra.mxu0 0.0
        %2267 = vmatpush.msra.mxu0 0.0
        %2268 = vmatpush.msra.mxu0 0.0
        %2269 = vmatpush.msra.mxu0 0.0
        %2270 = vmatpush.msra.mxu0 0.0
        %2271 = vmatpush.msra.mxu0 0.0
        %2272 = vmatpush.msra.mxu0 0.0
        %2273 = vmatpush.msra.mxu0 0.0
        %2274 = vmatpush.msra.mxu0 0.0
        %2275 = vmatpush.msra.mxu0 %v449
        %2276 = vmatmul.f32.gmra.mxu0 %v2163
        %v2277 = vpop.f32.mrf.mxu0
        %v2278 = vadd.f32 0.0, %v2277
        %2279 = vmatmul.f32.gmra.mxu0 %v2165
        %v2280 = vpop.f32.mrf.mxu0
        %v2281 = vadd.f32 0.0, %v2280
        %2282 = vmatmul.f32.gmra.mxu0 %v2167
        %v2283 = vpop.f32.mrf.mxu0
        %v2284 = vadd.f32 0.0, %v2283
        %2285 = vmatmul.f32.gmra.mxu0 %v2169
        %v2286 = vpop.f32.mrf.mxu0
        %v2287 = vadd.f32 0.0, %v2286
        %2288 = vmatmul.f32.gmra.mxu0 %v2171
        %v2289 = vpop.f32.mrf.mxu0
        %v2290 = vadd.f32 0.0, %v2289
        %2291 = vmatmul.f32.gmra.mxu0 %v2173
        %v2292 = vpop.f32.mrf.mxu0
        %v2293 = vadd.f32 0.0, %v2292
        %2294 = vmatmul.f32.gmra.mxu0 %v2175
        %v2295 = vpop.f32.mrf.mxu0
        %v2296 = vadd.f32 0.0, %v2295
        %2297 = vmatmul.f32.gmra.mxu0 %v2177
        %v2298 = vpop.f32.mrf.mxu0
        %v2299 = vadd.f32 0.0, %v2298
        %2300 = vmatmul.f32.gmra.mxu0 %v2179
        %v2301 = vpop.f32.mrf.mxu0
        %v2302 = vadd.f32 0.0, %v2301
        %2303 = vmatmul.f32.gmra.mxu0 %v2181
        %v2304 = vpop.f32.mrf.mxu0
        %v2305 = vadd.f32 0.0, %v2304
        %2306 = vmatmul.f32.gmra.mxu0 %v2183
        %v2307 = vpop.f32.mrf.mxu0
        %v2308 = vadd.f32 0.0, %v2307
        %2309 = vmatmul.f32.gmra.mxu0 %v2185
        %v2310 = vpop.f32.mrf.mxu0
        %v2311 = vadd.f32 0.0, %v2310
        %2312 = vmatmul.f32.gmra.mxu0 %v2187
        %v2313 = vpop.f32.mrf.mxu0
        %v2314 = vadd.f32 0.0, %v2313
        %2315 = vmatmul.f32.gmra.mxu0 %v2189
        %v2316 = vpop.f32.mrf.mxu0
        %v2317 = vadd.f32 0.0, %v2316
        %2318 = vmatmul.f32.gmra.mxu0 %v2191
        %v2319 = vpop.f32.mrf.mxu0
        %v2320 = vadd.f32 0.0, %v2319
        %2321 = vmatmul.f32.gmra.mxu0 %v2258
        %v2322 = vpop.f32.mrf.mxu0
        %v2323 = vadd.f32 0.0, %v2322
        %2324 = vdwg.mxu0
        %v2325 = vadd.f32 %v2211, %v2278
        %v2326 = vadd.f32 %v2214, %v2281
        %v2327 = vadd.f32 %v2217, %v2284
        %v2328 = vadd.f32 %v2220, %v2287
        %v2329 = vadd.f32 %v2223, %v2290
        %v2330 = vadd.f32 %v2226, %v2293
        %v2331 = vadd.f32 %v2229, %v2296
        %v2332 = vadd.f32 %v2232, %v2299
        %v2333 = vadd.f32 %v2235, %v2302
        %v2334 = vadd.f32 %v2238, %v2305
        %v2335 = vadd.f32 %v2241, %v2308
        %v2336 = vadd.f32 %v2244, %v2311
        %v2337 = vadd.f32 %v2247, %v2314
        %v2338 = vadd.f32 %v2250, %v2317
        %v2339 = vadd.f32 %v2253, %v2320
        %v2340 = vadd.f32 %v2256, %v2323
        %2341 = vmatpush.msra.mxu0 0.0
        %2342 = vmatpush.msra.mxu0 0.0
        %2343 = vmatpush.msra.mxu0 0.0
        %2344 = vmatpush.msra.mxu0 0.0
        %2345 = vmatpush.msra.mxu0 0.0
        %2346 = vmatpush.msra.mxu0 0.0
        %2347 = vmatpush.msra.mxu0 0.0
        %2348 = vmatpush.msra.mxu0 0.0
        %2349 = vmatpush.msra.mxu0 0.0
        %2350 = vmatpush.msra.mxu0 0.0
        %2351 = vmatpush.msra.mxu0 0.0
        %2352 = vmatpush.msra.mxu0 0.0
        %2353 = vmatpush.msra.mxu0 0.0
        %2354 = vmatpush.msra.mxu0 0.0
        %2355 = vmatpush.msra.mxu0 0.0
        %2356 = vmatpush.msra.mxu0 %v450
        %2357 = vmatmul.f32.gmra.mxu0 %v2052
        %v2358 = vpop.f32.mrf.mxu0
        %v2359 = vadd.f32 0.0, %v2358
        %2360 = vmatmul.f32.gmra.mxu0 %v2055
        %v2361 = vpop.f32.mrf.mxu0
        %v2362 = vadd.f32 0.0, %v2361
        %2363 = vmatmul.f32.gmra.mxu0 %v2058
        %v2364 = vpop.f32.mrf.mxu0
        %v2365 = vadd.f32 0.0, %v2364
        %2366 = vmatmul.f32.gmra.mxu0 %v2061
        %v2367 = vpop.f32.mrf.mxu0
        %v2368 = vadd.f32 0.0, %v2367
        %2369 = vmatmul.f32.gmra.mxu0 %v2064
        %v2370 = vpop.f32.mrf.mxu0
        %v2371 = vadd.f32 0.0, %v2370
        %2372 = vmatmul.f32.gmra.mxu0 %v2067
        %v2373 = vpop.f32.mrf.mxu0
        %v2374 = vadd.f32 0.0, %v2373
        %2375 = vmatmul.f32.gmra.mxu0 %v2070
        %v2376 = vpop.f32.mrf.mxu0
        %v2377 = vadd.f32 0.0, %v2376
        %2378 = vmatmul.f32.gmra.mxu0 %v2073
        %v2379 = vpop.f32.mrf.mxu0
        %v2380 = vadd.f32 0.0, %v2379
        %2381 = vmatmul.f32.gmra.mxu0 %v2076
        %v2382 = vpop.f32.mrf.mxu0
        %v2383 = vadd.f32 0.0, %v2382
        %2384 = vmatmul.f32.gmra.mxu0 %v2079
        %v2385 = vpop.f32.mrf.mxu0
        %v2386 = vadd.f32 0.0, %v2385
        %2387 = vmatmul.f32.gmra.mxu0 %v2082
        %v2388 = vpop.f32.mrf.mxu0
        %v2389 = vadd.f32 0.0, %v2388
        %2390 = vmatmul.f32.gmra.mxu0 %v2085
        %v2391 = vpop.f32.mrf.mxu0
        %v2392 = vadd.f32 0.0, %v2391
        %2393 = vmatmul.f32.gmra.mxu0 %v2088
        %v2394 = vpop.f32.mrf.mxu0
        %v2395 = vadd.f32 0.0, %v2394
        %2396 = vmatmul.f32.gmra.mxu0 %v2091
        %v2397 = vpop.f32.mrf.mxu0
        %v2398 = vadd.f32 0.0, %v2397
        %2399 = vmatmul.f32.gmra.mxu0 %v2094
        %v2400 = vpop.f32.mrf.mxu0
        %v2401 = vadd.f32 0.0, %v2400
        %2402 = vmatmul.f32.gmra.mxu0 %v2258
        %v2403 = vpop.f32.mrf.mxu0
        %v2404 = vadd.f32 0.0, %v2403
        %2405 = vdwg.mxu0
        %v2406 = vadd.f32 %v2325, %v2359
        %v2407 = vadd.f32 %v2326, %v2362
        %v2408 = vadd.f32 %v2327, %v2365
        %v2409 = vadd.f32 %v2328, %v2368
        %v2410 = vadd.f32 %v2329, %v2371
        %v2411 = vadd.f32 %v2330, %v2374
        %v2412 = vadd.f32 %v2331, %v2377
        %v2413 = vadd.f32 %v2332, %v2380
        %v2414 = vadd.f32 %v2333, %v2383
        %v2415 = vadd.f32 %v2334, %v2386
        %v2416 = vadd.f32 %v2335, %v2389
        %v2417 = vadd.f32 %v2336, %v2392
        %v2418 = vadd.f32 %v2337, %v2395
        %v2419 = vadd.f32 %v2338, %v2398
        %v2420 = vadd.f32 %v2339, %v2401
        %v2421 = vadd.f32 %v2340, %v2404
        %v2423 = vsel %vm2047, %v2031, 0
        %v2426 = vsel %vm2047, %v2032, 0
        %v2429 = vsel %vm2047, %v2033, 0
        %v2432 = vsel %vm2047, %v2034, 0
        %v2435 = vsel %vm2047, %v2035, 0
        %v2438 = vsel %vm2047, %v2036, 0
        %v2441 = vsel %vm2047, %v2037, 0
        %v2444 = vsel %vm2047, %v2038, 0
        %v2447 = vsel %vm2047, %v2039, 0
        %v2450 = vsel %vm2047, %v2040, 0
        %v2453 = vsel %vm2047, %v2041, 0
        %v2456 = vsel %vm2047, %v2042, 0
        %v2459 = vsel %vm2047, %v2043, 0
        %v2462 = vsel %vm2047, %v2044, 0
        %v2465 = vsel %vm2047, %v2045, 0
        %v2468 = vsel %vm2047, %v2046, 0
        %2470 = vmatpush.msra.mxu0 0.0
        %2471 = vmatpush.msra.mxu0 0.0
        %2472 = vmatpush.msra.mxu0 0.0
        %2473 = vmatpush.msra.mxu0 0.0
        %2474 = vmatpush.msra.mxu0 0.0
        %2475 = vmatpush.msra.mxu0 0.0
        %2476 = vmatpush.msra.mxu0 0.0
        %2477 = vmatpush.msra.mxu0 0.0
        %2478 = vmatpush.msra.mxu0 0.0
        %2479 = vmatpush.msra.mxu0 0.0
        %2480 = vmatpush.msra.mxu0 0.0
        %2481 = vmatpush.msra.mxu0 0.0
        %2482 = vmatpush.msra.mxu0 0.0
        %2483 = vmatpush.msra.mxu0 0.0
        %2484 = vmatpush.msra.mxu0 0.0
        %2485 = vmatpush.msra.mxu0 %v448
        %2486 = vmatmul.f32.gmra.mxu0 %v2423
        %v2487 = vpop.f32.mrf.mxu0
        %v2488 = vadd.f32 0.0, %v2487
        %2489 = vmatmul.f32.gmra.mxu0 %v2426
        %v2490 = vpop.f32.mrf.mxu0
        %v2491 = vadd.f32 0.0, %v2490
        %2492 = vmatmul.f32.gmra.mxu0 %v2429
        %v2493 = vpop.f32.mrf.mxu0
        %v2494 = vadd.f32 0.0, %v2493
        %2495 = vmatmul.f32.gmra.mxu0 %v2432
        %v2496 = vpop.f32.mrf.mxu0
        %v2497 = vadd.f32 0.0, %v2496
        %2498 = vmatmul.f32.gmra.mxu0 %v2435
        %v2499 = vpop.f32.mrf.mxu0
        %v2500 = vadd.f32 0.0, %v2499
        %2501 = vmatmul.f32.gmra.mxu0 %v2438
        %v2502 = vpop.f32.mrf.mxu0
        %v2503 = vadd.f32 0.0, %v2502
        %2504 = vmatmul.f32.gmra.mxu0 %v2441
        %v2505 = vpop.f32.mrf.mxu0
        %v2506 = vadd.f32 0.0, %v2505
        %2507 = vmatmul.f32.gmra.mxu0 %v2444
        %v2508 = vpop.f32.mrf.mxu0
        %v2509 = vadd.f32 0.0, %v2508
        %2510 = vmatmul.f32.gmra.mxu0 %v2447
        %v2511 = vpop.f32.mrf.mxu0
        %v2512 = vadd.f32 0.0, %v2511
        %2513 = vmatmul.f32.gmra.mxu0 %v2450
        %v2514 = vpop.f32.mrf.mxu0
        %v2515 = vadd.f32 0.0, %v2514
        %2516 = vmatmul.f32.gmra.mxu0 %v2453
        %v2517 = vpop.f32.mrf.mxu0
        %v2518 = vadd.f32 0.0, %v2517
        %2519 = vmatmul.f32.gmra.mxu0 %v2456
        %v2520 = vpop.f32.mrf.mxu0
        %v2521 = vadd.f32 0.0, %v2520
        %2522 = vmatmul.f32.gmra.mxu0 %v2459
        %v2523 = vpop.f32.mrf.mxu0
        %v2524 = vadd.f32 0.0, %v2523
        %2525 = vmatmul.f32.gmra.mxu0 %v2462
        %v2526 = vpop.f32.mrf.mxu0
        %v2527 = vadd.f32 0.0, %v2526
        %2528 = vmatmul.f32.gmra.mxu0 %v2465
        %v2529 = vpop.f32.mrf.mxu0
        %v2530 = vadd.f32 0.0, %v2529
        %2531 = vmatmul.f32.gmra.mxu0 %v2468
        %v2532 = vpop.f32.mrf.mxu0
        %v2533 = vadd.f32 0.0, %v2532
        %2534 = vdwg.mxu0
        %2535 = vmatpush.msra.mxu0 0.0
        %2536 = vmatpush.msra.mxu0 0.0
        %2537 = vmatpush.msra.mxu0 0.0
        %2538 = vmatpush.msra.mxu0 0.0
        %2539 = vmatpush.msra.mxu0 0.0
        %2540 = vmatpush.msra.mxu0 0.0
        %2541 = vmatpush.msra.mxu0 0.0
        %2542 = vmatpush.msra.mxu0 0.0
        %2543 = vmatpush.msra.mxu0 0.0
        %2544 = vmatpush.msra.mxu0 0.0
        %2545 = vmatpush.msra.mxu0 0.0
        %2546 = vmatpush.msra.mxu0 0.0
        %2547 = vmatpush.msra.mxu0 0.0
        %2548 = vmatpush.msra.mxu0 0.0
        %2549 = vmatpush.msra.mxu0 0.0
        %2550 = vmatpush.msra.mxu0 %v447
        %2551 = vmatmul.f32.gmra.mxu0 %v2049
        %v2552 = vpop.f32.mrf.mxu0
        %v2553 = vadd.f32 %v2488, %v2552
        %2554 = vmatmul.f32.gmra.mxu0 %v2052
        %v2555 = vpop.f32.mrf.mxu0
        %v2556 = vadd.f32 %v2491, %v2555
        %2557 = vmatmul.f32.gmra.mxu0 %v2055
        %v2558 = vpop.f32.mrf.mxu0
        %v2559 = vadd.f32 %v2494, %v2558
        %2560 = vmatmul.f32.gmra.mxu0 %v2058
        %v2561 = vpop.f32.mrf.mxu0
        %v2562 = vadd.f32 %v2497, %v2561
        %2563 = vmatmul.f32.gmra.mxu0 %v2061
        %v2564 = vpop.f32.mrf.mxu0
        %v2565 = vadd.f32 %v2500, %v2564
        %2566 = vmatmul.f32.gmra.mxu0 %v2064
        %v2567 = vpop.f32.mrf.mxu0
        %v2568 = vadd.f32 %v2503, %v2567
        %2569 = vmatmul.f32.gmra.mxu0 %v2067
        %v2570 = vpop.f32.mrf.mxu0
        %v2571 = vadd.f32 %v2506, %v2570
        %2572 = vmatmul.f32.gmra.mxu0 %v2070
        %v2573 = vpop.f32.mrf.mxu0
        %v2574 = vadd.f32 %v2509, %v2573
        %2575 = vmatmul.f32.gmra.mxu0 %v2073
        %v2576 = vpop.f32.mrf.mxu0
        %v2577 = vadd.f32 %v2512, %v2576
        %2578 = vmatmul.f32.gmra.mxu0 %v2076
        %v2579 = vpop.f32.mrf.mxu0
        %v2580 = vadd.f32 %v2515, %v2579
        %2581 = vmatmul.f32.gmra.mxu0 %v2079
        %v2582 = vpop.f32.mrf.mxu0
        %v2583 = vadd.f32 %v2518, %v2582
        %2584 = vmatmul.f32.gmra.mxu0 %v2082
        %v2585 = vpop.f32.mrf.mxu0
        %v2586 = vadd.f32 %v2521, %v2585
        %2587 = vmatmul.f32.gmra.mxu0 %v2085
        %v2588 = vpop.f32.mrf.mxu0
        %v2589 = vadd.f32 %v2524, %v2588
        %2590 = vmatmul.f32.gmra.mxu0 %v2088
        %v2591 = vpop.f32.mrf.mxu0
        %v2592 = vadd.f32 %v2527, %v2591
        %2593 = vmatmul.f32.gmra.mxu0 %v2091
        %v2594 = vpop.f32.mrf.mxu0
        %v2595 = vadd.f32 %v2530, %v2594
        %2596 = vmatmul.f32.gmra.mxu0 %v2094
        %v2597 = vpop.f32.mrf.mxu0
        %v2598 = vadd.f32 %v2533, %v2597
        %2599 = vdwg.mxu0
        %2600 = vmatpush.msra.mxu0 0.0
        %2601 = vmatpush.msra.mxu0 0.0
        %2602 = vmatpush.msra.mxu0 0.0
        %2603 = vmatpush.msra.mxu0 0.0
        %2604 = vmatpush.msra.mxu0 0.0
        %2605 = vmatpush.msra.mxu0 0.0
        %2606 = vmatpush.msra.mxu0 0.0
        %2607 = vmatpush.msra.mxu0 0.0
        %2608 = vmatpush.msra.mxu0 0.0
        %2609 = vmatpush.msra.mxu0 0.0
        %2610 = vmatpush.msra.mxu0 0.0
        %2611 = vmatpush.msra.mxu0 0.0
        %2612 = vmatpush.msra.mxu0 0.0
        %2613 = vmatpush.msra.mxu0 0.0
        %2614 = vmatpush.msra.mxu0 0.0
        %2615 = vmatpush.msra.mxu0 %v449
        %2616 = vmatmul.f32.gmra.mxu0 %v2052
        %v2617 = vpop.f32.mrf.mxu0
        %v2618 = vadd.f32 0.0, %v2617
        %2619 = vmatmul.f32.gmra.mxu0 %v2055
        %v2620 = vpop.f32.mrf.mxu0
        %v2621 = vadd.f32 0.0, %v2620
        %2622 = vmatmul.f32.gmra.mxu0 %v2058
        %v2623 = vpop.f32.mrf.mxu0
        %v2624 = vadd.f32 0.0, %v2623
        %2625 = vmatmul.f32.gmra.mxu0 %v2061
        %v2626 = vpop.f32.mrf.mxu0
        %v2627 = vadd.f32 0.0, %v2626
        %2628 = vmatmul.f32.gmra.mxu0 %v2064
        %v2629 = vpop.f32.mrf.mxu0
        %v2630 = vadd.f32 0.0, %v2629
        %2631 = vmatmul.f32.gmra.mxu0 %v2067
        %v2632 = vpop.f32.mrf.mxu0
        %v2633 = vadd.f32 0.0, %v2632
        %2634 = vmatmul.f32.gmra.mxu0 %v2070
        %v2635 = vpop.f32.mrf.mxu0
        %v2636 = vadd.f32 0.0, %v2635
        %2637 = vmatmul.f32.gmra.mxu0 %v2073
        %v2638 = vpop.f32.mrf.mxu0
        %v2639 = vadd.f32 0.0, %v2638
        %2640 = vmatmul.f32.gmra.mxu0 %v2076
        %v2641 = vpop.f32.mrf.mxu0
        %v2642 = vadd.f32 0.0, %v2641
        %2643 = vmatmul.f32.gmra.mxu0 %v2079
        %v2644 = vpop.f32.mrf.mxu0
        %v2645 = vadd.f32 0.0, %v2644
        %2646 = vmatmul.f32.gmra.mxu0 %v2082
        %v2647 = vpop.f32.mrf.mxu0
        %v2648 = vadd.f32 0.0, %v2647
        %2649 = vmatmul.f32.gmra.mxu0 %v2085
        %v2650 = vpop.f32.mrf.mxu0
        %v2651 = vadd.f32 0.0, %v2650
        %2652 = vmatmul.f32.gmra.mxu0 %v2088
        %v2653 = vpop.f32.mrf.mxu0
        %v2654 = vadd.f32 0.0, %v2653
        %2655 = vmatmul.f32.gmra.mxu0 %v2091
        %v2656 = vpop.f32.mrf.mxu0
        %v2657 = vadd.f32 0.0, %v2656
        %2658 = vmatmul.f32.gmra.mxu0 %v2094
        %v2659 = vpop.f32.mrf.mxu0
        %v2660 = vadd.f32 0.0, %v2659
        %2661 = vmatmul.f32.gmra.mxu0 %v2258
        %v2662 = vpop.f32.mrf.mxu0
        %v2663 = vadd.f32 0.0, %v2662
        %2664 = vdwg.mxu0
        %v2665 = vadd.f32 %v2553, %v2618
        %v2666 = vadd.f32 %v2556, %v2621
        %v2667 = vadd.f32 %v2559, %v2624
        %v2668 = vadd.f32 %v2562, %v2627
        %v2669 = vadd.f32 %v2565, %v2630
        %v2670 = vadd.f32 %v2568, %v2633
        %v2671 = vadd.f32 %v2571, %v2636
        %v2672 = vadd.f32 %v2574, %v2639
        %v2673 = vadd.f32 %v2577, %v2642
        %v2674 = vadd.f32 %v2580, %v2645
        %v2675 = vadd.f32 %v2583, %v2648
        %v2676 = vadd.f32 %v2586, %v2651
        %v2677 = vadd.f32 %v2589, %v2654
        %v2678 = vadd.f32 %v2592, %v2657
        %v2679 = vadd.f32 %v2595, %v2660
        %v2680 = vadd.f32 %v2598, %v2663
        %2681 = vmatpush.msra.mxu0 0.0
        %2682 = vmatpush.msra.mxu0 0.0
        %2683 = vmatpush.msra.mxu0 0.0
        %2684 = vmatpush.msra.mxu0 0.0
        %2685 = vmatpush.msra.mxu0 0.0
        %2686 = vmatpush.msra.mxu0 0.0
        %2687 = vmatpush.msra.mxu0 0.0
        %2688 = vmatpush.msra.mxu0 0.0
        %2689 = vmatpush.msra.mxu0 0.0
        %2690 = vmatpush.msra.mxu0 0.0
        %2691 = vmatpush.msra.mxu0 0.0
        %2692 = vmatpush.msra.mxu0 0.0
        %2693 = vmatpush.msra.mxu0 0.0
        %2694 = vmatpush.msra.mxu0 0.0
        %2695 = vmatpush.msra.mxu0 0.0
        %2696 = vmatpush.msra.mxu0 %v450
        %2697 = vmatmul.f32.gmra.mxu0 %v2426
        %v2698 = vpop.f32.mrf.mxu0
        %v2699 = vadd.f32 0.0, %v2698
        %2700 = vmatmul.f32.gmra.mxu0 %v2429
        %v2701 = vpop.f32.mrf.mxu0
        %v2702 = vadd.f32 0.0, %v2701
        %2703 = vmatmul.f32.gmra.mxu0 %v2432
        %v2704 = vpop.f32.mrf.mxu0
        %v2705 = vadd.f32 0.0, %v2704
        %2706 = vmatmul.f32.gmra.mxu0 %v2435
        %v2707 = vpop.f32.mrf.mxu0
        %v2708 = vadd.f32 0.0, %v2707
        %2709 = vmatmul.f32.gmra.mxu0 %v2438
        %v2710 = vpop.f32.mrf.mxu0
        %v2711 = vadd.f32 0.0, %v2710
        %2712 = vmatmul.f32.gmra.mxu0 %v2441
        %v2713 = vpop.f32.mrf.mxu0
        %v2714 = vadd.f32 0.0, %v2713
        %2715 = vmatmul.f32.gmra.mxu0 %v2444
        %v2716 = vpop.f32.mrf.mxu0
        %v2717 = vadd.f32 0.0, %v2716
        %2718 = vmatmul.f32.gmra.mxu0 %v2447
        %v2719 = vpop.f32.mrf.mxu0
        %v2720 = vadd.f32 0.0, %v2719
        %2721 = vmatmul.f32.gmra.mxu0 %v2450
        %v2722 = vpop.f32.mrf.mxu0
        %v2723 = vadd.f32 0.0, %v2722
        %2724 = vmatmul.f32.gmra.mxu0 %v2453
        %v2725 = vpop.f32.mrf.mxu0
        %v2726 = vadd.f32 0.0, %v2725
        %2727 = vmatmul.f32.gmra.mxu0 %v2456
        %v2728 = vpop.f32.mrf.mxu0
        %v2729 = vadd.f32 0.0, %v2728
        %2730 = vmatmul.f32.gmra.mxu0 %v2459
        %v2731 = vpop.f32.mrf.mxu0
        %v2732 = vadd.f32 0.0, %v2731
        %2733 = vmatmul.f32.gmra.mxu0 %v2462
        %v2734 = vpop.f32.mrf.mxu0
        %v2735 = vadd.f32 0.0, %v2734
        %2736 = vmatmul.f32.gmra.mxu0 %v2465
        %v2737 = vpop.f32.mrf.mxu0
        %v2738 = vadd.f32 0.0, %v2737
        %2739 = vmatmul.f32.gmra.mxu0 %v2468
        %v2740 = vpop.f32.mrf.mxu0
        %v2741 = vadd.f32 0.0, %v2740
        %2742 = vmatmul.f32.gmra.mxu0 %v2258
        %v2743 = vpop.f32.mrf.mxu0
        %v2744 = vadd.f32 0.0, %v2743
        %2745 = vdwg.mxu0
        %v2746 = vadd.f32 %v2665, %v2699
        %v2747 = vadd.f32 %v2666, %v2702
        %v2748 = vadd.f32 %v2667, %v2705
        %v2749 = vadd.f32 %v2668, %v2708
        %v2750 = vadd.f32 %v2669, %v2711
        %v2751 = vadd.f32 %v2670, %v2714
        %v2752 = vadd.f32 %v2671, %v2717
        %v2753 = vadd.f32 %v2672, %v2720
        %v2754 = vadd.f32 %v2673, %v2723
        %v2755 = vadd.f32 %v2674, %v2726
        %v2756 = vadd.f32 %v2675, %v2729
        %v2757 = vadd.f32 %v2676, %v2732
        %v2758 = vadd.f32 %v2677, %v2735
        %v2759 = vadd.f32 %v2678, %v2738
        %v2760 = vadd.f32 %v2679, %v2741
        %v2761 = vadd.f32 %v2680, %v2744
        %v2763 = vperm.slane %v451, 0
        %v2765 = vadd.f32 %v2406, %v2763
        %v2766 = vadd.f32 %v2407, %v2763
        %v2767 = vadd.f32 %v2408, %v2763
        %v2768 = vadd.f32 %v2409, %v2763
        %v2769 = vadd.f32 %v2410, %v2763
        %v2770 = vadd.f32 %v2411, %v2763
        %v2771 = vadd.f32 %v2412, %v2763
        %v2772 = vadd.f32 %v2413, %v2763
        %v2773 = vadd.f32 %v2414, %v2763
        %v2774 = vadd.f32 %v2415, %v2763
        %v2775 = vadd.f32 %v2416, %v2763
        %v2776 = vadd.f32 %v2417, %v2763
        %v2777 = vadd.f32 %v2418, %v2763
        %v2778 = vadd.f32 %v2419, %v2763
        %v2779 = vadd.f32 %v2420, %v2763
        %v2780 = vadd.f32 %v2421, %v2763
        %v2781 = vmax.f32 %v2765, 0.0
        %v2782 = vmax.f32 %v2766, 0.0
        %v2783 = vmax.f32 %v2767, 0.0
        %v2784 = vmax.f32 %v2768, 0.0
        %v2785 = vmax.f32 %v2769, 0.0
        %v2786 = vmax.f32 %v2770, 0.0
        %v2787 = vmax.f32 %v2771, 0.0
        %v2788 = vmax.f32 %v2772, 0.0
        %v2789 = vmax.f32 %v2773, 0.0
        %v2790 = vmax.f32 %v2774, 0.0
        %v2791 = vmax.f32 %v2775, 0.0
        %v2792 = vmax.f32 %v2776, 0.0
        %v2793 = vmax.f32 %v2777, 0.0
        %v2794 = vmax.f32 %v2778, 0.0
        %v2795 = vmax.f32 %v2779, 0.0
        %v2796 = vmax.f32 %v2780, 0.0
        %v2797 = vadd.f32 %v2746, %v2763
        %v2798 = vadd.f32 %v2747, %v2763
        %v2799 = vadd.f32 %v2748, %v2763
        %v2800 = vadd.f32 %v2749, %v2763
        %v2801 = vadd.f32 %v2750, %v2763
        %v2802 = vadd.f32 %v2751, %v2763
        %v2803 = vadd.f32 %v2752, %v2763
        %v2804 = vadd.f32 %v2753, %v2763
        %v2805 = vadd.f32 %v2754, %v2763
        %v2806 = vadd.f32 %v2755, %v2763
        %v2807 = vadd.f32 %v2756, %v2763
        %v2808 = vadd.f32 %v2757, %v2763
        %v2809 = vadd.f32 %v2758, %v2763
        %v2810 = vadd.f32 %v2759, %v2763
        %v2811 = vadd.f32 %v2760, %v2763
        %v2812 = vadd.f32 %v2761, %v2763
        %v2813 = vmax.f32 %v2797, 0.0
        %v2814 = vmax.f32 %v2798, 0.0
        %v2815 = vmax.f32 %v2799, 0.0
        %v2816 = vmax.f32 %v2800, 0.0
        %v2817 = vmax.f32 %v2801, 0.0
        %v2818 = vmax.f32 %v2802, 0.0
        %v2819 = vmax.f32 %v2803, 0.0
        %v2820 = vmax.f32 %v2804, 0.0
        %v2821 = vmax.f32 %v2805, 0.0
        %v2822 = vmax.f32 %v2806, 0.0
        %v2823 = vmax.f32 %v2807, 0.0
        %v2824 = vmax.f32 %v2808, 0.0
        %v2825 = vmax.f32 %v2809, 0.0
        %v2826 = vmax.f32 %v2810, 0.0
        %v2827 = vmax.f32 %v2811, 0.0
        %v2828 = vmax.f32 %v2812, 0.0
        %v2829 = vmax.f32 %v762, %v1120
        %v2830 = vmax.f32 %v763, %v1121
        %v2831 = vmax.f32 %v764, %v1122
        %v2832 = vmax.f32 %v765, %v1123
        %v2833 = vmax.f32 %v766, %v1124
        %v2834 = vmax.f32 %v767, %v1125
        %v2835 = vmax.f32 %v768, %v1126
        %v2836 = vmax.f32 %v769, %v1127
        %v2837 = vmax.f32 %v770, %v1128
        %v2838 = vmax.f32 %v771, %v1129
        %v2839 = vmax.f32 %v772, %v1130
        %v2840 = vmax.f32 %v773, %v1131
        %v2841 = vmax.f32 %v774, %v1132
        %v2842 = vmax.f32 %v775, %v1133
        %v2843 = vmax.f32 %v776, %v1134
        %v2844 = vmax.f32 %v777, %v1135
        %v2845 = vmax.f32 %v2829, %v2830
        %v2846 = vmax.f32 %v2830, %v2831
        %v2847 = vmax.f32 %v2831, %v2832
        %v2848 = vmax.f32 %v2832, %v2833
        %v2849 = vmax.f32 %v2833, %v2834
        %v2850 = vmax.f32 %v2834, %v2835
        %v2851 = vmax.f32 %v2835, %v2836
        %v2852 = vmax.f32 %v2836, %v2837
        %v2853 = vmax.f32 %v2837, %v2838
        %v2854 = vmax.f32 %v2838, %v2839
        %v2855 = vmax.f32 %v2839, %v2840
        %v2856 = vmax.f32 %v2840, %v2841
        %v2857 = vmax.f32 %v2841, %v2842
        %v2858 = vmax.f32 %v2842, %v2843
        %v2859 = vmax.f32 %v2843, %v2844
        %v2860 = vmax.f32 %v2844, 0.0
        %v2861 = vmax.f32 %v1120, %v1184
        %v2862 = vmax.f32 %v1121, %v1185
        %v2863 = vmax.f32 %v1122, %v1186
        %v2864 = vmax.f32 %v1123, %v1187
        %v2865 = vmax.f32 %v1124, %v1188
        %v2866 = vmax.f32 %v1125, %v1189
        %v2867 = vmax.f32 %v1126, %v1190
        %v2868 = vmax.f32 %v1127, %v1191
        %v2869 = vmax.f32 %v1128, %v1192
        %v2870 = vmax.f32 %v1129, %v1193
        %v2871 = vmax.f32 %v1130, %v1194
        %v2872 = vmax.f32 %v1131, %v1195
        %v2873 = vmax.f32 %v1132, %v1196
        %v2874 = vmax.f32 %v1133, %v1197
        %v2875 = vmax.f32 %v1134, %v1198
        %v2876 = vmax.f32 %v1135, %v1199
        %v2877 = vmax.f32 %v2861, %v2862
        %v2878 = vmax.f32 %v2862, %v2863
        %v2879 = vmax.f32 %v2863, %v2864
        %v2880 = vmax.f32 %v2864, %v2865
        %v2881 = vmax.f32 %v2865, %v2866
        %v2882 = vmax.f32 %v2866, %v2867
        %v2883 = vmax.f32 %v2867, %v2868
        %v2884 = vmax.f32 %v2868, %v2869
        %v2885 = vmax.f32 %v2869, %v2870
        %v2886 = vmax.f32 %v2870, %v2871
        %v2887 = vmax.f32 %v2871, %v2872
        %v2888 = vmax.f32 %v2872, %v2873
        %v2889 = vmax.f32 %v2873, %v2874
        %v2890 = vmax.f32 %v2874, %v2875
        %v2891 = vmax.f32 %v2875, %v2876
        %v2892 = vmax.f32 %v2876, 0.0
        %v2901 = vrot.slane %v2878, 7
        %v2902 = vrot.slane %v2880, 7
        %v2903 = vrot.slane %v2882, 7
        %v2904 = vrot.slane %v2884, 7
        %v2905 = vrot.slane %v2886, 7
        %v2906 = vrot.slane %v2888, 7
        %v2907 = vrot.slane %v2890, 7
        %v2908 = vrot.slane %v2892, 7
        %vm2917 = vcmask 1040384
        %v2918 = vsel %vm2917, 0.0, %v2901
        %v2919 = vsel %vm2917, 0.0, %v2902
        %v2920 = vsel %vm2917, 0.0, %v2903
        %v2921 = vsel %vm2917, 0.0, %v2904
        %v2922 = vsel %vm2917, 0.0, %v2905
        %v2923 = vsel %vm2917, 0.0, %v2906
        %v2924 = vsel %vm2917, 0.0, %v2907
        %v2925 = vsel %vm2917, 0.0, %v2908
        %v2934 = vrot.slane %v2877, 7
        %v2935 = vrot.slane %v2879, 7
        %v2936 = vrot.slane %v2881, 7
        %v2937 = vrot.slane %v2883, 7
        %v2938 = vrot.slane %v2885, 7
        %v2939 = vrot.slane %v2887, 7
        %v2940 = vrot.slane %v2889, 7
        %v2941 = vrot.slane %v2891, 7
        %v2950 = vsel %vm2917, 0.0, %v2934
        %v2951 = vsel %vm2917, 0.0, %v2935
        %v2952 = vsel %vm2917, 0.0, %v2936
        %v2953 = vsel %vm2917, 0.0, %v2937
        %v2954 = vsel %vm2917, 0.0, %v2938
        %v2955 = vsel %vm2917, 0.0, %v2939
        %v2956 = vsel %vm2917, 0.0, %v2940
        %v2957 = vsel %vm2917, 0.0, %v2941
        %v2966 = vrot.slane %v2814, 7
        %v2967 = vrot.slane %v2816, 7
        %v2968 = vrot.slane %v2818, 7
        %v2969 = vrot.slane %v2820, 7
        %v2970 = vrot.slane %v2822, 7
        %v2971 = vrot.slane %v2824, 7
        %v2972 = vrot.slane %v2826, 7
        %v2973 = vrot.slane %v2828, 7
        %v2982 = vsel %vm2917, 0.0, %v2966
        %v2983 = vsel %vm2917, 0.0, %v2967
        %v2984 = vsel %vm2917, 0.0, %v2968
        %v2985 = vsel %vm2917, 0.0, %v2969
        %v2986 = vsel %vm2917, 0.0, %v2970
        %v2987 = vsel %vm2917, 0.0, %v2971
        %v2988 = vsel %vm2917, 0.0, %v2972
        %v2989 = vsel %vm2917, 0.0, %v2973
        %v2998 = vrot.slane %v2813, 7
        %v2999 = vrot.slane %v2815, 7
        %v3000 = vrot.slane %v2817, 7
        %v3001 = vrot.slane %v2819, 7
        %v3002 = vrot.slane %v2821, 7
        %v3003 = vrot.slane %v2823, 7
        %v3004 = vrot.slane %v2825, 7
        %v3005 = vrot.slane %v2827, 7
        %v3014 = vsel %vm2917, 0.0, %v2998
        %v3015 = vsel %vm2917, 0.0, %v2999
        %v3016 = vsel %vm2917, 0.0, %v3000
        %v3017 = vsel %vm2917, 0.0, %v3001
        %v3018 = vsel %vm2917, 0.0, %v3002
        %v3019 = vsel %vm2917, 0.0, %v3003
        %v3020 = vsel %vm2917, 0.0, %v3004
        %v3021 = vsel %vm2917, 0.0, %v3005
        %v3023 = vsel %vm1200, %v2982, 0
        %v3026 = vsel %vm1200, %v2983, 0
        %v3029 = vsel %vm1200, %v2984, 0
        %v3032 = vsel %vm1200, %v2985, 0
        %v3035 = vsel %vm1200, %v2986, 0
        %v3038 = vsel %vm1200, %v2987, 0
        %v3041 = vsel %vm1200, %v2988, 0
        %3043 = vmatpush.msra.mxu0 0.0
        %3044 = vmatpush.msra.mxu0 0.0
        %3045 = vmatpush.msra.mxu0 0.0
        %3046 = vmatpush.msra.mxu0 0.0
        %3047 = vmatpush.msra.mxu0 0.0
        %3048 = vmatpush.msra.mxu0 0.0
        %3049 = vmatpush.msra.mxu0 0.0
        %3050 = vmatpush.msra.mxu0 0.0
        %3051 = vmatpush.msra.mxu0 0.0
        %3052 = vmatpush.msra.mxu0 0.0
        %3053 = vmatpush.msra.mxu0 0.0
        %3054 = vmatpush.msra.mxu0 0.0
        %3055 = vmatpush.msra.mxu0 0.0
        %3056 = vmatpush.msra.mxu0 0.0
        %3057 = vmatpush.msra.mxu0 %v455
        %3058 = vmatpush.msra.mxu0 %v454
        %3059 = vmatmul.f32.gmra.mxu0 %v1412
        %v3060 = vpop.f32.mrf.mxu0
        %v3061 = vadd.f32 0.0, %v3060
        %3062 = vmatmul.f32.gmra.mxu0 %v3023
        %v3063 = vpop.f32.mrf.mxu0
        %v3064 = vadd.f32 0.0, %v3063
        %3065 = vmatmul.f32.gmra.mxu0 %v3026
        %v3066 = vpop.f32.mrf.mxu0
        %v3067 = vadd.f32 0.0, %v3066
        %3068 = vmatmul.f32.gmra.mxu0 %v3029
        %v3069 = vpop.f32.mrf.mxu0
        %v3070 = vadd.f32 0.0, %v3069
        %3071 = vmatmul.f32.gmra.mxu0 %v3032
        %v3072 = vpop.f32.mrf.mxu0
        %v3073 = vadd.f32 0.0, %v3072
        %3074 = vmatmul.f32.gmra.mxu0 %v3035
        %v3075 = vpop.f32.mrf.mxu0
        %v3076 = vadd.f32 0.0, %v3075
        %3077 = vmatmul.f32.gmra.mxu0 %v3038
        %v3078 = vpop.f32.mrf.mxu0
        %v3079 = vadd.f32 0.0, %v3078
        %3080 = vmatmul.f32.gmra.mxu0 %v3041
        %v3081 = vpop.f32.mrf.mxu0
        %v3082 = vadd.f32 0.0, %v3081
        %3083 = vdwg.mxu0
        %v3085 = vsel %vm1200, %v2918, 0
        %v3088 = vsel %vm1200, %v2919, 0
        %v3091 = vsel %vm1200, %v2920, 0
        %v3094 = vsel %vm1200, %v2921, 0
        %v3097 = vsel %vm1200, %v2922, 0
        %v3100 = vsel %vm1200, %v2923, 0
        %v3103 = vsel %vm1200, %v2924, 0
        %3105 = vmatpush.msra.mxu0 0.0
        %3106 = vmatpush.msra.mxu0 0.0
        %3107 = vmatpush.msra.mxu0 0.0
        %3108 = vmatpush.msra.mxu0 0.0
        %3109 = vmatpush.msra.mxu0 0.0
        %3110 = vmatpush.msra.mxu0 0.0
        %3111 = vmatpush.msra.mxu0 0.0
        %3112 = vmatpush.msra.mxu0 0.0
        %3113 = vmatpush.msra.mxu0 0.0
        %3114 = vmatpush.msra.mxu0 0.0
        %3115 = vmatpush.msra.mxu0 0.0
        %3116 = vmatpush.msra.mxu0 0.0
        %3117 = vmatpush.msra.mxu0 0.0
        %3118 = vmatpush.msra.mxu0 0.0
        %3119 = vmatpush.msra.mxu0 %v453
        %3120 = vmatpush.msra.mxu0 %v452
        %3121 = vmatmul.f32.gmra.mxu0 %v1412
        %v3122 = vpop.f32.mrf.mxu0
        %v3123 = vadd.f32 %v3061, %v3122
        %3124 = vmatmul.f32.gmra.mxu0 %v3085
        %v3125 = vpop.f32.mrf.mxu0
        %v3126 = vadd.f32 %v3064, %v3125
        %3127 = vmatmul.f32.gmra.mxu0 %v3088
        %v3128 = vpop.f32.mrf.mxu0
        %v3129 = vadd.f32 %v3067, %v3128
        %3130 = vmatmul.f32.gmra.mxu0 %v3091
        %v3131 = vpop.f32.mrf.mxu0
        %v3132 = vadd.f32 %v3070, %v3131
        %3133 = vmatmul.f32.gmra.mxu0 %v3094
        %v3134 = vpop.f32.mrf.mxu0
        %v3135 = vadd.f32 %v3073, %v3134
        %3136 = vmatmul.f32.gmra.mxu0 %v3097
        %v3137 = vpop.f32.mrf.mxu0
        %v3138 = vadd.f32 %v3076, %v3137
        %3139 = vmatmul.f32.gmra.mxu0 %v3100
        %v3140 = vpop.f32.mrf.mxu0
        %v3141 = vadd.f32 %v3079, %v3140
        %3142 = vmatmul.f32.gmra.mxu0 %v3103
        %v3143 = vpop.f32.mrf.mxu0
        %v3144 = vadd.f32 %v3082, %v3143
        %3145 = vdwg.mxu0
        %v3147 = vsel %vm1200, %v2846, 0
        %v3150 = vsel %vm1200, %v2848, 0
        %v3153 = vsel %vm1200, %v2850, 0
        %v3156 = vsel %vm1200, %v2852, 0
        %v3159 = vsel %vm1200, %v2854, 0
        %v3162 = vsel %vm1200, %v2856, 0
        %v3165 = vsel %vm1200, %v2858, 0
        %3167 = vmatpush.msra.mxu0 0.0
        %3168 = vmatpush.msra.mxu0 0.0
        %3169 = vmatpush.msra.mxu0 0.0
        %3170 = vmatpush.msra.mxu0 0.0
        %3171 = vmatpush.msra.mxu0 0.0
        %3172 = vmatpush.msra.mxu0 0.0
        %3173 = vmatpush.msra.mxu0 0.0
        %3174 = vmatpush.msra.mxu0 0.0
        %3175 = vmatpush.msra.mxu0 0.0
        %3176 = vmatpush.msra.mxu0 0.0
        %3177 = vmatpush.msra.mxu0 0.0
        %3178 = vmatpush.msra.mxu0 0.0
        %3179 = vmatpush.msra.mxu0 0.0
        %3180 = vmatpush.msra.mxu0 0.0
        %3181 = vmatpush.msra.mxu0 %v457
        %3182 = vmatpush.msra.mxu0 %v456
        %3183 = vmatmul.f32.gmra.mxu0 %v1412
        %v3184 = vpop.f32.mrf.mxu0
        %v3185 = vadd.f32 0.0, %v3184
        %3186 = vmatmul.f32.gmra.mxu0 %v3147
        %v3187 = vpop.f32.mrf.mxu0
        %v3188 = vadd.f32 0.0, %v3187
        %3189 = vmatmul.f32.gmra.mxu0 %v3150
        %v3190 = vpop.f32.mrf.mxu0
        %v3191 = vadd.f32 0.0, %v3190
        %3192 = vmatmul.f32.gmra.mxu0 %v3153
        %v3193 = vpop.f32.mrf.mxu0
        %v3194 = vadd.f32 0.0, %v3193
        %3195 = vmatmul.f32.gmra.mxu0 %v3156
        %v3196 = vpop.f32.mrf.mxu0
        %v3197 = vadd.f32 0.0, %v3196
        %3198 = vmatmul.f32.gmra.mxu0 %v3159
        %v3199 = vpop.f32.mrf.mxu0
        %v3200 = vadd.f32 0.0, %v3199
        %3201 = vmatmul.f32.gmra.mxu0 %v3162
        %v3202 = vpop.f32.mrf.mxu0
        %v3203 = vadd.f32 0.0, %v3202
        %3204 = vmatmul.f32.gmra.mxu0 %v3165
        %v3205 = vpop.f32.mrf.mxu0
        %v3206 = vadd.f32 0.0, %v3205
        %3207 = vdwg.mxu0
        %v3208 = vadd.f32 %v3123, %v3185
        %v3209 = vadd.f32 %v3126, %v3188
        %v3210 = vadd.f32 %v3129, %v3191
        %v3211 = vadd.f32 %v3132, %v3194
        %v3212 = vadd.f32 %v3135, %v3197
        %v3213 = vadd.f32 %v3138, %v3200
        %v3214 = vadd.f32 %v3141, %v3203
        %v3215 = vadd.f32 %v3144, %v3206
        %v3217 = vsel %vm1200, %v2782, 0
        %v3220 = vsel %vm1200, %v2784, 0
        %v3223 = vsel %vm1200, %v2786, 0
        %v3226 = vsel %vm1200, %v2788, 0
        %v3229 = vsel %vm1200, %v2790, 0
        %v3232 = vsel %vm1200, %v2792, 0
        %v3235 = vsel %vm1200, %v2794, 0
        %3237 = vmatpush.msra.mxu0 0.0
        %3238 = vmatpush.msra.mxu0 0.0
        %3239 = vmatpush.msra.mxu0 0.0
        %3240 = vmatpush.msra.mxu0 0.0
        %3241 = vmatpush.msra.mxu0 0.0
        %3242 = vmatpush.msra.mxu0 0.0
        %3243 = vmatpush.msra.mxu0 0.0
        %3244 = vmatpush.msra.mxu0 0.0
        %3245 = vmatpush.msra.mxu0 0.0
        %3246 = vmatpush.msra.mxu0 0.0
        %3247 = vmatpush.msra.mxu0 0.0
        %3248 = vmatpush.msra.mxu0 0.0
        %3249 = vmatpush.msra.mxu0 0.0
        %3250 = vmatpush.msra.mxu0 0.0
        %3251 = vmatpush.msra.mxu0 %v459
        %3252 = vmatpush.msra.mxu0 %v458
        %3253 = vmatmul.f32.gmra.mxu0 %v1412
        %v3254 = vpop.f32.mrf.mxu0
        %v3255 = vadd.f32 0.0, %v3254
        %3256 = vmatmul.f32.gmra.mxu0 %v3217
        %v3257 = vpop.f32.mrf.mxu0
        %v3258 = vadd.f32 0.0, %v3257
        %3259 = vmatmul.f32.gmra.mxu0 %v3220
        %v3260 = vpop.f32.mrf.mxu0
        %v3261 = vadd.f32 0.0, %v3260
        %3262 = vmatmul.f32.gmra.mxu0 %v3223
        %v3263 = vpop.f32.mrf.mxu0
        %v3264 = vadd.f32 0.0, %v3263
        %3265 = vmatmul.f32.gmra.mxu0 %v3226
        %v3266 = vpop.f32.mrf.mxu0
        %v3267 = vadd.f32 0.0, %v3266
        %3268 = vmatmul.f32.gmra.mxu0 %v3229
        %v3269 = vpop.f32.mrf.mxu0
        %v3270 = vadd.f32 0.0, %v3269
        %3271 = vmatmul.f32.gmra.mxu0 %v3232
        %v3272 = vpop.f32.mrf.mxu0
        %v3273 = vadd.f32 0.0, %v3272
        %3274 = vmatmul.f32.gmra.mxu0 %v3235
        %v3275 = vpop.f32.mrf.mxu0
        %v3276 = vadd.f32 0.0, %v3275
        %3277 = vdwg.mxu0
        %v3278 = vadd.f32 %v3208, %v3255
        %v3279 = vadd.f32 %v3209, %v3258
        %v3280 = vadd.f32 %v3210, %v3261
        %v3281 = vadd.f32 %v3211, %v3264
        %v3282 = vadd.f32 %v3212, %v3267
        %v3283 = vadd.f32 %v3213, %v3270
        %v3284 = vadd.f32 %v3214, %v3273
        %v3285 = vadd.f32 %v3215, %v3276
        %v3286 = vsel %vm1200, %v2878, 0
        %v3288 = vsel %vm1200, %v2880, 0
        %v3290 = vsel %vm1200, %v2882, 0
        %v3292 = vsel %vm1200, %v2884, 0
        %v3294 = vsel %vm1200, %v2886, 0
        %v3296 = vsel %vm1200, %v2888, 0
        %v3298 = vsel %vm1200, %v2890, 0
        %3300 = vmatpush.msra.mxu0 0.0
        %3301 = vmatpush.msra.mxu0 0.0
        %3302 = vmatpush.msra.mxu0 0.0
        %3303 = vmatpush.msra.mxu0 0.0
        %3304 = vmatpush.msra.mxu0 0.0
        %3305 = vmatpush.msra.mxu0 0.0
        %3306 = vmatpush.msra.mxu0 0.0
        %3307 = vmatpush.msra.mxu0 0.0
        %3308 = vmatpush.msra.mxu0 0.0
        %3309 = vmatpush.msra.mxu0 0.0
        %3310 = vmatpush.msra.mxu0 0.0
        %3311 = vmatpush.msra.mxu0 0.0
        %3312 = vmatpush.msra.mxu0 0.0
        %3313 = vmatpush.msra.mxu0 0.0
        %3314 = vmatpush.msra.mxu0 %v461
        %3315 = vmatpush.msra.mxu0 %v460
        %3316 = vmatmul.f32.gmra.mxu0 %v1412
        %v3317 = vpop.f32.mrf.mxu0
        %v3318 = vadd.f32 0.0, %v3317
        %3319 = vmatmul.f32.gmra.mxu0 %v3286
        %v3320 = vpop.f32.mrf.mxu0
        %v3321 = vadd.f32 0.0, %v3320
        %3322 = vmatmul.f32.gmra.mxu0 %v3288
        %v3323 = vpop.f32.mrf.mxu0
        %v3324 = vadd.f32 0.0, %v3323
        %3325 = vmatmul.f32.gmra.mxu0 %v3290
        %v3326 = vpop.f32.mrf.mxu0
        %v3327 = vadd.f32 0.0, %v3326
        %3328 = vmatmul.f32.gmra.mxu0 %v3292
        %v3329 = vpop.f32.mrf.mxu0
        %v3330 = vadd.f32 0.0, %v3329
        %3331 = vmatmul.f32.gmra.mxu0 %v3294
        %v3332 = vpop.f32.mrf.mxu0
        %v3333 = vadd.f32 0.0, %v3332
        %3334 = vmatmul.f32.gmra.mxu0 %v3296
        %v3335 = vpop.f32.mrf.mxu0
        %v3336 = vadd.f32 0.0, %v3335
        %3337 = vmatmul.f32.gmra.mxu0 %v3298
        %v3338 = vpop.f32.mrf.mxu0
        %v3339 = vadd.f32 0.0, %v3338
        %3340 = vdwg.mxu0
        %v3341 = vadd.f32 %v3278, %v3318
        %v3342 = vadd.f32 %v3279, %v3321
        %v3343 = vadd.f32 %v3280, %v3324
        %v3344 = vadd.f32 %v3281, %v3327
        %v3345 = vadd.f32 %v3282, %v3330
        %v3346 = vadd.f32 %v3283, %v3333
        %v3347 = vadd.f32 %v3284, %v3336
        %v3348 = vadd.f32 %v3285, %v3339
        %v3349 = vsel %vm1200, %v2814, 0
        %v3351 = vsel %vm1200, %v2816, 0
        %v3353 = vsel %vm1200, %v2818, 0
        %v3355 = vsel %vm1200, %v2820, 0
        %v3357 = vsel %vm1200, %v2822, 0
        %v3359 = vsel %vm1200, %v2824, 0
        %v3361 = vsel %vm1200, %v2826, 0
        %3363 = vmatpush.msra.mxu0 0.0
        %3364 = vmatpush.msra.mxu0 0.0
        %3365 = vmatpush.msra.mxu0 0.0
        %3366 = vmatpush.msra.mxu0 0.0
        %3367 = vmatpush.msra.mxu0 0.0
        %3368 = vmatpush.msra.mxu0 0.0
        %3369 = vmatpush.msra.mxu0 0.0
        %3370 = vmatpush.msra.mxu0 0.0
        %3371 = vmatpush.msra.mxu0 0.0
        %3372 = vmatpush.msra.mxu0 0.0
        %3373 = vmatpush.msra.mxu0 0.0
        %3374 = vmatpush.msra.mxu0 0.0
        %3375 = vmatpush.msra.mxu0 0.0
        %3376 = vmatpush.msra.mxu0 0.0
        %3377 = vmatpush.msra.mxu0 %v463
        %3378 = vmatpush.msra.mxu0 %v462
        %3379 = vmatmul.f32.gmra.mxu0 %v1412
        %v3380 = vpop.f32.mrf.mxu0
        %v3381 = vadd.f32 0.0, %v3380
        %3382 = vmatmul.f32.gmra.mxu0 %v3349
        %v3383 = vpop.f32.mrf.mxu0
        %v3384 = vadd.f32 0.0, %v3383
        %3385 = vmatmul.f32.gmra.mxu0 %v3351
        %v3386 = vpop.f32.mrf.mxu0
        %v3387 = vadd.f32 0.0, %v3386
        %3388 = vmatmul.f32.gmra.mxu0 %v3353
        %v3389 = vpop.f32.mrf.mxu0
        %v3390 = vadd.f32 0.0, %v3389
        %3391 = vmatmul.f32.gmra.mxu0 %v3355
        %v3392 = vpop.f32.mrf.mxu0
        %v3393 = vadd.f32 0.0, %v3392
        %3394 = vmatmul.f32.gmra.mxu0 %v3357
        %v3395 = vpop.f32.mrf.mxu0
        %v3396 = vadd.f32 0.0, %v3395
        %3397 = vmatmul.f32.gmra.mxu0 %v3359
        %v3398 = vpop.f32.mrf.mxu0
        %v3399 = vadd.f32 0.0, %v3398
        %3400 = vmatmul.f32.gmra.mxu0 %v3361
        %v3401 = vpop.f32.mrf.mxu0
        %v3402 = vadd.f32 0.0, %v3401
        %3403 = vdwg.mxu0
        %v3404 = vadd.f32 %v3341, %v3381
        %v3405 = vadd.f32 %v3342, %v3384
        %v3406 = vadd.f32 %v3343, %v3387
        %v3407 = vadd.f32 %v3344, %v3390
        %v3408 = vadd.f32 %v3345, %v3393
        %v3409 = vadd.f32 %v3346, %v3396
        %v3410 = vadd.f32 %v3347, %v3399
        %v3411 = vadd.f32 %v3348, %v3402
        %v3413 = vsel %vm1200, %v2950, 0
        %v3416 = vsel %vm1200, %v2951, 0
        %v3419 = vsel %vm1200, %v2952, 0
        %v3422 = vsel %vm1200, %v2953, 0
        %v3425 = vsel %vm1200, %v2954, 0
        %v3428 = vsel %vm1200, %v2955, 0
        %v3431 = vsel %vm1200, %v2956, 0
        %v3434 = vsel %vm1200, %v2957, 0
        %3436 = vmatpush.msra.mxu0 0.0
        %3437 = vmatpush.msra.mxu0 0.0
        %3438 = vmatpush.msra.mxu0 0.0
        %3439 = vmatpush.msra.mxu0 0.0
        %3440 = vmatpush.msra.mxu0 0.0
        %3441 = vmatpush.msra.mxu0 0.0
        %3442 = vmatpush.msra.mxu0 0.0
        %3443 = vmatpush.msra.mxu0 0.0
        %3444 = vmatpush.msra.mxu0 0.0
        %3445 = vmatpush.msra.mxu0 0.0
        %3446 = vmatpush.msra.mxu0 0.0
        %3447 = vmatpush.msra.mxu0 0.0
        %3448 = vmatpush.msra.mxu0 0.0
        %3449 = vmatpush.msra.mxu0 0.0
        %3450 = vmatpush.msra.mxu0 %v465
        %3451 = vmatpush.msra.mxu0 %v464
        %3452 = vmatmul.f32.gmra.mxu0 %v3413
        %v3453 = vpop.f32.mrf.mxu0
        %v3454 = vadd.f32 0.0, %v3453
        %3455 = vmatmul.f32.gmra.mxu0 %v3416
        %v3456 = vpop.f32.mrf.mxu0
        %v3457 = vadd.f32 0.0, %v3456
        %3458 = vmatmul.f32.gmra.mxu0 %v3419
        %v3459 = vpop.f32.mrf.mxu0
        %v3460 = vadd.f32 0.0, %v3459
        %3461 = vmatmul.f32.gmra.mxu0 %v3422
        %v3462 = vpop.f32.mrf.mxu0
        %v3463 = vadd.f32 0.0, %v3462
        %3464 = vmatmul.f32.gmra.mxu0 %v3425
        %v3465 = vpop.f32.mrf.mxu0
        %v3466 = vadd.f32 0.0, %v3465
        %3467 = vmatmul.f32.gmra.mxu0 %v3428
        %v3468 = vpop.f32.mrf.mxu0
        %v3469 = vadd.f32 0.0, %v3468
        %3470 = vmatmul.f32.gmra.mxu0 %v3431
        %v3471 = vpop.f32.mrf.mxu0
        %v3472 = vadd.f32 0.0, %v3471
        %3473 = vmatmul.f32.gmra.mxu0 %v3434
        %v3474 = vpop.f32.mrf.mxu0
        %v3475 = vadd.f32 0.0, %v3474
        %3476 = vdwg.mxu0
        %v3477 = vadd.f32 %v3404, %v3454
        %v3478 = vadd.f32 %v3405, %v3457
        %v3479 = vadd.f32 %v3406, %v3460
        %v3480 = vadd.f32 %v3407, %v3463
        %v3481 = vadd.f32 %v3408, %v3466
        %v3482 = vadd.f32 %v3409, %v3469
        %v3483 = vadd.f32 %v3410, %v3472
        %v3484 = vadd.f32 %v3411, %v3475
        %v3486 = vsel %vm1200, %v3014, 0
        %v3489 = vsel %vm1200, %v3015, 0
        %v3492 = vsel %vm1200, %v3016, 0
        %v3495 = vsel %vm1200, %v3017, 0
        %v3498 = vsel %vm1200, %v3018, 0
        %v3501 = vsel %vm1200, %v3019, 0
        %v3504 = vsel %vm1200, %v3020, 0
        %v3507 = vsel %vm1200, %v3021, 0
        %3509 = vmatpush.msra.mxu0 0.0
        %3510 = vmatpush.msra.mxu0 0.0
        %3511 = vmatpush.msra.mxu0 0.0
        %3512 = vmatpush.msra.mxu0 0.0
        %3513 = vmatpush.msra.mxu0 0.0
        %3514 = vmatpush.msra.mxu0 0.0
        %3515 = vmatpush.msra.mxu0 0.0
        %3516 = vmatpush.msra.mxu0 0.0
        %3517 = vmatpush.msra.mxu0 0.0
        %3518 = vmatpush.msra.mxu0 0.0
        %3519 = vmatpush.msra.mxu0 0.0
        %3520 = vmatpush.msra.mxu0 0.0
        %3521 = vmatpush.msra.mxu0 0.0
        %3522 = vmatpush.msra.mxu0 0.0
        %3523 = vmatpush.msra.mxu0 %v467
        %3524 = vmatpush.msra.mxu0 %v466
        %3525 = vmatmul.f32.gmra.mxu0 %v3486
        %v3526 = vpop.f32.mrf.mxu0
        %v3527 = vadd.f32 0.0, %v3526
        %3528 = vmatmul.f32.gmra.mxu0 %v3489
        %v3529 = vpop.f32.mrf.mxu0
        %v3530 = vadd.f32 0.0, %v3529
        %3531 = vmatmul.f32.gmra.mxu0 %v3492
        %v3532 = vpop.f32.mrf.mxu0
        %v3533 = vadd.f32 0.0, %v3532
        %3534 = vmatmul.f32.gmra.mxu0 %v3495
        %v3535 = vpop.f32.mrf.mxu0
        %v3536 = vadd.f32 0.0, %v3535
        %3537 = vmatmul.f32.gmra.mxu0 %v3498
        %v3538 = vpop.f32.mrf.mxu0
        %v3539 = vadd.f32 0.0, %v3538
        %3540 = vmatmul.f32.gmra.mxu0 %v3501
        %v3541 = vpop.f32.mrf.mxu0
        %v3542 = vadd.f32 0.0, %v3541
        %3543 = vmatmul.f32.gmra.mxu0 %v3504
        %v3544 = vpop.f32.mrf.mxu0
        %v3545 = vadd.f32 0.0, %v3544
        %3546 = vmatmul.f32.gmra.mxu0 %v3507
        %v3547 = vpop.f32.mrf.mxu0
        %v3548 = vadd.f32 0.0, %v3547
        %3549 = vdwg.mxu0
        %v3550 = vadd.f32 %v3477, %v3527
        %v3551 = vadd.f32 %v3478, %v3530
        %v3552 = vadd.f32 %v3479, %v3533
        %v3553 = vadd.f32 %v3480, %v3536
        %v3554 = vadd.f32 %v3481, %v3539
        %v3555 = vadd.f32 %v3482, %v3542
        %v3556 = vadd.f32 %v3483, %v3545
        %v3557 = vadd.f32 %v3484, %v3548
        %v3559 = vsel %vm1200, %v2845, 0
        %v3562 = vsel %vm1200, %v2847, 0
        %v3565 = vsel %vm1200, %v2849, 0
        %v3568 = vsel %vm1200, %v2851, 0
        %v3571 = vsel %vm1200, %v2853, 0
        %v3574 = vsel %vm1200, %v2855, 0
        %v3577 = vsel %vm1200, %v2857, 0
        %v3580 = vsel %vm1200, %v2859, 0
        %3582 = vmatpush.msra.mxu0 0.0
        %3583 = vmatpush.msra.mxu0 0.0
        %3584 = vmatpush.msra.mxu0 0.0
        %3585 = vmatpush.msra.mxu0 0.0
        %3586 = vmatpush.msra.mxu0 0.0
        %3587 = vmatpush.msra.mxu0 0.0
        %3588 = vmatpush.msra.mxu0 0.0
        %3589 = vmatpush.msra.mxu0 0.0
        %3590 = vmatpush.msra.mxu0 0.0
        %3591 = vmatpush.msra.mxu0 0.0
        %3592 = vmatpush.msra.mxu0 0.0
        %3593 = vmatpush.msra.mxu0 0.0
        %3594 = vmatpush.msra.mxu0 0.0
        %3595 = vmatpush.msra.mxu0 0.0
        %3596 = vmatpush.msra.mxu0 %v469
        %3597 = vmatpush.msra.mxu0 %v468
        %3598 = vmatmul.f32.gmra.mxu0 %v3559
        %v3599 = vpop.f32.mrf.mxu0
        %v3600 = vadd.f32 0.0, %v3599
        %3601 = vmatmul.f32.gmra.mxu0 %v3562
        %v3602 = vpop.f32.mrf.mxu0
        %v3603 = vadd.f32 0.0, %v3602
        %3604 = vmatmul.f32.gmra.mxu0 %v3565
        %v3605 = vpop.f32.mrf.mxu0
        %v3606 = vadd.f32 0.0, %v3605
        %3607 = vmatmul.f32.gmra.mxu0 %v3568
        %v3608 = vpop.f32.mrf.mxu0
        %v3609 = vadd.f32 0.0, %v3608
        %3610 = vmatmul.f32.gmra.mxu0 %v3571
        %v3611 = vpop.f32.mrf.mxu0
        %v3612 = vadd.f32 0.0, %v3611
        %3613 = vmatmul.f32.gmra.mxu0 %v3574
        %v3614 = vpop.f32.mrf.mxu0
        %v3615 = vadd.f32 0.0, %v3614
        %3616 = vmatmul.f32.gmra.mxu0 %v3577
        %v3617 = vpop.f32.mrf.mxu0
        %v3618 = vadd.f32 0.0, %v3617
        %3619 = vmatmul.f32.gmra.mxu0 %v3580
        %v3620 = vpop.f32.mrf.mxu0
        %v3621 = vadd.f32 0.0, %v3620
        %3622 = vdwg.mxu0
        %v3623 = vadd.f32 %v3550, %v3600
        %v3624 = vadd.f32 %v3551, %v3603
        %v3625 = vadd.f32 %v3552, %v3606
        %v3626 = vadd.f32 %v3553, %v3609
        %v3627 = vadd.f32 %v3554, %v3612
        %v3628 = vadd.f32 %v3555, %v3615
        %v3629 = vadd.f32 %v3556, %v3618
        %v3630 = vadd.f32 %v3557, %v3621
        %v3632 = vsel %vm1200, %v2781, 0
        %v3635 = vsel %vm1200, %v2783, 0
        %v3638 = vsel %vm1200, %v2785, 0
        %v3641 = vsel %vm1200, %v2787, 0
        %v3644 = vsel %vm1200, %v2789, 0
        %v3647 = vsel %vm1200, %v2791, 0
        %v3650 = vsel %vm1200, %v2793, 0
        %v3653 = vsel %vm1200, %v2795, 0
        %3655 = vmatpush.msra.mxu0 0.0
        %3656 = vmatpush.msra.mxu0 0.0
        %3657 = vmatpush.msra.mxu0 0.0
        %3658 = vmatpush.msra.mxu0 0.0
        %3659 = vmatpush.msra.mxu0 0.0
        %3660 = vmatpush.msra.mxu0 0.0
        %3661 = vmatpush.msra.mxu0 0.0
        %3662 = vmatpush.msra.mxu0 0.0
        %3663 = vmatpush.msra.mxu0 0.0
        %3664 = vmatpush.msra.mxu0 0.0
        %3665 = vmatpush.msra.mxu0 0.0
        %3666 = vmatpush.msra.mxu0 0.0
        %3667 = vmatpush.msra.mxu0 0.0
        %3668 = vmatpush.msra.mxu0 0.0
        %3669 = vmatpush.msra.mxu0 %v471
        %3670 = vmatpush.msra.mxu0 %v470
        %3671 = vmatmul.f32.gmra.mxu0 %v3632
        %v3672 = vpop.f32.mrf.mxu0
        %v3673 = vadd.f32 0.0, %v3672
        %3674 = vmatmul.f32.gmra.mxu0 %v3635
        %v3675 = vpop.f32.mrf.mxu0
        %v3676 = vadd.f32 0.0, %v3675
        %3677 = vmatmul.f32.gmra.mxu0 %v3638
        %v3678 = vpop.f32.mrf.mxu0
        %v3679 = vadd.f32 0.0, %v3678
        %3680 = vmatmul.f32.gmra.mxu0 %v3641
        %v3681 = vpop.f32.mrf.mxu0
        %v3682 = vadd.f32 0.0, %v3681
        %3683 = vmatmul.f32.gmra.mxu0 %v3644
        %v3684 = vpop.f32.mrf.mxu0
        %v3685 = vadd.f32 0.0, %v3684
        %3686 = vmatmul.f32.gmra.mxu0 %v3647
        %v3687 = vpop.f32.mrf.mxu0
        %v3688 = vadd.f32 0.0, %v3687
        %3689 = vmatmul.f32.gmra.mxu0 %v3650
        %v3690 = vpop.f32.mrf.mxu0
        %v3691 = vadd.f32 0.0, %v3690
        %3692 = vmatmul.f32.gmra.mxu0 %v3653
        %v3693 = vpop.f32.mrf.mxu0
        %v3694 = vadd.f32 0.0, %v3693
        %3695 = vdwg.mxu0
        %v3696 = vadd.f32 %v3623, %v3673
        %v3697 = vadd.f32 %v3624, %v3676
        %v3698 = vadd.f32 %v3625, %v3679
        %v3699 = vadd.f32 %v3626, %v3682
        %v3700 = vadd.f32 %v3627, %v3685
        %v3701 = vadd.f32 %v3628, %v3688
        %v3702 = vadd.f32 %v3629, %v3691
        %v3703 = vadd.f32 %v3630, %v3694
        %v3704 = vsel %vm1200, %v2877, 0
        %v3706 = vsel %vm1200, %v2879, 0
        %v3708 = vsel %vm1200, %v2881, 0
        %v3710 = vsel %vm1200, %v2883, 0
        %v3712 = vsel %vm1200, %v2885, 0
        %v3714 = vsel %vm1200, %v2887, 0
        %v3716 = vsel %vm1200, %v2889, 0
        %v3718 = vsel %vm1200, %v2891, 0
        %3720 = vmatpush.msra.mxu0 0.0
        %3721 = vmatpush.msra.mxu0 0.0
        %3722 = vmatpush.msra.mxu0 0.0
        %3723 = vmatpush.msra.mxu0 0.0
        %3724 = vmatpush.msra.mxu0 0.0
        %3725 = vmatpush.msra.mxu0 0.0
        %3726 = vmatpush.msra.mxu0 0.0
        %3727 = vmatpush.msra.mxu0 0.0
        %3728 = vmatpush.msra.mxu0 0.0
        %3729 = vmatpush.msra.mxu0 0.0
        %3730 = vmatpush.msra.mxu0 0.0
        %3731 = vmatpush.msra.mxu0 0.0
        %3732 = vmatpush.msra.mxu0 0.0
        %3733 = vmatpush.msra.mxu0 0.0
        %3734 = vmatpush.msra.mxu0 %v473
        %3735 = vmatpush.msra.mxu0 %v472
        %3736 = vmatmul.f32.gmra.mxu0 %v3704
        %v3737 = vpop.f32.mrf.mxu0
        %v3738 = vadd.f32 0.0, %v3737
        %3739 = vmatmul.f32.gmra.mxu0 %v3706
        %v3740 = vpop.f32.mrf.mxu0
        %v3741 = vadd.f32 0.0, %v3740
        %3742 = vmatmul.f32.gmra.mxu0 %v3708
        %v3743 = vpop.f32.mrf.mxu0
        %v3744 = vadd.f32 0.0, %v3743
        %3745 = vmatmul.f32.gmra.mxu0 %v3710
        %v3746 = vpop.f32.mrf.mxu0
        %v3747 = vadd.f32 0.0, %v3746
        %3748 = vmatmul.f32.gmra.mxu0 %v3712
        %v3749 = vpop.f32.mrf.mxu0
        %v3750 = vadd.f32 0.0, %v3749
        %3751 = vmatmul.f32.gmra.mxu0 %v3714
        %v3752 = vpop.f32.mrf.mxu0
        %v3753 = vadd.f32 0.0, %v3752
        %3754 = vmatmul.f32.gmra.mxu0 %v3716
        %v3755 = vpop.f32.mrf.mxu0
        %v3756 = vadd.f32 0.0, %v3755
        %3757 = vmatmul.f32.gmra.mxu0 %v3718
        %v3758 = vpop.f32.mrf.mxu0
        %v3759 = vadd.f32 0.0, %v3758
        %3760 = vdwg.mxu0
        %v3761 = vadd.f32 %v3696, %v3738
        %v3762 = vadd.f32 %v3697, %v3741
        %v3763 = vadd.f32 %v3698, %v3744
        %v3764 = vadd.f32 %v3699, %v3747
        %v3765 = vadd.f32 %v3700, %v3750
        %v3766 = vadd.f32 %v3701, %v3753
        %v3767 = vadd.f32 %v3702, %v3756
        %v3768 = vadd.f32 %v3703, %v3759
        %v3769 = vsel %vm1200, %v2813, 0
        %v3771 = vsel %vm1200, %v2815, 0
        %v3773 = vsel %vm1200, %v2817, 0
        %v3775 = vsel %vm1200, %v2819, 0
        %v3777 = vsel %vm1200, %v2821, 0
        %v3779 = vsel %vm1200, %v2823, 0
        %v3781 = vsel %vm1200, %v2825, 0
        %v3783 = vsel %vm1200, %v2827, 0
        %3785 = vmatpush.msra.mxu0 0.0
        %3786 = vmatpush.msra.mxu0 0.0
        %3787 = vmatpush.msra.mxu0 0.0
        %3788 = vmatpush.msra.mxu0 0.0
        %3789 = vmatpush.msra.mxu0 0.0
        %3790 = vmatpush.msra.mxu0 0.0
        %3791 = vmatpush.msra.mxu0 0.0
        %3792 = vmatpush.msra.mxu0 0.0
        %3793 = vmatpush.msra.mxu0 0.0
        %3794 = vmatpush.msra.mxu0 0.0
        %3795 = vmatpush.msra.mxu0 0.0
        %3796 = vmatpush.msra.mxu0 0.0
        %3797 = vmatpush.msra.mxu0 0.0
        %3798 = vmatpush.msra.mxu0 0.0
        %3799 = vmatpush.msra.mxu0 %v475
        %3800 = vmatpush.msra.mxu0 %v474
        %3801 = vmatmul.f32.gmra.mxu0 %v3769
        %v3802 = vpop.f32.mrf.mxu0
        %v3803 = vadd.f32 0.0, %v3802
        %3804 = vmatmul.f32.gmra.mxu0 %v3771
        %v3805 = vpop.f32.mrf.mxu0
        %v3806 = vadd.f32 0.0, %v3805
        %3807 = vmatmul.f32.gmra.mxu0 %v3773
        %v3808 = vpop.f32.mrf.mxu0
        %v3809 = vadd.f32 0.0, %v3808
        %3810 = vmatmul.f32.gmra.mxu0 %v3775
        %v3811 = vpop.f32.mrf.mxu0
        %v3812 = vadd.f32 0.0, %v3811
        %3813 = vmatmul.f32.gmra.mxu0 %v3777
        %v3814 = vpop.f32.mrf.mxu0
        %v3815 = vadd.f32 0.0, %v3814
        %3816 = vmatmul.f32.gmra.mxu0 %v3779
        %v3817 = vpop.f32.mrf.mxu0
        %v3818 = vadd.f32 0.0, %v3817
        %3819 = vmatmul.f32.gmra.mxu0 %v3781
        %v3820 = vpop.f32.mrf.mxu0
        %v3821 = vadd.f32 0.0, %v3820
        %3822 = vmatmul.f32.gmra.mxu0 %v3783
        %v3823 = vpop.f32.mrf.mxu0
        %v3824 = vadd.f32 0.0, %v3823
        %3825 = vdwg.mxu0
        %v3826 = vadd.f32 %v3761, %v3803
        %v3827 = vadd.f32 %v3762, %v3806
        %v3828 = vadd.f32 %v3763, %v3809
        %v3829 = vadd.f32 %v3764, %v3812
        %v3830 = vadd.f32 %v3765, %v3815
        %v3831 = vadd.f32 %v3766, %v3818
        %v3832 = vadd.f32 %v3767, %v3821
        %v3833 = vadd.f32 %v3768, %v3824
        %v3835 = vsel %vm1200, %v2925, 0
        %3837 = vmatpush.msra.mxu0 0.0
        %3838 = vmatpush.msra.mxu0 0.0
        %3839 = vmatpush.msra.mxu0 0.0
        %3840 = vmatpush.msra.mxu0 0.0
        %3841 = vmatpush.msra.mxu0 0.0
        %3842 = vmatpush.msra.mxu0 0.0
        %3843 = vmatpush.msra.mxu0 0.0
        %3844 = vmatpush.msra.mxu0 0.0
        %3845 = vmatpush.msra.mxu0 0.0
        %3846 = vmatpush.msra.mxu0 0.0
        %3847 = vmatpush.msra.mxu0 0.0
        %3848 = vmatpush.msra.mxu0 0.0
        %3849 = vmatpush.msra.mxu0 0.0
        %3850 = vmatpush.msra.mxu0 0.0
        %3851 = vmatpush.msra.mxu0 %v477
        %3852 = vmatpush.msra.mxu0 %v476
        %3853 = vmatmul.f32.gmra.mxu0 %v3085
        %v3854 = vpop.f32.mrf.mxu0
        %v3855 = vadd.f32 0.0, %v3854
        %3856 = vmatmul.f32.gmra.mxu0 %v3088
        %v3857 = vpop.f32.mrf.mxu0
        %v3858 = vadd.f32 0.0, %v3857
        %3859 = vmatmul.f32.gmra.mxu0 %v3091
        %v3860 = vpop.f32.mrf.mxu0
        %v3861 = vadd.f32 0.0, %v3860
        %3862 = vmatmul.f32.gmra.mxu0 %v3094
        %v3863 = vpop.f32.mrf.mxu0
        %v3864 = vadd.f32 0.0, %v3863
        %3865 = vmatmul.f32.gmra.mxu0 %v3097
        %v3866 = vpop.f32.mrf.mxu0
        %v3867 = vadd.f32 0.0, %v3866
        %3868 = vmatmul.f32.gmra.mxu0 %v3100
        %v3869 = vpop.f32.mrf.mxu0
        %v3870 = vadd.f32 0.0, %v3869
        %3871 = vmatmul.f32.gmra.mxu0 %v3103
        %v3872 = vpop.f32.mrf.mxu0
        %v3873 = vadd.f32 0.0, %v3872
        %3874 = vmatmul.f32.gmra.mxu0 %v3835
        %v3875 = vpop.f32.mrf.mxu0
        %v3876 = vadd.f32 0.0, %v3875
        %3877 = vdwg.mxu0
        %v3878 = vadd.f32 %v3826, %v3855
        %v3879 = vadd.f32 %v3827, %v3858
        %v3880 = vadd.f32 %v3828, %v3861
        %v3881 = vadd.f32 %v3829, %v3864
        %v3882 = vadd.f32 %v3830, %v3867
        %v3883 = vadd.f32 %v3831, %v3870
        %v3884 = vadd.f32 %v3832, %v3873
        %v3885 = vadd.f32 %v3833, %v3876
        %v3887 = vsel %vm1200, %v2989, 0
        %3889 = vmatpush.msra.mxu0 0.0
        %3890 = vmatpush.msra.mxu0 0.0
        %3891 = vmatpush.msra.mxu0 0.0
        %3892 = vmatpush.msra.mxu0 0.0
        %3893 = vmatpush.msra.mxu0 0.0
        %3894 = vmatpush.msra.mxu0 0.0
        %3895 = vmatpush.msra.mxu0 0.0
        %3896 = vmatpush.msra.mxu0 0.0
        %3897 = vmatpush.msra.mxu0 0.0
        %3898 = vmatpush.msra.mxu0 0.0
        %3899 = vmatpush.msra.mxu0 0.0
        %3900 = vmatpush.msra.mxu0 0.0
        %3901 = vmatpush.msra.mxu0 0.0
        %3902 = vmatpush.msra.mxu0 0.0
        %3903 = vmatpush.msra.mxu0 %v479
        %3904 = vmatpush.msra.mxu0 %v478
        %3905 = vmatmul.f32.gmra.mxu0 %v3023
        %v3906 = vpop.f32.mrf.mxu0
        %v3907 = vadd.f32 0.0, %v3906
        %3908 = vmatmul.f32.gmra.mxu0 %v3026
        %v3909 = vpop.f32.mrf.mxu0
        %v3910 = vadd.f32 0.0, %v3909
        %3911 = vmatmul.f32.gmra.mxu0 %v3029
        %v3912 = vpop.f32.mrf.mxu0
        %v3913 = vadd.f32 0.0, %v3912
        %3914 = vmatmul.f32.gmra.mxu0 %v3032
        %v3915 = vpop.f32.mrf.mxu0
        %v3916 = vadd.f32 0.0, %v3915
        %3917 = vmatmul.f32.gmra.mxu0 %v3035
        %v3918 = vpop.f32.mrf.mxu0
        %v3919 = vadd.f32 0.0, %v3918
        %3920 = vmatmul.f32.gmra.mxu0 %v3038
        %v3921 = vpop.f32.mrf.mxu0
        %v3922 = vadd.f32 0.0, %v3921
        %3923 = vmatmul.f32.gmra.mxu0 %v3041
        %v3924 = vpop.f32.mrf.mxu0
        %v3925 = vadd.f32 0.0, %v3924
        %3926 = vmatmul.f32.gmra.mxu0 %v3887
        %v3927 = vpop.f32.mrf.mxu0
        %v3928 = vadd.f32 0.0, %v3927
        %3929 = vdwg.mxu0
        %v3930 = vadd.f32 %v3878, %v3907
        %v3931 = vadd.f32 %v3879, %v3910
        %v3932 = vadd.f32 %v3880, %v3913
        %v3933 = vadd.f32 %v3881, %v3916
        %v3934 = vadd.f32 %v3882, %v3919
        %v3935 = vadd.f32 %v3883, %v3922
        %v3936 = vadd.f32 %v3884, %v3925
        %v3937 = vadd.f32 %v3885, %v3928
        %v3939 = vsel %vm1200, %v2860, 0
        %3941 = vmatpush.msra.mxu0 0.0
        %3942 = vmatpush.msra.mxu0 0.0
        %3943 = vmatpush.msra.mxu0 0.0
        %3944 = vmatpush.msra.mxu0 0.0
        %3945 = vmatpush.msra.mxu0 0.0
        %3946 = vmatpush.msra.mxu0 0.0
        %3947 = vmatpush.msra.mxu0 0.0
        %3948 = vmatpush.msra.mxu0 0.0
        %3949 = vmatpush.msra.mxu0 0.0
        %3950 = vmatpush.msra.mxu0 0.0
        %3951 = vmatpush.msra.mxu0 0.0
        %3952 = vmatpush.msra.mxu0 0.0
        %3953 = vmatpush.msra.mxu0 0.0
        %3954 = vmatpush.msra.mxu0 0.0
        %3955 = vmatpush.msra.mxu0 %v481
        %3956 = vmatpush.msra.mxu0 %v480
        %3957 = vmatmul.f32.gmra.mxu0 %v3147
        %v3958 = vpop.f32.mrf.mxu0
        %v3959 = vadd.f32 0.0, %v3958
        %3960 = vmatmul.f32.gmra.mxu0 %v3150
        %v3961 = vpop.f32.mrf.mxu0
        %v3962 = vadd.f32 0.0, %v3961
        %3963 = vmatmul.f32.gmra.mxu0 %v3153
        %v3964 = vpop.f32.mrf.mxu0
        %v3965 = vadd.f32 0.0, %v3964
        %3966 = vmatmul.f32.gmra.mxu0 %v3156
        %v3967 = vpop.f32.mrf.mxu0
        %v3968 = vadd.f32 0.0, %v3967
        %3969 = vmatmul.f32.gmra.mxu0 %v3159
        %v3970 = vpop.f32.mrf.mxu0
        %v3971 = vadd.f32 0.0, %v3970
        %3972 = vmatmul.f32.gmra.mxu0 %v3162
        %v3973 = vpop.f32.mrf.mxu0
        %v3974 = vadd.f32 0.0, %v3973
        %3975 = vmatmul.f32.gmra.mxu0 %v3165
        %v3976 = vpop.f32.mrf.mxu0
        %v3977 = vadd.f32 0.0, %v3976
        %3978 = vmatmul.f32.gmra.mxu0 %v3939
        %v3979 = vpop.f32.mrf.mxu0
        %v3980 = vadd.f32 0.0, %v3979
        %3981 = vdwg.mxu0
        %v3982 = vadd.f32 %v3930, %v3959
        %v3983 = vadd.f32 %v3931, %v3962
        %v3984 = vadd.f32 %v3932, %v3965
        %v3985 = vadd.f32 %v3933, %v3968
        %v3986 = vadd.f32 %v3934, %v3971
        %v3987 = vadd.f32 %v3935, %v3974
        %v3988 = vadd.f32 %v3936, %v3977
        %v3989 = vadd.f32 %v3937, %v3980
        %v3991 = vsel %vm1200, %v2796, 0
        %3993 = vmatpush.msra.mxu0 0.0
        %3994 = vmatpush.msra.mxu0 0.0
        %3995 = vmatpush.msra.mxu0 0.0
        %3996 = vmatpush.msra.mxu0 0.0
        %3997 = vmatpush.msra.mxu0 0.0
        %3998 = vmatpush.msra.mxu0 0.0
        %3999 = vmatpush.msra.mxu0 0.0
        %4000 = vmatpush.msra.mxu0 0.0
        %4001 = vmatpush.msra.mxu0 0.0
        %4002 = vmatpush.msra.mxu0 0.0
        %4003 = vmatpush.msra.mxu0 0.0
        %4004 = vmatpush.msra.mxu0 0.0
        %4005 = vmatpush.msra.mxu0 0.0
        %4006 = vmatpush.msra.mxu0 0.0
        %4007 = vmatpush.msra.mxu0 %v483
        %4008 = vmatpush.msra.mxu0 %v482
        %4009 = vmatmul.f32.gmra.mxu0 %v3217
        %v4010 = vpop.f32.mrf.mxu0
        %v4011 = vadd.f32 0.0, %v4010
        %4012 = vmatmul.f32.gmra.mxu0 %v3220
        %v4013 = vpop.f32.mrf.mxu0
        %v4014 = vadd.f32 0.0, %v4013
        %4015 = vmatmul.f32.gmra.mxu0 %v3223
        %v4016 = vpop.f32.mrf.mxu0
        %v4017 = vadd.f32 0.0, %v4016
        %4018 = vmatmul.f32.gmra.mxu0 %v3226
        %v4019 = vpop.f32.mrf.mxu0
        %v4020 = vadd.f32 0.0, %v4019
        %4021 = vmatmul.f32.gmra.mxu0 %v3229
        %v4022 = vpop.f32.mrf.mxu0
        %v4023 = vadd.f32 0.0, %v4022
        %4024 = vmatmul.f32.gmra.mxu0 %v3232
        %v4025 = vpop.f32.mrf.mxu0
        %v4026 = vadd.f32 0.0, %v4025
        %4027 = vmatmul.f32.gmra.mxu0 %v3235
        %v4028 = vpop.f32.mrf.mxu0
        %v4029 = vadd.f32 0.0, %v4028
        %4030 = vmatmul.f32.gmra.mxu0 %v3991
        %v4031 = vpop.f32.mrf.mxu0
        %v4032 = vadd.f32 0.0, %v4031
        %4033 = vdwg.mxu0
        %v4034 = vadd.f32 %v3982, %v4011
        %v4035 = vadd.f32 %v3983, %v4014
        %v4036 = vadd.f32 %v3984, %v4017
        %v4037 = vadd.f32 %v3985, %v4020
        %v4038 = vadd.f32 %v3986, %v4023
        %v4039 = vadd.f32 %v3987, %v4026
        %v4040 = vadd.f32 %v3988, %v4029
        %v4041 = vadd.f32 %v3989, %v4032
        %v4042 = vsel %vm1200, %v2892, 0
        %4044 = vmatpush.msra.mxu0 0.0
        %4045 = vmatpush.msra.mxu0 0.0
        %4046 = vmatpush.msra.mxu0 0.0
        %4047 = vmatpush.msra.mxu0 0.0
        %4048 = vmatpush.msra.mxu0 0.0
        %4049 = vmatpush.msra.mxu0 0.0
        %4050 = vmatpush.msra.mxu0 0.0
        %4051 = vmatpush.msra.mxu0 0.0
        %4052 = vmatpush.msra.mxu0 0.0
        %4053 = vmatpush.msra.mxu0 0.0
        %4054 = vmatpush.msra.mxu0 0.0
        %4055 = vmatpush.msra.mxu0 0.0
        %4056 = vmatpush.msra.mxu0 0.0
        %4057 = vmatpush.msra.mxu0 0.0
        %4058 = vmatpush.msra.mxu0 %v485
        %4059 = vmatpush.msra.mxu0 %v484
        %4060 = vmatmul.f32.gmra.mxu0 %v3286
        %v4061 = vpop.f32.mrf.mxu0
        %v4062 = vadd.f32 0.0, %v4061
        %4063 = vmatmul.f32.gmra.mxu0 %v3288
        %v4064 = vpop.f32.mrf.mxu0
        %v4065 = vadd.f32 0.0, %v4064
        %4066 = vmatmul.f32.gmra.mxu0 %v3290
        %v4067 = vpop.f32.mrf.mxu0
        %v4068 = vadd.f32 0.0, %v4067
        %4069 = vmatmul.f32.gmra.mxu0 %v3292
        %v4070 = vpop.f32.mrf.mxu0
        %v4071 = vadd.f32 0.0, %v4070
        %4072 = vmatmul.f32.gmra.mxu0 %v3294
        %v4073 = vpop.f32.mrf.mxu0
        %v4074 = vadd.f32 0.0, %v4073
        %4075 = vmatmul.f32.gmra.mxu0 %v3296
        %v4076 = vpop.f32.mrf.mxu0
        %v4077 = vadd.f32 0.0, %v4076
        %4078 = vmatmul.f32.gmra.mxu0 %v3298
        %v4079 = vpop.f32.mrf.mxu0
        %v4080 = vadd.f32 0.0, %v4079
        %4081 = vmatmul.f32.gmra.mxu0 %v4042
        %v4082 = vpop.f32.mrf.mxu0
        %v4083 = vadd.f32 0.0, %v4082
        %4084 = vdwg.mxu0
        %v4085 = vadd.f32 %v4034, %v4062
        %v4086 = vadd.f32 %v4035, %v4065
        %v4087 = vadd.f32 %v4036, %v4068
        %v4088 = vadd.f32 %v4037, %v4071
        %v4089 = vadd.f32 %v4038, %v4074
        %v4090 = vadd.f32 %v4039, %v4077
        %v4091 = vadd.f32 %v4040, %v4080
        %v4092 = vadd.f32 %v4041, %v4083
        %v4093 = vsel %vm1200, %v2828, 0
        %4095 = vmatpush.msra.mxu0 0.0
        %4096 = vmatpush.msra.mxu0 0.0
        %4097 = vmatpush.msra.mxu0 0.0
        %4098 = vmatpush.msra.mxu0 0.0
        %4099 = vmatpush.msra.mxu0 0.0
        %4100 = vmatpush.msra.mxu0 0.0
        %4101 = vmatpush.msra.mxu0 0.0
        %4102 = vmatpush.msra.mxu0 0.0
        %4103 = vmatpush.msra.mxu0 0.0
        %4104 = vmatpush.msra.mxu0 0.0
        %4105 = vmatpush.msra.mxu0 0.0
        %4106 = vmatpush.msra.mxu0 0.0
        %4107 = vmatpush.msra.mxu0 0.0
        %4108 = vmatpush.msra.mxu0 0.0
        %4109 = vmatpush.msra.mxu0 %v487
        %4110 = vmatpush.msra.mxu0 %v486
        %4111 = vmatmul.f32.gmra.mxu0 %v3349
        %v4112 = vpop.f32.mrf.mxu0
        %v4113 = vadd.f32 0.0, %v4112
        %4114 = vmatmul.f32.gmra.mxu0 %v3351
        %v4115 = vpop.f32.mrf.mxu0
        %v4116 = vadd.f32 0.0, %v4115
        %4117 = vmatmul.f32.gmra.mxu0 %v3353
        %v4118 = vpop.f32.mrf.mxu0
        %v4119 = vadd.f32 0.0, %v4118
        %4120 = vmatmul.f32.gmra.mxu0 %v3355
        %v4121 = vpop.f32.mrf.mxu0
        %v4122 = vadd.f32 0.0, %v4121
        %4123 = vmatmul.f32.gmra.mxu0 %v3357
        %v4124 = vpop.f32.mrf.mxu0
        %v4125 = vadd.f32 0.0, %v4124
        %4126 = vmatmul.f32.gmra.mxu0 %v3359
        %v4127 = vpop.f32.mrf.mxu0
        %v4128 = vadd.f32 0.0, %v4127
        %4129 = vmatmul.f32.gmra.mxu0 %v3361
        %v4130 = vpop.f32.mrf.mxu0
        %v4131 = vadd.f32 0.0, %v4130
        %4132 = vmatmul.f32.gmra.mxu0 %v4093
        %v4133 = vpop.f32.mrf.mxu0
        %v4134 = vadd.f32 0.0, %v4133
        %4135 = vdwg.mxu0
        %v4136 = vadd.f32 %v4085, %v4113
        %v4137 = vadd.f32 %v4086, %v4116
        %v4138 = vadd.f32 %v4087, %v4119
        %v4139 = vadd.f32 %v4088, %v4122
        %v4140 = vadd.f32 %v4089, %v4125
        %v4141 = vadd.f32 %v4090, %v4128
        %v4142 = vadd.f32 %v4091, %v4131
        %v4143 = vadd.f32 %v4092, %v4134
        %v4145 = vperm.slane %v488, 0
        %v4147 = vadd.f32 %v4136, %v4145
        %v4148 = vadd.f32 %v4137, %v4145
        %v4149 = vadd.f32 %v4138, %v4145
        %v4150 = vadd.f32 %v4139, %v4145
        %v4151 = vadd.f32 %v4140, %v4145
        %v4152 = vadd.f32 %v4141, %v4145
        %v4153 = vadd.f32 %v4142, %v4145
        %v4154 = vadd.f32 %v4143, %v4145
        %v4155 = vmax.f32 %v4147, 0.0
        %v4156 = vmax.f32 %v4148, 0.0
        %v4157 = vmax.f32 %v4149, 0.0
        %v4158 = vmax.f32 %v4150, 0.0
        %v4159 = vmax.f32 %v4151, 0.0
        %v4160 = vmax.f32 %v4152, 0.0
        %v4161 = vmax.f32 %v4153, 0.0
        %v4162 = vmax.f32 %v4154, 0.0
        %v4164 = vperm.slane %v491, 0
        %v4167 = vsel %vm1200, %v4155, 0
        %v4170 = vsel %vm1200, %v4156, 0
        %v4173 = vsel %vm1200, %v4157, 0
        %v4176 = vsel %vm1200, %v4158, 0
        %v4179 = vsel %vm1200, %v4159, 0
        %v4182 = vsel %vm1200, %v4160, 0
        %v4185 = vsel %vm1200, %v4161, 0
        %v4188 = vsel %vm1200, %v4162, 0
        %4190 = vmatpush.msra.mxu0 0.0
        %4191 = vmatpush.msra.mxu0 0.0
        %4192 = vmatpush.msra.mxu0 0.0
        %4193 = vmatpush.msra.mxu0 0.0
        %4194 = vmatpush.msra.mxu0 0.0
        %4195 = vmatpush.msra.mxu0 0.0
        %4196 = vmatpush.msra.mxu0 0.0
        %4197 = vmatpush.msra.mxu0 0.0
        %4198 = vmatpush.msra.mxu0 0.0
        %4199 = vmatpush.msra.mxu0 0.0
        %4200 = vmatpush.msra.mxu0 0.0
        %4201 = vmatpush.msra.mxu0 0.0
        %4202 = vmatpush.msra.mxu0 0.0
        %4203 = vmatpush.msra.mxu0 0.0
        %4204 = vmatpush.msra.mxu0 %v490
        %4205 = vmatpush.msra.mxu0 %v489
        %4206 = vmatmul.f32.gmra.mxu0 %v4167
        %v4207 = vpop.f32.mrf.mxu0
        %v4208 = vadd.f32 %v4164, %v4207
        %4209 = vmatmul.f32.gmra.mxu0 %v4170
        %v4210 = vpop.f32.mrf.mxu0
        %v4211 = vadd.f32 %v4164, %v4210
        %4212 = vmatmul.f32.gmra.mxu0 %v4173
        %v4213 = vpop.f32.mrf.mxu0
        %v4214 = vadd.f32 %v4164, %v4213
        %4215 = vmatmul.f32.gmra.mxu0 %v4176
        %v4216 = vpop.f32.mrf.mxu0
        %v4217 = vadd.f32 %v4164, %v4216
        %4218 = vmatmul.f32.gmra.mxu0 %v4179
        %v4219 = vpop.f32.mrf.mxu0
        %v4220 = vadd.f32 %v4164, %v4219
        %4221 = vmatmul.f32.gmra.mxu0 %v4182
        %v4222 = vpop.f32.mrf.mxu0
        %v4223 = vadd.f32 %v4164, %v4222
        %4224 = vmatmul.f32.gmra.mxu0 %v4185
        %v4225 = vpop.f32.mrf.mxu0
        %v4226 = vadd.f32 %v4164, %v4225
        %4227 = vmatmul.f32.gmra.mxu0 %v4188
        %v4228 = vpop.f32.mrf.mxu0
        %v4229 = vadd.f32 %v4164, %v4228
        %4230 = vdwg.mxu0
        %v4231 = vmax.f32 %v4208, 0.0
        %v4232 = vmax.f32 %v4211, 0.0
        %v4233 = vmax.f32 %v4214, 0.0
        %v4234 = vmax.f32 %v4217, 0.0
        %v4235 = vmax.f32 %v4220, 0.0
        %v4236 = vmax.f32 %v4223, 0.0
        %v4237 = vmax.f32 %v4226, 0.0
        %v4238 = vmax.f32 %v4229, 0.0
        %vm4239 = vcmask 261120
        %4240 = vst.msk [vmem:[%s379] sm:$0xff] %vm4239, %v4231
        %4241 = vst.msk [vmem:[%s379 + $0x8] sm:$0xff] %vm4239, %v4232
        %4242 = vst.msk [vmem:[%s379 + $0x10] sm:$0xff] %vm4239, %v4233
        %4243 = vst.msk [vmem:[%s379 + $0x18] sm:$0xff] %vm4239, %v4234
        %4244 = vst.msk [vmem:[%s379 + $0x20] sm:$0xff] %vm4239, %v4235
        %4245 = vst.msk [vmem:[%s379 + $0x28] sm:$0xff] %vm4239, %v4236
        %4246 = vst.msk [vmem:[%s379 + $0x30] sm:$0xff] %vm4239, %v4237
        %4247 = vst.msk [vmem:[%s379 + $0x38] sm:$0xff] %vm4239, %v4238
        %s4248 = sand.u32 %s269, 1
        %s4249 = scalar_lea.sflag [#allocation3], %s4248
        %s4250 = sand.u32 %s269, 1
        %s4251 = smul.addr %s4250, 64
        %s4252 = scalar_lea.vmem [#allocation2], %s4251
        // Predicated region
        $region65: #{hgstem_forward.1} parent=63 // pred_check
          %p4253 = pneg %p279
        $region66: #{hgstem_forward.1} parent=63 // pred_check_branch
          %4255 = sbr.rel (%p4253) target = $region68
        $region67: #{hgstem_forward.1} parent=63 // pred_region
          %4257 = vsyncadd %s4249, 0
          %s4258 = smul.addr %s25, 8
          %s4259 = smul.addr %s4258, 8
          %s4260 = scalar_lea.hbm %s11, %s4259
          %s4261 = sshll.u32 %s4252, 4
          %s4262 = int_to_ptr.vmem [resolvable:$true] %s4261
          %s4263 = sshll.u32 %s4260, 4
          %s4264 = int_to_ptr.hbm [resolvable:$true] %s4263
          %4269 = dma.vmem_to_hbm [thread:$0]  %s4262, 1024, %s4264, %s4249, 128, 128, 8
        $region68: #{hgstem_forward.1} parent=63 // pred_fallthru
          _
      $region64: #{hgstem_forward.1} parent=5 // pred_fallthru
        _
      %p4270 = scmp.le.s32.totalorder 2, %s20
      // Predicated region
      $region69: #{hgstem_forward.1} parent=5 // pred_check
        %p4271 = pneg %p4270
      $region70: #{hgstem_forward.1} parent=5 // pred_check_branch
        %4273 = sbr.rel (%p4271) target = $region72
      $region71: #{hgstem_forward.1} parent=5 // pred_region
        %s4274 = ssub.s32 %s20, 2
        // Predicated region
        $region73: #{hgstem_forward.1} parent=71 // pred_check
          %p4275 = pneg %p285
        $region74: #{hgstem_forward.1} parent=71 // pred_check_branch
          %4277 = sbr.rel (%p4275) target = $region76
        $region75: #{hgstem_forward.1} parent=71 // pred_region
          %s4278 = sand.u32 %s270, 1
          %s4279 = scalar_lea.sflag [#allocation3], %s4278
          %s4280 = sand.u32 %s270, 1
          %s4281 = smul.addr %s4280, 64
          %s4282 = scalar_lea.vmem [#allocation2], %s4281
          %4284 = dma.done %s4279, 1024
        $region76: #{hgstem_forward.1} parent=71 // pred_fallthru
          _
      $region72: #{hgstem_forward.1} parent=5 // pred_fallthru
        _
    $region6: #{hgstem_forward.1} parent=1 // loop_footer
      %s24 = sadd.s32 1, %s20
    $region7: #{hgstem_forward.1} parent=1 // loop_footer_branch
      %19 = sbr.rel target = $region3
    $region8: #{hgstem_forward.1} parent=1 // loop_exit
      _
    %4285 = vsyncpa [#allocation3], 1
    %s4286 = scalar_lea.sflag [#allocation3], 1
    %4287 = vsyncpa %s4286, 1

</llo_original>
